<compile_context>
chip_gen: v7x
topology: tpu7x:2x2x1
jax: 0.10.0
libtpu: 0.0.40
codegen_flags: <defaults>
</compile_context>

<pallas_src>
import jax
import jax.numpy as jnp
from jax import lax
from jax.experimental import pallas as pl
from jax.experimental.pallas import tpu as pltpu


# ---------------------------------------------------------------------------
# Fused kernel factory
# ---------------------------------------------------------------------------
def _make_residual_kernel(C, H, W, Hr, Wl, Ho):
    f32 = jnp.float32

    def rot(a, d, axis):
        """result[i] = a[(i + d) % n] along `axis` (static d != 0)."""
        n = a.shape[axis]
        i = d % n
        return lax.concatenate(
            [lax.slice_in_dim(a, i, n, axis=axis),
             lax.slice_in_dim(a, 0, i, axis=axis)],
            dimension=axis)

    def shift(a, dy, dx):
        """s[i, j] = a[i+dy, j+dx]; wrap-around only ever hits zero padding."""
        if dy != 0:
            a = rot(a, dy, 0)      # sublane rotation
        if dx != 0:
            a = rot(a, dx, 1)      # lane rotation
        return a

    def conv3x3(chans, w_ref, b_ref):
        """3x3 conv (padding=1 semantics) on per-channel (Hr, Wl) planes.

        `chans` are zero outside [0:H, 0:W].  Accumulation happens in local
        values (single-write), weights are SMEM scalars (VPU FMAs, no MXU).
        Result is valid on [0:H, 0:W]; other positions hold finite garbage.
        """
        accs = [jnp.full((Hr, Wl), b_ref[co], dtype=f32) for co in range(C)]
        for ky in range(3):
            for kx in range(3):
                # One shift per (tap, input-channel), shared by all out-channels.
                sh = [shift(chans[ci], ky - 1, kx - 1) for ci in range(C)]
                for co in range(C):
                    acc = accs[co]
                    base = co * C * 9 + ky * 3 + kx   # flat OIHW index
                    for ci in range(C):
                        acc = acc + w_ref[base + ci * 9] * sh[ci]
                    accs[co] = acc
        return accs

    def kernel(xp_ref, w1_ref, b1_ref, w2_ref, b2_ref, o_ref):
        # Valid-pixel mask, generated in-kernel (no per-step mask DMA).
        row = lax.broadcasted_iota(jnp.int32, (Hr, Wl), 0)
        col = lax.broadcasted_iota(jnp.int32, (Hr, Wl), 1)
        mask = ((row < H) & (col < W)).astype(f32)

        # conv1 + bias + ReLU.  The mask both discards garbage outside the
        # image and implements conv2's zero padding of y1.
        x_ch = [xp_ref[ci].astype(f32) for ci in range(C)]
        y1 = conv3x3(x_ch, w1_ref, b1_ref)
        y1 = [jnp.maximum(y, 0.0) * mask for y in y1]

        # conv2 + bias + residual; exactly one store per output channel.
        y2 = conv3x3(y1, w2_ref, b2_ref)
        for co in range(C):
            res = xp_ref[co, :Ho, :].astype(f32)
            o_ref[co] = (y2[co][:Ho, :] + res).astype(o_ref.dtype)

    return kernel


# ---------------------------------------------------------------------------
# Wrapper: minimal layout plumbing + pallas_call
# ---------------------------------------------------------------------------
def residual_forward(x_nchw, w1, b1, w2, b2):
    """Pallas implementation of Residual.forward.  x_nchw: (N, C, H, W)."""
    N, C, H, W = x_nchw.shape
    Hr = -(-(H + 1) // 8) * 8        # >= H+1, mult of 8  (roll-wrap safety)
    Wl = -(-(W + 1) // 128) * 128    # >= W+1, mult of 128 (lane-dense)
    Ho = -(-H // 8) * 8              # output rows, mult of 8

    # Single trailing zero-pad; NCHW layout preserved (no transposes).
    xp = jnp.pad(x_nchw, ((0, 0), (0, 0), (0, Hr - H), (0, Wl - W)))

    # Params flattened once; live in SMEM and are read as scalars in-kernel.
    w1f = w1.reshape(-1).astype(jnp.float32)   # idx = ((co*C + ci)*3 + ky)*3 + kx
    w2f = w2.reshape(-1).astype(jnp.float32)
    b1f = b1.reshape(-1).astype(jnp.float32)
    b2f = b2.reshape(-1).astype(jnp.float32)

    kernel = _make_residual_kernel(C, H, W, Hr, Wl, Ho)
    smem = pl.BlockSpec(memory_space=pltpu.MemorySpace.SMEM)

    out = pl.pallas_call(
        kernel,
        out_shape=jax.ShapeDtypeStruct((N, C, Ho, Wl), x_nchw.dtype),
        grid=(N,),
        in_specs=[
            pl.BlockSpec((None, C, Hr, Wl), lambda n: (n, 0, 0, 0)),  # image planes
            smem,   # conv1 weights (C*C*9,)
            smem,   # conv1 bias    (C,)
            smem,   # conv2 weights (C*C*9,)
            smem,   # conv2 bias    (C,)
        ],
        out_specs=pl.BlockSpec((None, C, Ho, Wl), lambda n: (n, 0, 0, 0)),
        compiler_params=pltpu.CompilerParams(
            dimension_semantics=("parallel",),
            vmem_limit_bytes=32 * 1024 * 1024,
        ),
    )(xp, w1f, b1f, w2f, b2f)

    # Crop lane/sublane padding back to (N, C, H, W).
    return out[:, :, :H, :W]


# ---------------------------------------------------------------------------
# Pure-JAX reference (for correctness check only)
# ---------------------------------------------------------------------------
def _reference(x, w1, b1, w2, b2):
    dn = ("NCHW", "OIHW", "NCHW")
    y = lax.conv_general_dilated(x, w1, (1, 1), ((1, 1), (1, 1)),
                                 dimension_numbers=dn)
    y = jnp.maximum(y + b1.reshape(1, -1, 1, 1), 0.0)
    y = lax.conv_general_dilated(y, w2, (1, 1), ((1, 1), (1, 1)),
                                 dimension_numbers=dn)
    return y + b2.reshape(1, -1, 1, 1) + x


if __name__ == "__main__":
    key = jax.random.PRNGKey(0)
    N, C, H, W = 2, 4, 16, 16

    kx_, k1, kb1, k2, kb2 = jax.random.split(key, 5)
    x = jax.random.normal(kx_, (N, C, H, W), dtype=jnp.float32)
    # Deterministic synthetic params for Conv2d(in_channel, in_channel, 3, padding=1).
    w1 = jax.random.normal(k1, (C, C, 3, 3), dtype=jnp.float32) * 0.1
    b1 = jax.random.normal(kb1, (C,), dtype=jnp.float32) * 0.1
    w2 = jax.random.normal(k2, (C, C, 3, 3), dtype=jnp.float32) * 0.1
    b2 = jax.random.normal(kb2, (C,), dtype=jnp.float32) * 0.1

    out = jax.jit(residual_forward)(x, w1, b1, w2, b2)
    out = jax.block_until_ready(out)

    ref = _reference(x, w1, b1, w2, b2)
    assert out.shape == (N, C, H, W) and out.dtype == x.dtype
    assert jnp.allclose(out, ref, atol=1e-4, rtol=1e-4), "mismatch vs reference"

    print("KERNEL_OK")
</pallas_src>

<mosaic_0001>
module attributes {stable_mosaic.version = 11 : i64} {
  func.func @kernel(%arg0: i32, %arg1: memref<1x4x24x128xf32, #tpu.memory_space<vmem>>, %arg2: memref<144xf32, #tpu.memory_space<smem>>, %arg3: memref<4xf32, #tpu.memory_space<smem>>, %arg4: memref<144xf32, #tpu.memory_space<smem>>, %arg5: memref<4xf32, #tpu.memory_space<smem>>, %arg6: memref<1x4x16x128xf32, #tpu.memory_space<vmem>>) attributes {dimension_semantics = [#tpu.dimension_semantics<parallel>], iteration_bounds = array<i64: 2>, scalar_prefetch = 0 : i64, scratch_operands = 0 : i64, tpu.core_type = #tpu.core_type<tc>, window_params = [{transform_indices = @transform_0, window_bounds = array<i64: 1, 4, 24, 128>}, {transform_indices = @transform_1, window_bounds = array<i64: 144>}, {transform_indices = @transform_2, window_bounds = array<i64: 4>}, {transform_indices = @transform_3, window_bounds = array<i64: 144>}, {transform_indices = @transform_4, window_bounds = array<i64: 4>}, {transform_indices = @transform_5, window_bounds = array<i64: 1, 4, 16, 128>}]} {
    %0 = tpu.iota {dimensions = array<i32: 0>} : vector<24x128xi32>
    %1 = tpu.iota {dimensions = array<i32: 1>} : vector<24x128xi32>
    %c16_i32 = arith.constant 16 : i32
    %2 = vector.broadcast %c16_i32 : i32 to vector<24x128xi32>
    %3 = arith.cmpi slt, %0, %2 : vector<24x128xi32>
    %c16_i32_0 = arith.constant 16 : i32
    %4 = vector.broadcast %c16_i32_0 : i32 to vector<24x128xi32>
    %5 = arith.cmpi slt, %1, %4 : vector<24x128xi32>
    %6 = arith.andi %3, %5 : vector<24x128xi1>
    %7 = arith.extui %6 : vector<24x128xi1> to vector<24x128xi32>
    %8 = arith.sitofp %7 : vector<24x128xi32> to vector<24x128xf32>
    %c0 = arith.constant 0 : index
    %c0_1 = arith.constant 0 : index
    %c0_2 = arith.constant 0 : index
    %c0_3 = arith.constant 0 : index
    %9 = vector.load %arg1[%c0, %c0_1, %c0_2, %c0_3] : memref<1x4x24x128xf32, #tpu.memory_space<vmem>>, vector<1x1x24x128xf32>
    %10 = vector.shape_cast %9 : vector<1x1x24x128xf32> to vector<24x128xf32>
    %c0_4 = arith.constant 0 : index
    %c1 = arith.constant 1 : index
    %c0_5 = arith.constant 0 : index
    %c0_6 = arith.constant 0 : index
    %11 = vector.load %arg1[%c0_4, %c1, %c0_5, %c0_6] : memref<1x4x24x128xf32, #tpu.memory_space<vmem>>, vector<1x1x24x128xf32>
    %12 = vector.shape_cast %11 : vector<1x1x24x128xf32> to vector<24x128xf32>
    %c0_7 = arith.constant 0 : index
    %c2 = arith.constant 2 : index
    %c0_8 = arith.constant 0 : index
    %c0_9 = arith.constant 0 : index
    %13 = vector.load %arg1[%c0_7, %c2, %c0_8, %c0_9] : memref<1x4x24x128xf32, #tpu.memory_space<vmem>>, vector<1x1x24x128xf32>
    %14 = vector.shape_cast %13 : vector<1x1x24x128xf32> to vector<24x128xf32>
    %c0_10 = arith.constant 0 : index
    %c3 = arith.constant 3 : index
    %c0_11 = arith.constant 0 : index
    %c0_12 = arith.constant 0 : index
    %15 = vector.load %arg1[%c0_10, %c3, %c0_11, %c0_12] : memref<1x4x24x128xf32, #tpu.memory_space<vmem>>, vector<1x1x24x128xf32>
    %16 = vector.shape_cast %15 : vector<1x1x24x128xf32> to vector<24x128xf32>
    %c0_13 = arith.constant 0 : index
    %17 = memref.load %arg3[%c0_13] : memref<4xf32, #tpu.memory_space<smem>>
    %18 = vector.broadcast %17 : f32 to vector<24x128xf32>
    %c1_14 = arith.constant 1 : index
    %19 = memref.load %arg3[%c1_14] : memref<4xf32, #tpu.memory_space<smem>>
    %20 = vector.broadcast %19 : f32 to vector<24x128xf32>
    %c2_15 = arith.constant 2 : index
    %21 = memref.load %arg3[%c2_15] : memref<4xf32, #tpu.memory_space<smem>>
    %22 = vector.broadcast %21 : f32 to vector<24x128xf32>
    %c3_16 = arith.constant 3 : index
    %23 = memref.load %arg3[%c3_16] : memref<4xf32, #tpu.memory_space<smem>>
    %24 = vector.broadcast %23 : f32 to vector<24x128xf32>
    %25 = vector.extract_strided_slice %10 {offsets = [23, 0], sizes = [1, 128], strides = [1, 1]} : vector<24x128xf32> to vector<1x128xf32>
    %26 = vector.extract_strided_slice %10 {offsets = [0, 0], sizes = [23, 128], strides = [1, 1]} : vector<24x128xf32> to vector<23x128xf32>
    %27 = tpu.concatenate %25, %26 in 0 : vector<1x128xf32>, vector<23x128xf32> -> vector<24x128xf32>
    %28 = vector.extract_strided_slice %27 {offsets = [0, 127], sizes = [24, 1], strides = [1, 1]} : vector<24x128xf32> to vector<24x1xf32>
    %29 = vector.extract_strided_slice %27 {offsets = [0, 0], sizes = [24, 127], strides = [1, 1]} : vector<24x128xf32> to vector<24x127xf32>
    %30 = tpu.concatenate %28, %29 in 1 : vector<24x1xf32>, vector<24x127xf32> -> vector<24x128xf32>
    %31 = vector.extract_strided_slice %12 {offsets = [23, 0], sizes = [1, 128], strides = [1, 1]} : vector<24x128xf32> to vector<1x128xf32>
    %32 = vector.extract_strided_slice %12 {offsets = [0, 0], sizes = [23, 128], strides = [1, 1]} : vector<24x128xf32> to vector<23x128xf32>
    %33 = tpu.concatenate %31, %32 in 0 : vector<1x128xf32>, vector<23x128xf32> -> vector<24x128xf32>
    %34 = vector.extract_strided_slice %33 {offsets = [0, 127], sizes = [24, 1], strides = [1, 1]} : vector<24x128xf32> to vector<24x1xf32>
    %35 = vector.extract_strided_slice %33 {offsets = [0, 0], sizes = [24, 127], strides = [1, 1]} : vector<24x128xf32> to vector<24x127xf32>
    %36 = tpu.concatenate %34, %35 in 1 : vector<24x1xf32>, vector<24x127xf32> -> vector<24x128xf32>
    %37 = vector.extract_strided_slice %14 {offsets = [23, 0], sizes = [1, 128], strides = [1, 1]} : vector<24x128xf32> to vector<1x128xf32>
    %38 = vector.extract_strided_slice %14 {offsets = [0, 0], sizes = [23, 128], strides = [1, 1]} : vector<24x128xf32> to vector<23x128xf32>
    %39 = tpu.concatenate %37, %38 in 0 : vector<1x128xf32>, vector<23x128xf32> -> vector<24x128xf32>
    %40 = vector.extract_strided_slice %39 {offsets = [0, 127], sizes = [24, 1], strides = [1, 1]} : vector<24x128xf32> to vector<24x1xf32>
    %41 = vector.extract_strided_slice %39 {offsets = [0, 0], sizes = [24, 127], strides = [1, 1]} : vector<24x128xf32> to vector<24x127xf32>
    %42 = tpu.concatenate %40, %41 in 1 : vector<24x1xf32>, vector<24x127xf32> -> vector<24x128xf32>
    %43 = vector.extract_strided_slice %16 {offsets = [23, 0], sizes = [1, 128], strides = [1, 1]} : vector<24x128xf32> to vector<1x128xf32>
    %44 = vector.extract_strided_slice %16 {offsets = [0, 0], sizes = [23, 128], strides = [1, 1]} : vector<24x128xf32> to vector<23x128xf32>
    %45 = tpu.concatenate %43, %44 in 0 : vector<1x128xf32>, vector<23x128xf32> -> vector<24x128xf32>
    %46 = vector.extract_strided_slice %45 {offsets = [0, 127], sizes = [24, 1], strides = [1, 1]} : vector<24x128xf32> to vector<24x1xf32>
    %47 = vector.extract_strided_slice %45 {offsets = [0, 0], sizes = [24, 127], strides = [1, 1]} : vector<24x128xf32> to vector<24x127xf32>
    %48 = tpu.concatenate %46, %47 in 1 : vector<24x1xf32>, vector<24x127xf32> -> vector<24x128xf32>
    %c0_17 = arith.constant 0 : index
    %49 = memref.load %arg2[%c0_17] : memref<144xf32, #tpu.memory_space<smem>>
    %50 = vector.broadcast %49 : f32 to vector<24x128xf32>
    %51 = arith.mulf %50, %30 : vector<24x128xf32>
    %52 = arith.addf %18, %51 : vector<24x128xf32>
    %c9 = arith.constant 9 : index
    %53 = memref.load %arg2[%c9] : memref<144xf32, #tpu.memory_space<smem>>
    %54 = vector.broadcast %53 : f32 to vector<24x128xf32>
    %55 = arith.mulf %54, %36 : vector<24x128xf32>
    %56 = arith.addf %52, %55 : vector<24x128xf32>
    %c18 = arith.constant 18 : index
    %57 = memref.load %arg2[%c18] : memref<144xf32, #tpu.memory_space<smem>>
    %58 = vector.broadcast %57 : f32 to vector<24x128xf32>
    %59 = arith.mulf %58, %42 : vector<24x128xf32>
    %60 = arith.addf %56, %59 : vector<24x128xf32>
    %c27 = arith.constant 27 : index
    %61 = memref.load %arg2[%c27] : memref<144xf32, #tpu.memory_space<smem>>
    %62 = vector.broadcast %61 : f32 to vector<24x128xf32>
    %63 = arith.mulf %62, %48 : vector<24x128xf32>
    %64 = arith.addf %60, %63 : vector<24x128xf32>
    %c36 = arith.constant 36 : index
    %65 = memref.load %arg2[%c36] : memref<144xf32, #tpu.memory_space<smem>>
    %66 = vector.broadcast %65 : f32 to vector<24x128xf32>
    %67 = arith.mulf %66, %30 : vector<24x128xf32>
    %68 = arith.addf %20, %67 : vector<24x128xf32>
    %c45 = arith.constant 45 : index
    %69 = memref.load %arg2[%c45] : memref<144xf32, #tpu.memory_space<smem>>
    %70 = vector.broadcast %69 : f32 to vector<24x128xf32>
    %71 = arith.mulf %70, %36 : vector<24x128xf32>
    %72 = arith.addf %68, %71 : vector<24x128xf32>
    %c54 = arith.constant 54 : index
    %73 = memref.load %arg2[%c54] : memref<144xf32, #tpu.memory_space<smem>>
    %74 = vector.broadcast %73 : f32 to vector<24x128xf32>
    %75 = arith.mulf %74, %42 : vector<24x128xf32>
    %76 = arith.addf %72, %75 : vector<24x128xf32>
    %c63 = arith.constant 63 : index
    %77 = memref.load %arg2[%c63] : memref<144xf32, #tpu.memory_space<smem>>
    %78 = vector.broadcast %77 : f32 to vector<24x128xf32>
    %79 = arith.mulf %78, %48 : vector<24x128xf32>
    %80 = arith.addf %76, %79 : vector<24x128xf32>
    %c72 = arith.constant 72 : index
    %81 = memref.load %arg2[%c72] : memref<144xf32, #tpu.memory_space<smem>>
    %82 = vector.broadcast %81 : f32 to vector<24x128xf32>
    %83 = arith.mulf %82, %30 : vector<24x128xf32>
    %84 = arith.addf %22, %83 : vector<24x128xf32>
    %c81 = arith.constant 81 : index
    %85 = memref.load %arg2[%c81] : memref<144xf32, #tpu.memory_space<smem>>
    %86 = vector.broadcast %85 : f32 to vector<24x128xf32>
    %87 = arith.mulf %86, %36 : vector<24x128xf32>
    %88 = arith.addf %84, %87 : vector<24x128xf32>
    %c90 = arith.constant 90 : index
    %89 = memref.load %arg2[%c90] : memref<144xf32, #tpu.memory_space<smem>>
    %90 = vector.broadcast %89 : f32 to vector<24x128xf32>
    %91 = arith.mulf %90, %42 : vector<24x128xf32>
    %92 = arith.addf %88, %91 : vector<24x128xf32>
    %c99 = arith.constant 99 : index
    %93 = memref.load %arg2[%c99] : memref<144xf32, #tpu.memory_space<smem>>
    %94 = vector.broadcast %93 : f32 to vector<24x128xf32>
    %95 = arith.mulf %94, %48 : vector<24x128xf32>
    %96 = arith.addf %92, %95 : vector<24x128xf32>
    %c108 = arith.constant 108 : index
    %97 = memref.load %arg2[%c108] : memref<144xf32, #tpu.memory_space<smem>>
    %98 = vector.broadcast %97 : f32 to vector<24x128xf32>
    %99 = arith.mulf %98, %30 : vector<24x128xf32>
    %100 = arith.addf %24, %99 : vector<24x128xf32>
    %c117 = arith.constant 117 : index
    %101 = memref.load %arg2[%c117] : memref<144xf32, #tpu.memory_space<smem>>
    %102 = vector.broadcast %101 : f32 to vector<24x128xf32>
    %103 = arith.mulf %102, %36 : vector<24x128xf32>
    %104 = arith.addf %100, %103 : vector<24x128xf32>
    %c126 = arith.constant 126 : index
    %105 = memref.load %arg2[%c126] : memref<144xf32, #tpu.memory_space<smem>>
    %106 = vector.broadcast %105 : f32 to vector<24x128xf32>
    %107 = arith.mulf %106, %42 : vector<24x128xf32>
    %108 = arith.addf %104, %107 : vector<24x128xf32>
    %c135 = arith.constant 135 : index
    %109 = memref.load %arg2[%c135] : memref<144xf32, #tpu.memory_space<smem>>
    %110 = vector.broadcast %109 : f32 to vector<24x128xf32>
    %111 = arith.mulf %110, %48 : vector<24x128xf32>
    %112 = arith.addf %108, %111 : vector<24x128xf32>
    %113 = vector.extract_strided_slice %10 {offsets = [23, 0], sizes = [1, 128], strides = [1, 1]} : vector<24x128xf32> to vector<1x128xf32>
    %114 = vector.extract_strided_slice %10 {offsets = [0, 0], sizes = [23, 128], strides = [1, 1]} : vector<24x128xf32> to vector<23x128xf32>
    %115 = tpu.concatenate %113, %114 in 0 : vector<1x128xf32>, vector<23x128xf32> -> vector<24x128xf32>
    %116 = vector.extract_strided_slice %12 {offsets = [23, 0], sizes = [1, 128], strides = [1, 1]} : vector<24x128xf32> to vector<1x128xf32>
    %117 = vector.extract_strided_slice %12 {offsets = [0, 0], sizes = [23, 128], strides = [1, 1]} : vector<24x128xf32> to vector<23x128xf32>
    %118 = tpu.concatenate %116, %117 in 0 : vector<1x128xf32>, vector<23x128xf32> -> vector<24x128xf32>
    %119 = vector.extract_strided_slice %14 {offsets = [23, 0], sizes = [1, 128], strides = [1, 1]} : vector<24x128xf32> to vector<1x128xf32>
    %120 = vector.extract_strided_slice %14 {offsets = [0, 0], sizes = [23, 128], strides = [1, 1]} : vector<24x128xf32> to vector<23x128xf32>
    %121 = tpu.concatenate %119, %120 in 0 : vector<1x128xf32>, vector<23x128xf32> -> vector<24x128xf32>
    %122 = vector.extract_strided_slice %16 {offsets = [23, 0], sizes = [1, 128], strides = [1, 1]} : vector<24x128xf32> to vector<1x128xf32>
    %123 = vector.extract_strided_slice %16 {offsets = [0, 0], sizes = [23, 128], strides = [1, 1]} : vector<24x128xf32> to vector<23x128xf32>
    %124 = tpu.concatenate %122, %123 in 0 : vector<1x128xf32>, vector<23x128xf32> -> vector<24x128xf32>
    %c1_18 = arith.constant 1 : index
    %125 = memref.load %arg2[%c1_18] : memref<144xf32, #tpu.memory_space<smem>>
    %126 = vector.broadcast %125 : f32 to vector<24x128xf32>
    %127 = arith.mulf %126, %115 : vector<24x128xf32>
    %128 = arith.addf %64, %127 : vector<24x128xf32>
    %c10 = arith.constant 10 : index
    %129 = memref.load %arg2[%c10] : memref<144xf32, #tpu.memory_space<smem>>
    %130 = vector.broadcast %129 : f32 to vector<24x128xf32>
    %131 = arith.mulf %130, %118 : vector<24x128xf32>
    %132 = arith.addf %128, %131 : vector<24x128xf32>
    %c19 = arith.constant 19 : index
    %133 = memref.load %arg2[%c19] : memref<144xf32, #tpu.memory_space<smem>>
    %134 = vector.broadcast %133 : f32 to vector<24x128xf32>
    %135 = arith.mulf %134, %121 : vector<24x128xf32>
    %136 = arith.addf %132, %135 : vector<24x128xf32>
    %c28 = arith.constant 28 : index
    %137 = memref.load %arg2[%c28] : memref<144xf32, #tpu.memory_space<smem>>
    %138 = vector.broadcast %137 : f32 to vector<24x128xf32>
    %139 = arith.mulf %138, %124 : vector<24x128xf32>
    %140 = arith.addf %136, %139 : vector<24x128xf32>
    %c37 = arith.constant 37 : index
    %141 = memref.load %arg2[%c37] : memref<144xf32, #tpu.memory_space<smem>>
    %142 = vector.broadcast %141 : f32 to vector<24x128xf32>
    %143 = arith.mulf %142, %115 : vector<24x128xf32>
    %144 = arith.addf %80, %143 : vector<24x128xf32>
    %c46 = arith.constant 46 : index
    %145 = memref.load %arg2[%c46] : memref<144xf32, #tpu.memory_space<smem>>
    %146 = vector.broadcast %145 : f32 to vector<24x128xf32>
    %147 = arith.mulf %146, %118 : vector<24x128xf32>
    %148 = arith.addf %144, %147 : vector<24x128xf32>
    %c55 = arith.constant 55 : index
    %149 = memref.load %arg2[%c55] : memref<144xf32, #tpu.memory_space<smem>>
    %150 = vector.broadcast %149 : f32 to vector<24x128xf32>
    %151 = arith.mulf %150, %121 : vector<24x128xf32>
    %152 = arith.addf %148, %151 : vector<24x128xf32>
    %c64 = arith.constant 64 : index
    %153 = memref.load %arg2[%c64] : memref<144xf32, #tpu.memory_space<smem>>
    %154 = vector.broadcast %153 : f32 to vector<24x128xf32>
    %155 = arith.mulf %154, %124 : vector<24x128xf32>
    %156 = arith.addf %152, %155 : vector<24x128xf32>
    %c73 = arith.constant 73 : index
    %157 = memref.load %arg2[%c73] : memref<144xf32, #tpu.memory_space<smem>>
    %158 = vector.broadcast %157 : f32 to vector<24x128xf32>
    %159 = arith.mulf %158, %115 : vector<24x128xf32>
    %160 = arith.addf %96, %159 : vector<24x128xf32>
    %c82 = arith.constant 82 : index
    %161 = memref.load %arg2[%c82] : memref<144xf32, #tpu.memory_space<smem>>
    %162 = vector.broadcast %161 : f32 to vector<24x128xf32>
    %163 = arith.mulf %162, %118 : vector<24x128xf32>
    %164 = arith.addf %160, %163 : vector<24x128xf32>
    %c91 = arith.constant 91 : index
    %165 = memref.load %arg2[%c91] : memref<144xf32, #tpu.memory_space<smem>>
    %166 = vector.broadcast %165 : f32 to vector<24x128xf32>
    %167 = arith.mulf %166, %121 : vector<24x128xf32>
    %168 = arith.addf %164, %167 : vector<24x128xf32>
    %c100 = arith.constant 100 : index
    %169 = memref.load %arg2[%c100] : memref<144xf32, #tpu.memory_space<smem>>
    %170 = vector.broadcast %169 : f32 to vector<24x128xf32>
    %171 = arith.mulf %170, %124 : vector<24x128xf32>
    %172 = arith.addf %168, %171 : vector<24x128xf32>
    %c109 = arith.constant 109 : index
    %173 = memref.load %arg2[%c109] : memref<144xf32, #tpu.memory_space<smem>>
    %174 = vector.broadcast %173 : f32 to vector<24x128xf32>
    %175 = arith.mulf %174, %115 : vector<24x128xf32>
    %176 = arith.addf %112, %175 : vector<24x128xf32>
    %c118 = arith.constant 118 : index
    %177 = memref.load %arg2[%c118] : memref<144xf32, #tpu.memory_space<smem>>
    %178 = vector.broadcast %177 : f32 to vector<24x128xf32>
    %179 = arith.mulf %178, %118 : vector<24x128xf32>
    %180 = arith.addf %176, %179 : vector<24x128xf32>
    %c127 = arith.constant 127 : index
    %181 = memref.load %arg2[%c127] : memref<144xf32, #tpu.memory_space<smem>>
    %182 = vector.broadcast %181 : f32 to vector<24x128xf32>
    %183 = arith.mulf %182, %121 : vector<24x128xf32>
    %184 = arith.addf %180, %183 : vector<24x128xf32>
    %c136 = arith.constant 136 : index
    %185 = memref.load %arg2[%c136] : memref<144xf32, #tpu.memory_space<smem>>
    %186 = vector.broadcast %185 : f32 to vector<24x128xf32>
    %187 = arith.mulf %186, %124 : vector<24x128xf32>
    %188 = arith.addf %184, %187 : vector<24x128xf32>
    %189 = vector.extract_strided_slice %10 {offsets = [23, 0], sizes = [1, 128], strides = [1, 1]} : vector<24x128xf32> to vector<1x128xf32>
    %190 = vector.extract_strided_slice %10 {offsets = [0, 0], sizes = [23, 128], strides = [1, 1]} : vector<24x128xf32> to vector<23x128xf32>
    %191 = tpu.concatenate %189, %190 in 0 : vector<1x128xf32>, vector<23x128xf32> -> vector<24x128xf32>
    %192 = vector.extract_strided_slice %191 {offsets = [0, 1], sizes = [24, 127], strides = [1, 1]} : vector<24x128xf32> to vector<24x127xf32>
    %193 = vector.extract_strided_slice %191 {offsets = [0, 0], sizes = [24, 1], strides = [1, 1]} : vector<24x128xf32> to vector<24x1xf32>
    %194 = tpu.concatenate %192, %193 in 1 : vector<24x127xf32>, vector<24x1xf32> -> vector<24x128xf32>
    %195 = vector.extract_strided_slice %12 {offsets = [23, 0], sizes = [1, 128], strides = [1, 1]} : vector<24x128xf32> to vector<1x128xf32>
    %196 = vector.extract_strided_slice %12 {offsets = [0, 0], sizes = [23, 128], strides = [1, 1]} : vector<24x128xf32> to vector<23x128xf32>
    %197 = tpu.concatenate %195, %196 in 0 : vector<1x128xf32>, vector<23x128xf32> -> vector<24x128xf32>
    %198 = vector.extract_strided_slice %197 {offsets = [0, 1], sizes = [24, 127], strides = [1, 1]} : vector<24x128xf32> to vector<24x127xf32>
    %199 = vector.extract_strided_slice %197 {offsets = [0, 0], sizes = [24, 1], strides = [1, 1]} : vector<24x128xf32> to vector<24x1xf32>
    %200 = tpu.concatenate %198, %199 in 1 : vector<24x127xf32>, vector<24x1xf32> -> vector<24x128xf32>
    %201 = vector.extract_strided_slice %14 {offsets = [23, 0], sizes = [1, 128], strides = [1, 1]} : vector<24x128xf32> to vector<1x128xf32>
    %202 = vector.extract_strided_slice %14 {offsets = [0, 0], sizes = [23, 128], strides = [1, 1]} : vector<24x128xf32> to vector<23x128xf32>
    %203 = tpu.concatenate %201, %202 in 0 : vector<1x128xf32>, vector<23x128xf32> -> vector<24x128xf32>
    %204 = vector.extract_strided_slice %203 {offsets = [0, 1], sizes = [24, 127], strides = [1, 1]} : vector<24x128xf32> to vector<24x127xf32>
    %205 = vector.extract_strided_slice %203 {offsets = [0, 0], sizes = [24, 1], strides = [1, 1]} : vector<24x128xf32> to vector<24x1xf32>
    %206 = tpu.concatenate %204, %205 in 1 : vector<24x127xf32>, vector<24x1xf32> -> vector<24x128xf32>
    %207 = vector.extract_strided_slice %16 {offsets = [23, 0], sizes = [1, 128], strides = [1, 1]} : vector<24x128xf32> to vector<1x128xf32>
    %208 = vector.extract_strided_slice %16 {offsets = [0, 0], sizes = [23, 128], strides = [1, 1]} : vector<24x128xf32> to vector<23x128xf32>
    %209 = tpu.concatenate %207, %208 in 0 : vector<1x128xf32>, vector<23x128xf32> -> vector<24x128xf32>
    %210 = vector.extract_strided_slice %209 {offsets = [0, 1], sizes = [24, 127], strides = [1, 1]} : vector<24x128xf32> to vector<24x127xf32>
    %211 = vector.extract_strided_slice %209 {offsets = [0, 0], sizes = [24, 1], strides = [1, 1]} : vector<24x128xf32> to vector<24x1xf32>
    %212 = tpu.concatenate %210, %211 in 1 : vector<24x127xf32>, vector<24x1xf32> -> vector<24x128xf32>
    %c2_19 = arith.constant 2 : index
    %213 = memref.load %arg2[%c2_19] : memref<144xf32, #tpu.memory_space<smem>>
    %214 = vector.broadcast %213 : f32 to vector<24x128xf32>
    %215 = arith.mulf %214, %194 : vector<24x128xf32>
    %216 = arith.addf %140, %215 : vector<24x128xf32>
    %c11 = arith.constant 11 : index
    %217 = memref.load %arg2[%c11] : memref<144xf32, #tpu.memory_space<smem>>
    %218 = vector.broadcast %217 : f32 to vector<24x128xf32>
    %219 = arith.mulf %218, %200 : vector<24x128xf32>
    %220 = arith.addf %216, %219 : vector<24x128xf32>
    %c20 = arith.constant 20 : index
    %221 = memref.load %arg2[%c20] : memref<144xf32, #tpu.memory_space<smem>>
    %222 = vector.broadcast %221 : f32 to vector<24x128xf32>
    %223 = arith.mulf %222, %206 : vector<24x128xf32>
    %224 = arith.addf %220, %223 : vector<24x128xf32>
    %c29 = arith.constant 29 : index
    %225 = memref.load %arg2[%c29] : memref<144xf32, #tpu.memory_space<smem>>
    %226 = vector.broadcast %225 : f32 to vector<24x128xf32>
    %227 = arith.mulf %226, %212 : vector<24x128xf32>
    %228 = arith.addf %224, %227 : vector<24x128xf32>
    %c38 = arith.constant 38 : index
    %229 = memref.load %arg2[%c38] : memref<144xf32, #tpu.memory_space<smem>>
    %230 = vector.broadcast %229 : f32 to vector<24x128xf32>
    %231 = arith.mulf %230, %194 : vector<24x128xf32>
    %232 = arith.addf %156, %231 : vector<24x128xf32>
    %c47 = arith.constant 47 : index
    %233 = memref.load %arg2[%c47] : memref<144xf32, #tpu.memory_space<smem>>
    %234 = vector.broadcast %233 : f32 to vector<24x128xf32>
    %235 = arith.mulf %234, %200 : vector<24x128xf32>
    %236 = arith.addf %232, %235 : vector<24x128xf32>
    %c56 = arith.constant 56 : index
    %237 = memref.load %arg2[%c56] : memref<144xf32, #tpu.memory_space<smem>>
    %238 = vector.broadcast %237 : f32 to vector<24x128xf32>
    %239 = arith.mulf %238, %206 : vector<24x128xf32>
    %240 = arith.addf %236, %239 : vector<24x128xf32>
    %c65 = arith.constant 65 : index
    %241 = memref.load %arg2[%c65] : memref<144xf32, #tpu.memory_space<smem>>
    %242 = vector.broadcast %241 : f32 to vector<24x128xf32>
    %243 = arith.mulf %242, %212 : vector<24x128xf32>
    %244 = arith.addf %240, %243 : vector<24x128xf32>
    %c74 = arith.constant 74 : index
    %245 = memref.load %arg2[%c74] : memref<144xf32, #tpu.memory_space<smem>>
    %246 = vector.broadcast %245 : f32 to vector<24x128xf32>
    %247 = arith.mulf %246, %194 : vector<24x128xf32>
    %248 = arith.addf %172, %247 : vector<24x128xf32>
    %c83 = arith.constant 83 : index
    %249 = memref.load %arg2[%c83] : memref<144xf32, #tpu.memory_space<smem>>
    %250 = vector.broadcast %249 : f32 to vector<24x128xf32>
    %251 = arith.mulf %250, %200 : vector<24x128xf32>
    %252 = arith.addf %248, %251 : vector<24x128xf32>
    %c92 = arith.constant 92 : index
    %253 = memref.load %arg2[%c92] : memref<144xf32, #tpu.memory_space<smem>>
    %254 = vector.broadcast %253 : f32 to vector<24x128xf32>
    %255 = arith.mulf %254, %206 : vector<24x128xf32>
    %256 = arith.addf %252, %255 : vector<24x128xf32>
    %c101 = arith.constant 101 : index
    %257 = memref.load %arg2[%c101] : memref<144xf32, #tpu.memory_space<smem>>
    %258 = vector.broadcast %257 : f32 to vector<24x128xf32>
    %259 = arith.mulf %258, %212 : vector<24x128xf32>
    %260 = arith.addf %256, %259 : vector<24x128xf32>
    %c110 = arith.constant 110 : index
    %261 = memref.load %arg2[%c110] : memref<144xf32, #tpu.memory_space<smem>>
    %262 = vector.broadcast %261 : f32 to vector<24x128xf32>
    %263 = arith.mulf %262, %194 : vector<24x128xf32>
    %264 = arith.addf %188, %263 : vector<24x128xf32>
    %c119 = arith.constant 119 : index
    %265 = memref.load %arg2[%c119] : memref<144xf32, #tpu.memory_space<smem>>
    %266 = vector.broadcast %265 : f32 to vector<24x128xf32>
    %267 = arith.mulf %266, %200 : vector<24x128xf32>
    %268 = arith.addf %264, %267 : vector<24x128xf32>
    %c128 = arith.constant 128 : index
    %269 = memref.load %arg2[%c128] : memref<144xf32, #tpu.memory_space<smem>>
    %270 = vector.broadcast %269 : f32 to vector<24x128xf32>
    %271 = arith.mulf %270, %206 : vector<24x128xf32>
    %272 = arith.addf %268, %271 : vector<24x128xf32>
    %c137 = arith.constant 137 : index
    %273 = memref.load %arg2[%c137] : memref<144xf32, #tpu.memory_space<smem>>
    %274 = vector.broadcast %273 : f32 to vector<24x128xf32>
    %275 = arith.mulf %274, %212 : vector<24x128xf32>
    %276 = arith.addf %272, %275 : vector<24x128xf32>
    %277 = vector.extract_strided_slice %10 {offsets = [0, 127], sizes = [24, 1], strides = [1, 1]} : vector<24x128xf32> to vector<24x1xf32>
    %278 = vector.extract_strided_slice %10 {offsets = [0, 0], sizes = [24, 127], strides = [1, 1]} : vector<24x128xf32> to vector<24x127xf32>
    %279 = tpu.concatenate %277, %278 in 1 : vector<24x1xf32>, vector<24x127xf32> -> vector<24x128xf32>
    %280 = vector.extract_strided_slice %12 {offsets = [0, 127], sizes = [24, 1], strides = [1, 1]} : vector<24x128xf32> to vector<24x1xf32>
    %281 = vector.extract_strided_slice %12 {offsets = [0, 0], sizes = [24, 127], strides = [1, 1]} : vector<24x128xf32> to vector<24x127xf32>
    %282 = tpu.concatenate %280, %281 in 1 : vector<24x1xf32>, vector<24x127xf32> -> vector<24x128xf32>
    %283 = vector.extract_strided_slice %14 {offsets = [0, 127], sizes = [24, 1], strides = [1, 1]} : vector<24x128xf32> to vector<24x1xf32>
    %284 = vector.extract_strided_slice %14 {offsets = [0, 0], sizes = [24, 127], strides = [1, 1]} : vector<24x128xf32> to vector<24x127xf32>
    %285 = tpu.concatenate %283, %284 in 1 : vector<24x1xf32>, vector<24x127xf32> -> vector<24x128xf32>
    %286 = vector.extract_strided_slice %16 {offsets = [0, 127], sizes = [24, 1], strides = [1, 1]} : vector<24x128xf32> to vector<24x1xf32>
    %287 = vector.extract_strided_slice %16 {offsets = [0, 0], sizes = [24, 127], strides = [1, 1]} : vector<24x128xf32> to vector<24x127xf32>
    %288 = tpu.concatenate %286, %287 in 1 : vector<24x1xf32>, vector<24x127xf32> -> vector<24x128xf32>
    %c3_20 = arith.constant 3 : index
    %289 = memref.load %arg2[%c3_20] : memref<144xf32, #tpu.memory_space<smem>>
    %290 = vector.broadcast %289 : f32 to vector<24x128xf32>
    %291 = arith.mulf %290, %279 : vector<24x128xf32>
    %292 = arith.addf %228, %291 : vector<24x128xf32>
    %c12 = arith.constant 12 : index
    %293 = memref.load %arg2[%c12] : memref<144xf32, #tpu.memory_space<smem>>
    %294 = vector.broadcast %293 : f32 to vector<24x128xf32>
    %295 = arith.mulf %294, %282 : vector<24x128xf32>
    %296 = arith.addf %292, %295 : vector<24x128xf32>
    %c21 = arith.constant 21 : index
    %297 = memref.load %arg2[%c21] : memref<144xf32, #tpu.memory_space<smem>>
    %298 = vector.broadcast %297 : f32 to vector<24x128xf32>
    %299 = arith.mulf %298, %285 : vector<24x128xf32>
    %300 = arith.addf %296, %299 : vector<24x128xf32>
    %c30 = arith.constant 30 : index
    %301 = memref.load %arg2[%c30] : memref<144xf32, #tpu.memory_space<smem>>
    %302 = vector.broadcast %301 : f32 to vector<24x128xf32>
    %303 = arith.mulf %302, %288 : vector<24x128xf32>
    %304 = arith.addf %300, %303 : vector<24x128xf32>
    %c39 = arith.constant 39 : index
    %305 = memref.load %arg2[%c39] : memref<144xf32, #tpu.memory_space<smem>>
    %306 = vector.broadcast %305 : f32 to vector<24x128xf32>
    %307 = arith.mulf %306, %279 : vector<24x128xf32>
    %308 = arith.addf %244, %307 : vector<24x128xf32>
    %c48 = arith.constant 48 : index
    %309 = memref.load %arg2[%c48] : memref<144xf32, #tpu.memory_space<smem>>
    %310 = vector.broadcast %309 : f32 to vector<24x128xf32>
    %311 = arith.mulf %310, %282 : vector<24x128xf32>
    %312 = arith.addf %308, %311 : vector<24x128xf32>
    %c57 = arith.constant 57 : index
    %313 = memref.load %arg2[%c57] : memref<144xf32, #tpu.memory_space<smem>>
    %314 = vector.broadcast %313 : f32 to vector<24x128xf32>
    %315 = arith.mulf %314, %285 : vector<24x128xf32>
    %316 = arith.addf %312, %315 : vector<24x128xf32>
    %c66 = arith.constant 66 : index
    %317 = memref.load %arg2[%c66] : memref<144xf32, #tpu.memory_space<smem>>
    %318 = vector.broadcast %317 : f32 to vector<24x128xf32>
    %319 = arith.mulf %318, %288 : vector<24x128xf32>
    %320 = arith.addf %316, %319 : vector<24x128xf32>
    %c75 = arith.constant 75 : index
    %321 = memref.load %arg2[%c75] : memref<144xf32, #tpu.memory_space<smem>>
    %322 = vector.broadcast %321 : f32 to vector<24x128xf32>
    %323 = arith.mulf %322, %279 : vector<24x128xf32>
    %324 = arith.addf %260, %323 : vector<24x128xf32>
    %c84 = arith.constant 84 : index
    %325 = memref.load %arg2[%c84] : memref<144xf32, #tpu.memory_space<smem>>
    %326 = vector.broadcast %325 : f32 to vector<24x128xf32>
    %327 = arith.mulf %326, %282 : vector<24x128xf32>
    %328 = arith.addf %324, %327 : vector<24x128xf32>
    %c93 = arith.constant 93 : index
    %329 = memref.load %arg2[%c93] : memref<144xf32, #tpu.memory_space<smem>>
    %330 = vector.broadcast %329 : f32 to vector<24x128xf32>
    %331 = arith.mulf %330, %285 : vector<24x128xf32>
    %332 = arith.addf %328, %331 : vector<24x128xf32>
    %c102 = arith.constant 102 : index
    %333 = memref.load %arg2[%c102] : memref<144xf32, #tpu.memory_space<smem>>
    %334 = vector.broadcast %333 : f32 to vector<24x128xf32>
    %335 = arith.mulf %334, %288 : vector<24x128xf32>
    %336 = arith.addf %332, %335 : vector<24x128xf32>
    %c111 = arith.constant 111 : index
    %337 = memref.load %arg2[%c111] : memref<144xf32, #tpu.memory_space<smem>>
    %338 = vector.broadcast %337 : f32 to vector<24x128xf32>
    %339 = arith.mulf %338, %279 : vector<24x128xf32>
    %340 = arith.addf %276, %339 : vector<24x128xf32>
    %c120 = arith.constant 120 : index
    %341 = memref.load %arg2[%c120] : memref<144xf32, #tpu.memory_space<smem>>
    %342 = vector.broadcast %341 : f32 to vector<24x128xf32>
    %343 = arith.mulf %342, %282 : vector<24x128xf32>
    %344 = arith.addf %340, %343 : vector<24x128xf32>
    %c129 = arith.constant 129 : index
    %345 = memref.load %arg2[%c129] : memref<144xf32, #tpu.memory_space<smem>>
    %346 = vector.broadcast %345 : f32 to vector<24x128xf32>
    %347 = arith.mulf %346, %285 : vector<24x128xf32>
    %348 = arith.addf %344, %347 : vector<24x128xf32>
    %c138 = arith.constant 138 : index
    %349 = memref.load %arg2[%c138] : memref<144xf32, #tpu.memory_space<smem>>
    %350 = vector.broadcast %349 : f32 to vector<24x128xf32>
    %351 = arith.mulf %350, %288 : vector<24x128xf32>
    %352 = arith.addf %348, %351 : vector<24x128xf32>
    %c4 = arith.constant 4 : index
    %353 = memref.load %arg2[%c4] : memref<144xf32, #tpu.memory_space<smem>>
    %354 = vector.broadcast %353 : f32 to vector<24x128xf32>
    %355 = arith.mulf %354, %10 : vector<24x128xf32>
    %356 = arith.addf %304, %355 : vector<24x128xf32>
    %c13 = arith.constant 13 : index
    %357 = memref.load %arg2[%c13] : memref<144xf32, #tpu.memory_space<smem>>
    %358 = vector.broadcast %357 : f32 to vector<24x128xf32>
    %359 = arith.mulf %358, %12 : vector<24x128xf32>
    %360 = arith.addf %356, %359 : vector<24x128xf32>
    %c22 = arith.constant 22 : index
    %361 = memref.load %arg2[%c22] : memref<144xf32, #tpu.memory_space<smem>>
    %362 = vector.broadcast %361 : f32 to vector<24x128xf32>
    %363 = arith.mulf %362, %14 : vector<24x128xf32>
    %364 = arith.addf %360, %363 : vector<24x128xf32>
    %c31 = arith.constant 31 : index
    %365 = memref.load %arg2[%c31] : memref<144xf32, #tpu.memory_space<smem>>
    %366 = vector.broadcast %365 : f32 to vector<24x128xf32>
    %367 = arith.mulf %366, %16 : vector<24x128xf32>
    %368 = arith.addf %364, %367 : vector<24x128xf32>
    %c40 = arith.constant 40 : index
    %369 = memref.load %arg2[%c40] : memref<144xf32, #tpu.memory_space<smem>>
    %370 = vector.broadcast %369 : f32 to vector<24x128xf32>
    %371 = arith.mulf %370, %10 : vector<24x128xf32>
    %372 = arith.addf %320, %371 : vector<24x128xf32>
    %c49 = arith.constant 49 : index
    %373 = memref.load %arg2[%c49] : memref<144xf32, #tpu.memory_space<smem>>
    %374 = vector.broadcast %373 : f32 to vector<24x128xf32>
    %375 = arith.mulf %374, %12 : vector<24x128xf32>
    %376 = arith.addf %372, %375 : vector<24x128xf32>
    %c58 = arith.constant 58 : index
    %377 = memref.load %arg2[%c58] : memref<144xf32, #tpu.memory_space<smem>>
    %378 = vector.broadcast %377 : f32 to vector<24x128xf32>
    %379 = arith.mulf %378, %14 : vector<24x128xf32>
    %380 = arith.addf %376, %379 : vector<24x128xf32>
    %c67 = arith.constant 67 : index
    %381 = memref.load %arg2[%c67] : memref<144xf32, #tpu.memory_space<smem>>
    %382 = vector.broadcast %381 : f32 to vector<24x128xf32>
    %383 = arith.mulf %382, %16 : vector<24x128xf32>
    %384 = arith.addf %380, %383 : vector<24x128xf32>
    %c76 = arith.constant 76 : index
    %385 = memref.load %arg2[%c76] : memref<144xf32, #tpu.memory_space<smem>>
    %386 = vector.broadcast %385 : f32 to vector<24x128xf32>
    %387 = arith.mulf %386, %10 : vector<24x128xf32>
    %388 = arith.addf %336, %387 : vector<24x128xf32>
    %c85 = arith.constant 85 : index
    %389 = memref.load %arg2[%c85] : memref<144xf32, #tpu.memory_space<smem>>
    %390 = vector.broadcast %389 : f32 to vector<24x128xf32>
    %391 = arith.mulf %390, %12 : vector<24x128xf32>
    %392 = arith.addf %388, %391 : vector<24x128xf32>
    %c94 = arith.constant 94 : index
    %393 = memref.load %arg2[%c94] : memref<144xf32, #tpu.memory_space<smem>>
    %394 = vector.broadcast %393 : f32 to vector<24x128xf32>
    %395 = arith.mulf %394, %14 : vector<24x128xf32>
    %396 = arith.addf %392, %395 : vector<24x128xf32>
    %c103 = arith.constant 103 : index
    %397 = memref.load %arg2[%c103] : memref<144xf32, #tpu.memory_space<smem>>
    %398 = vector.broadcast %397 : f32 to vector<24x128xf32>
    %399 = arith.mulf %398, %16 : vector<24x128xf32>
    %400 = arith.addf %396, %399 : vector<24x128xf32>
    %c112 = arith.constant 112 : index
    %401 = memref.load %arg2[%c112] : memref<144xf32, #tpu.memory_space<smem>>
    %402 = vector.broadcast %401 : f32 to vector<24x128xf32>
    %403 = arith.mulf %402, %10 : vector<24x128xf32>
    %404 = arith.addf %352, %403 : vector<24x128xf32>
    %c121 = arith.constant 121 : index
    %405 = memref.load %arg2[%c121] : memref<144xf32, #tpu.memory_space<smem>>
    %406 = vector.broadcast %405 : f32 to vector<24x128xf32>
    %407 = arith.mulf %406, %12 : vector<24x128xf32>
    %408 = arith.addf %404, %407 : vector<24x128xf32>
    %c130 = arith.constant 130 : index
    %409 = memref.load %arg2[%c130] : memref<144xf32, #tpu.memory_space<smem>>
    %410 = vector.broadcast %409 : f32 to vector<24x128xf32>
    %411 = arith.mulf %410, %14 : vector<24x128xf32>
    %412 = arith.addf %408, %411 : vector<24x128xf32>
    %c139 = arith.constant 139 : index
    %413 = memref.load %arg2[%c139] : memref<144xf32, #tpu.memory_space<smem>>
    %414 = vector.broadcast %413 : f32 to vector<24x128xf32>
    %415 = arith.mulf %414, %16 : vector<24x128xf32>
    %416 = arith.addf %412, %415 : vector<24x128xf32>
    %417 = vector.extract_strided_slice %10 {offsets = [0, 1], sizes = [24, 127], strides = [1, 1]} : vector<24x128xf32> to vector<24x127xf32>
    %418 = vector.extract_strided_slice %10 {offsets = [0, 0], sizes = [24, 1], strides = [1, 1]} : vector<24x128xf32> to vector<24x1xf32>
    %419 = tpu.concatenate %417, %418 in 1 : vector<24x127xf32>, vector<24x1xf32> -> vector<24x128xf32>
    %420 = vector.extract_strided_slice %12 {offsets = [0, 1], sizes = [24, 127], strides = [1, 1]} : vector<24x128xf32> to vector<24x127xf32>
    %421 = vector.extract_strided_slice %12 {offsets = [0, 0], sizes = [24, 1], strides = [1, 1]} : vector<24x128xf32> to vector<24x1xf32>
    %422 = tpu.concatenate %420, %421 in 1 : vector<24x127xf32>, vector<24x1xf32> -> vector<24x128xf32>
    %423 = vector.extract_strided_slice %14 {offsets = [0, 1], sizes = [24, 127], strides = [1, 1]} : vector<24x128xf32> to vector<24x127xf32>
    %424 = vector.extract_strided_slice %14 {offsets = [0, 0], sizes = [24, 1], strides = [1, 1]} : vector<24x128xf32> to vector<24x1xf32>
    %425 = tpu.concatenate %423, %424 in 1 : vector<24x127xf32>, vector<24x1xf32> -> vector<24x128xf32>
    %426 = vector.extract_strided_slice %16 {offsets = [0, 1], sizes = [24, 127], strides = [1, 1]} : vector<24x128xf32> to vector<24x127xf32>
    %427 = vector.extract_strided_slice %16 {offsets = [0, 0], sizes = [24, 1], strides = [1, 1]} : vector<24x128xf32> to vector<24x1xf32>
    %428 = tpu.concatenate %426, %427 in 1 : vector<24x127xf32>, vector<24x1xf32> -> vector<24x128xf32>
    %c5 = arith.constant 5 : index
    %429 = memref.load %arg2[%c5] : memref<144xf32, #tpu.memory_space<smem>>
    %430 = vector.broadcast %429 : f32 to vector<24x128xf32>
    %431 = arith.mulf %430, %419 : vector<24x128xf32>
    %432 = arith.addf %368, %431 : vector<24x128xf32>
    %c14 = arith.constant 14 : index
    %433 = memref.load %arg2[%c14] : memref<144xf32, #tpu.memory_space<smem>>
    %434 = vector.broadcast %433 : f32 to vector<24x128xf32>
    %435 = arith.mulf %434, %422 : vector<24x128xf32>
    %436 = arith.addf %432, %435 : vector<24x128xf32>
    %c23 = arith.constant 23 : index
    %437 = memref.load %arg2[%c23] : memref<144xf32, #tpu.memory_space<smem>>
    %438 = vector.broadcast %437 : f32 to vector<24x128xf32>
    %439 = arith.mulf %438, %425 : vector<24x128xf32>
    %440 = arith.addf %436, %439 : vector<24x128xf32>
    %c32 = arith.constant 32 : index
    %441 = memref.load %arg2[%c32] : memref<144xf32, #tpu.memory_space<smem>>
    %442 = vector.broadcast %441 : f32 to vector<24x128xf32>
    %443 = arith.mulf %442, %428 : vector<24x128xf32>
    %444 = arith.addf %440, %443 : vector<24x128xf32>
    %c41 = arith.constant 41 : index
    %445 = memref.load %arg2[%c41] : memref<144xf32, #tpu.memory_space<smem>>
    %446 = vector.broadcast %445 : f32 to vector<24x128xf32>
    %447 = arith.mulf %446, %419 : vector<24x128xf32>
    %448 = arith.addf %384, %447 : vector<24x128xf32>
    %c50 = arith.constant 50 : index
    %449 = memref.load %arg2[%c50] : memref<144xf32, #tpu.memory_space<smem>>
    %450 = vector.broadcast %449 : f32 to vector<24x128xf32>
    %451 = arith.mulf %450, %422 : vector<24x128xf32>
    %452 = arith.addf %448, %451 : vector<24x128xf32>
    %c59 = arith.constant 59 : index
    %453 = memref.load %arg2[%c59] : memref<144xf32, #tpu.memory_space<smem>>
    %454 = vector.broadcast %453 : f32 to vector<24x128xf32>
    %455 = arith.mulf %454, %425 : vector<24x128xf32>
    %456 = arith.addf %452, %455 : vector<24x128xf32>
    %c68 = arith.constant 68 : index
    %457 = memref.load %arg2[%c68] : memref<144xf32, #tpu.memory_space<smem>>
    %458 = vector.broadcast %457 : f32 to vector<24x128xf32>
    %459 = arith.mulf %458, %428 : vector<24x128xf32>
    %460 = arith.addf %456, %459 : vector<24x128xf32>
    %c77 = arith.constant 77 : index
    %461 = memref.load %arg2[%c77] : memref<144xf32, #tpu.memory_space<smem>>
    %462 = vector.broadcast %461 : f32 to vector<24x128xf32>
    %463 = arith.mulf %462, %419 : vector<24x128xf32>
    %464 = arith.addf %400, %463 : vector<24x128xf32>
    %c86 = arith.constant 86 : index
    %465 = memref.load %arg2[%c86] : memref<144xf32, #tpu.memory_space<smem>>
    %466 = vector.broadcast %465 : f32 to vector<24x128xf32>
    %467 = arith.mulf %466, %422 : vector<24x128xf32>
    %468 = arith.addf %464, %467 : vector<24x128xf32>
    %c95 = arith.constant 95 : index
    %469 = memref.load %arg2[%c95] : memref<144xf32, #tpu.memory_space<smem>>
    %470 = vector.broadcast %469 : f32 to vector<24x128xf32>
    %471 = arith.mulf %470, %425 : vector<24x128xf32>
    %472 = arith.addf %468, %471 : vector<24x128xf32>
    %c104 = arith.constant 104 : index
    %473 = memref.load %arg2[%c104] : memref<144xf32, #tpu.memory_space<smem>>
    %474 = vector.broadcast %473 : f32 to vector<24x128xf32>
    %475 = arith.mulf %474, %428 : vector<24x128xf32>
    %476 = arith.addf %472, %475 : vector<24x128xf32>
    %c113 = arith.constant 113 : index
    %477 = memref.load %arg2[%c113] : memref<144xf32, #tpu.memory_space<smem>>
    %478 = vector.broadcast %477 : f32 to vector<24x128xf32>
    %479 = arith.mulf %478, %419 : vector<24x128xf32>
    %480 = arith.addf %416, %479 : vector<24x128xf32>
    %c122 = arith.constant 122 : index
    %481 = memref.load %arg2[%c122] : memref<144xf32, #tpu.memory_space<smem>>
    %482 = vector.broadcast %481 : f32 to vector<24x128xf32>
    %483 = arith.mulf %482, %422 : vector<24x128xf32>
    %484 = arith.addf %480, %483 : vector<24x128xf32>
    %c131 = arith.constant 131 : index
    %485 = memref.load %arg2[%c131] : memref<144xf32, #tpu.memory_space<smem>>
    %486 = vector.broadcast %485 : f32 to vector<24x128xf32>
    %487 = arith.mulf %486, %425 : vector<24x128xf32>
    %488 = arith.addf %484, %487 : vector<24x128xf32>
    %c140 = arith.constant 140 : index
    %489 = memref.load %arg2[%c140] : memref<144xf32, #tpu.memory_space<smem>>
    %490 = vector.broadcast %489 : f32 to vector<24x128xf32>
    %491 = arith.mulf %490, %428 : vector<24x128xf32>
    %492 = arith.addf %488, %491 : vector<24x128xf32>
    %493 = vector.extract_strided_slice %10 {offsets = [1, 0], sizes = [23, 128], strides = [1, 1]} : vector<24x128xf32> to vector<23x128xf32>
    %494 = vector.extract_strided_slice %10 {offsets = [0, 0], sizes = [1, 128], strides = [1, 1]} : vector<24x128xf32> to vector<1x128xf32>
    %495 = tpu.concatenate %493, %494 in 0 : vector<23x128xf32>, vector<1x128xf32> -> vector<24x128xf32>
    %496 = vector.extract_strided_slice %495 {offsets = [0, 127], sizes = [24, 1], strides = [1, 1]} : vector<24x128xf32> to vector<24x1xf32>
    %497 = vector.extract_strided_slice %495 {offsets = [0, 0], sizes = [24, 127], strides = [1, 1]} : vector<24x128xf32> to vector<24x127xf32>
    %498 = tpu.concatenate %496, %497 in 1 : vector<24x1xf32>, vector<24x127xf32> -> vector<24x128xf32>
    %499 = vector.extract_strided_slice %12 {offsets = [1, 0], sizes = [23, 128], strides = [1, 1]} : vector<24x128xf32> to vector<23x128xf32>
    %500 = vector.extract_strided_slice %12 {offsets = [0, 0], sizes = [1, 128], strides = [1, 1]} : vector<24x128xf32> to vector<1x128xf32>
    %501 = tpu.concatenate %499, %500 in 0 : vector<23x128xf32>, vector<1x128xf32> -> vector<24x128xf32>
    %502 = vector.extract_strided_slice %501 {offsets = [0, 127], sizes = [24, 1], strides = [1, 1]} : vector<24x128xf32> to vector<24x1xf32>
    %503 = vector.extract_strided_slice %501 {offsets = [0, 0], sizes = [24, 127], strides = [1, 1]} : vector<24x128xf32> to vector<24x127xf32>
    %504 = tpu.concatenate %502, %503 in 1 : vector<24x1xf32>, vector<24x127xf32> -> vector<24x128xf32>
    %505 = vector.extract_strided_slice %14 {offsets = [1, 0], sizes = [23, 128], strides = [1, 1]} : vector<24x128xf32> to vector<23x128xf32>
    %506 = vector.extract_strided_slice %14 {offsets = [0, 0], sizes = [1, 128], strides = [1, 1]} : vector<24x128xf32> to vector<1x128xf32>
    %507 = tpu.concatenate %505, %506 in 0 : vector<23x128xf32>, vector<1x128xf32> -> vector<24x128xf32>
    %508 = vector.extract_strided_slice %507 {offsets = [0, 127], sizes = [24, 1], strides = [1, 1]} : vector<24x128xf32> to vector<24x1xf32>
    %509 = vector.extract_strided_slice %507 {offsets = [0, 0], sizes = [24, 127], strides = [1, 1]} : vector<24x128xf32> to vector<24x127xf32>
    %510 = tpu.concatenate %508, %509 in 1 : vector<24x1xf32>, vector<24x127xf32> -> vector<24x128xf32>
    %511 = vector.extract_strided_slice %16 {offsets = [1, 0], sizes = [23, 128], strides = [1, 1]} : vector<24x128xf32> to vector<23x128xf32>
    %512 = vector.extract_strided_slice %16 {offsets = [0, 0], sizes = [1, 128], strides = [1, 1]} : vector<24x128xf32> to vector<1x128xf32>
    %513 = tpu.concatenate %511, %512 in 0 : vector<23x128xf32>, vector<1x128xf32> -> vector<24x128xf32>
    %514 = vector.extract_strided_slice %513 {offsets = [0, 127], sizes = [24, 1], strides = [1, 1]} : vector<24x128xf32> to vector<24x1xf32>
    %515 = vector.extract_strided_slice %513 {offsets = [0, 0], sizes = [24, 127], strides = [1, 1]} : vector<24x128xf32> to vector<24x127xf32>
    %516 = tpu.concatenate %514, %515 in 1 : vector<24x1xf32>, vector<24x127xf32> -> vector<24x128xf32>
    %c6 = arith.constant 6 : index
    %517 = memref.load %arg2[%c6] : memref<144xf32, #tpu.memory_space<smem>>
    %518 = vector.broadcast %517 : f32 to vector<24x128xf32>
    %519 = arith.mulf %518, %498 : vector<24x128xf32>
    %520 = arith.addf %444, %519 : vector<24x128xf32>
    %c15 = arith.constant 15 : index
    %521 = memref.load %arg2[%c15] : memref<144xf32, #tpu.memory_space<smem>>
    %522 = vector.broadcast %521 : f32 to vector<24x128xf32>
    %523 = arith.mulf %522, %504 : vector<24x128xf32>
    %524 = arith.addf %520, %523 : vector<24x128xf32>
    %c24 = arith.constant 24 : index
    %525 = memref.load %arg2[%c24] : memref<144xf32, #tpu.memory_space<smem>>
    %526 = vector.broadcast %525 : f32 to vector<24x128xf32>
    %527 = arith.mulf %526, %510 : vector<24x128xf32>
    %528 = arith.addf %524, %527 : vector<24x128xf32>
    %c33 = arith.constant 33 : index
    %529 = memref.load %arg2[%c33] : memref<144xf32, #tpu.memory_space<smem>>
    %530 = vector.broadcast %529 : f32 to vector<24x128xf32>
    %531 = arith.mulf %530, %516 : vector<24x128xf32>
    %532 = arith.addf %528, %531 : vector<24x128xf32>
    %c42 = arith.constant 42 : index
    %533 = memref.load %arg2[%c42] : memref<144xf32, #tpu.memory_space<smem>>
    %534 = vector.broadcast %533 : f32 to vector<24x128xf32>
    %535 = arith.mulf %534, %498 : vector<24x128xf32>
    %536 = arith.addf %460, %535 : vector<24x128xf32>
    %c51 = arith.constant 51 : index
    %537 = memref.load %arg2[%c51] : memref<144xf32, #tpu.memory_space<smem>>
    %538 = vector.broadcast %537 : f32 to vector<24x128xf32>
    %539 = arith.mulf %538, %504 : vector<24x128xf32>
    %540 = arith.addf %536, %539 : vector<24x128xf32>
    %c60 = arith.constant 60 : index
    %541 = memref.load %arg2[%c60] : memref<144xf32, #tpu.memory_space<smem>>
    %542 = vector.broadcast %541 : f32 to vector<24x128xf32>
    %543 = arith.mulf %542, %510 : vector<24x128xf32>
    %544 = arith.addf %540, %543 : vector<24x128xf32>
    %c69 = arith.constant 69 : index
    %545 = memref.load %arg2[%c69] : memref<144xf32, #tpu.memory_space<smem>>
    %546 = vector.broadcast %545 : f32 to vector<24x128xf32>
    %547 = arith.mulf %546, %516 : vector<24x128xf32>
    %548 = arith.addf %544, %547 : vector<24x128xf32>
    %c78 = arith.constant 78 : index
    %549 = memref.load %arg2[%c78] : memref<144xf32, #tpu.memory_space<smem>>
    %550 = vector.broadcast %549 : f32 to vector<24x128xf32>
    %551 = arith.mulf %550, %498 : vector<24x128xf32>
    %552 = arith.addf %476, %551 : vector<24x128xf32>
    %c87 = arith.constant 87 : index
    %553 = memref.load %arg2[%c87] : memref<144xf32, #tpu.memory_space<smem>>
    %554 = vector.broadcast %553 : f32 to vector<24x128xf32>
    %555 = arith.mulf %554, %504 : vector<24x128xf32>
    %556 = arith.addf %552, %555 : vector<24x128xf32>
    %c96 = arith.constant 96 : index
    %557 = memref.load %arg2[%c96] : memref<144xf32, #tpu.memory_space<smem>>
    %558 = vector.broadcast %557 : f32 to vector<24x128xf32>
    %559 = arith.mulf %558, %510 : vector<24x128xf32>
    %560 = arith.addf %556, %559 : vector<24x128xf32>
    %c105 = arith.constant 105 : index
    %561 = memref.load %arg2[%c105] : memref<144xf32, #tpu.memory_space<smem>>
    %562 = vector.broadcast %561 : f32 to vector<24x128xf32>
    %563 = arith.mulf %562, %516 : vector<24x128xf32>
    %564 = arith.addf %560, %563 : vector<24x128xf32>
    %c114 = arith.constant 114 : index
    %565 = memref.load %arg2[%c114] : memref<144xf32, #tpu.memory_space<smem>>
    %566 = vector.broadcast %565 : f32 to vector<24x128xf32>
    %567 = arith.mulf %566, %498 : vector<24x128xf32>
    %568 = arith.addf %492, %567 : vector<24x128xf32>
    %c123 = arith.constant 123 : index
    %569 = memref.load %arg2[%c123] : memref<144xf32, #tpu.memory_space<smem>>
    %570 = vector.broadcast %569 : f32 to vector<24x128xf32>
    %571 = arith.mulf %570, %504 : vector<24x128xf32>
    %572 = arith.addf %568, %571 : vector<24x128xf32>
    %c132 = arith.constant 132 : index
    %573 = memref.load %arg2[%c132] : memref<144xf32, #tpu.memory_space<smem>>
    %574 = vector.broadcast %573 : f32 to vector<24x128xf32>
    %575 = arith.mulf %574, %510 : vector<24x128xf32>
    %576 = arith.addf %572, %575 : vector<24x128xf32>
    %c141 = arith.constant 141 : index
    %577 = memref.load %arg2[%c141] : memref<144xf32, #tpu.memory_space<smem>>
    %578 = vector.broadcast %577 : f32 to vector<24x128xf32>
    %579 = arith.mulf %578, %516 : vector<24x128xf32>
    %580 = arith.addf %576, %579 : vector<24x128xf32>
    %581 = vector.extract_strided_slice %10 {offsets = [1, 0], sizes = [23, 128], strides = [1, 1]} : vector<24x128xf32> to vector<23x128xf32>
    %582 = vector.extract_strided_slice %10 {offsets = [0, 0], sizes = [1, 128], strides = [1, 1]} : vector<24x128xf32> to vector<1x128xf32>
    %583 = tpu.concatenate %581, %582 in 0 : vector<23x128xf32>, vector<1x128xf32> -> vector<24x128xf32>
    %584 = vector.extract_strided_slice %12 {offsets = [1, 0], sizes = [23, 128], strides = [1, 1]} : vector<24x128xf32> to vector<23x128xf32>
    %585 = vector.extract_strided_slice %12 {offsets = [0, 0], sizes = [1, 128], strides = [1, 1]} : vector<24x128xf32> to vector<1x128xf32>
    %586 = tpu.concatenate %584, %585 in 0 : vector<23x128xf32>, vector<1x128xf32> -> vector<24x128xf32>
    %587 = vector.extract_strided_slice %14 {offsets = [1, 0], sizes = [23, 128], strides = [1, 1]} : vector<24x128xf32> to vector<23x128xf32>
    %588 = vector.extract_strided_slice %14 {offsets = [0, 0], sizes = [1, 128], strides = [1, 1]} : vector<24x128xf32> to vector<1x128xf32>
    %589 = tpu.concatenate %587, %588 in 0 : vector<23x128xf32>, vector<1x128xf32> -> vector<24x128xf32>
    %590 = vector.extract_strided_slice %16 {offsets = [1, 0], sizes = [23, 128], strides = [1, 1]} : vector<24x128xf32> to vector<23x128xf32>
    %591 = vector.extract_strided_slice %16 {offsets = [0, 0], sizes = [1, 128], strides = [1, 1]} : vector<24x128xf32> to vector<1x128xf32>
    %592 = tpu.concatenate %590, %591 in 0 : vector<23x128xf32>, vector<1x128xf32> -> vector<24x128xf32>
    %c7 = arith.constant 7 : index
    %593 = memref.load %arg2[%c7] : memref<144xf32, #tpu.memory_space<smem>>
    %594 = vector.broadcast %593 : f32 to vector<24x128xf32>
    %595 = arith.mulf %594, %583 : vector<24x128xf32>
    %596 = arith.addf %532, %595 : vector<24x128xf32>
    %c16 = arith.constant 16 : index
    %597 = memref.load %arg2[%c16] : memref<144xf32, #tpu.memory_space<smem>>
    %598 = vector.broadcast %597 : f32 to vector<24x128xf32>
    %599 = arith.mulf %598, %586 : vector<24x128xf32>
    %600 = arith.addf %596, %599 : vector<24x128xf32>
    %c25 = arith.constant 25 : index
    %601 = memref.load %arg2[%c25] : memref<144xf32, #tpu.memory_space<smem>>
    %602 = vector.broadcast %601 : f32 to vector<24x128xf32>
    %603 = arith.mulf %602, %589 : vector<24x128xf32>
    %604 = arith.addf %600, %603 : vector<24x128xf32>
    %c34 = arith.constant 34 : index
    %605 = memref.load %arg2[%c34] : memref<144xf32, #tpu.memory_space<smem>>
    %606 = vector.broadcast %605 : f32 to vector<24x128xf32>
    %607 = arith.mulf %606, %592 : vector<24x128xf32>
    %608 = arith.addf %604, %607 : vector<24x128xf32>
    %c43 = arith.constant 43 : index
    %609 = memref.load %arg2[%c43] : memref<144xf32, #tpu.memory_space<smem>>
    %610 = vector.broadcast %609 : f32 to vector<24x128xf32>
    %611 = arith.mulf %610, %583 : vector<24x128xf32>
    %612 = arith.addf %548, %611 : vector<24x128xf32>
    %c52 = arith.constant 52 : index
    %613 = memref.load %arg2[%c52] : memref<144xf32, #tpu.memory_space<smem>>
    %614 = vector.broadcast %613 : f32 to vector<24x128xf32>
    %615 = arith.mulf %614, %586 : vector<24x128xf32>
    %616 = arith.addf %612, %615 : vector<24x128xf32>
    %c61 = arith.constant 61 : index
    %617 = memref.load %arg2[%c61] : memref<144xf32, #tpu.memory_space<smem>>
    %618 = vector.broadcast %617 : f32 to vector<24x128xf32>
    %619 = arith.mulf %618, %589 : vector<24x128xf32>
    %620 = arith.addf %616, %619 : vector<24x128xf32>
    %c70 = arith.constant 70 : index
    %621 = memref.load %arg2[%c70] : memref<144xf32, #tpu.memory_space<smem>>
    %622 = vector.broadcast %621 : f32 to vector<24x128xf32>
    %623 = arith.mulf %622, %592 : vector<24x128xf32>
    %624 = arith.addf %620, %623 : vector<24x128xf32>
    %c79 = arith.constant 79 : index
    %625 = memref.load %arg2[%c79] : memref<144xf32, #tpu.memory_space<smem>>
    %626 = vector.broadcast %625 : f32 to vector<24x128xf32>
    %627 = arith.mulf %626, %583 : vector<24x128xf32>
    %628 = arith.addf %564, %627 : vector<24x128xf32>
    %c88 = arith.constant 88 : index
    %629 = memref.load %arg2[%c88] : memref<144xf32, #tpu.memory_space<smem>>
    %630 = vector.broadcast %629 : f32 to vector<24x128xf32>
    %631 = arith.mulf %630, %586 : vector<24x128xf32>
    %632 = arith.addf %628, %631 : vector<24x128xf32>
    %c97 = arith.constant 97 : index
    %633 = memref.load %arg2[%c97] : memref<144xf32, #tpu.memory_space<smem>>
    %634 = vector.broadcast %633 : f32 to vector<24x128xf32>
    %635 = arith.mulf %634, %589 : vector<24x128xf32>
    %636 = arith.addf %632, %635 : vector<24x128xf32>
    %c106 = arith.constant 106 : index
    %637 = memref.load %arg2[%c106] : memref<144xf32, #tpu.memory_space<smem>>
    %638 = vector.broadcast %637 : f32 to vector<24x128xf32>
    %639 = arith.mulf %638, %592 : vector<24x128xf32>
    %640 = arith.addf %636, %639 : vector<24x128xf32>
    %c115 = arith.constant 115 : index
    %641 = memref.load %arg2[%c115] : memref<144xf32, #tpu.memory_space<smem>>
    %642 = vector.broadcast %641 : f32 to vector<24x128xf32>
    %643 = arith.mulf %642, %583 : vector<24x128xf32>
    %644 = arith.addf %580, %643 : vector<24x128xf32>
    %c124 = arith.constant 124 : index
    %645 = memref.load %arg2[%c124] : memref<144xf32, #tpu.memory_space<smem>>
    %646 = vector.broadcast %645 : f32 to vector<24x128xf32>
    %647 = arith.mulf %646, %586 : vector<24x128xf32>
    %648 = arith.addf %644, %647 : vector<24x128xf32>
    %c133 = arith.constant 133 : index
    %649 = memref.load %arg2[%c133] : memref<144xf32, #tpu.memory_space<smem>>
    %650 = vector.broadcast %649 : f32 to vector<24x128xf32>
    %651 = arith.mulf %650, %589 : vector<24x128xf32>
    %652 = arith.addf %648, %651 : vector<24x128xf32>
    %c142 = arith.constant 142 : index
    %653 = memref.load %arg2[%c142] : memref<144xf32, #tpu.memory_space<smem>>
    %654 = vector.broadcast %653 : f32 to vector<24x128xf32>
    %655 = arith.mulf %654, %592 : vector<24x128xf32>
    %656 = arith.addf %652, %655 : vector<24x128xf32>
    %657 = vector.extract_strided_slice %10 {offsets = [1, 0], sizes = [23, 128], strides = [1, 1]} : vector<24x128xf32> to vector<23x128xf32>
    %658 = vector.extract_strided_slice %10 {offsets = [0, 0], sizes = [1, 128], strides = [1, 1]} : vector<24x128xf32> to vector<1x128xf32>
    %659 = tpu.concatenate %657, %658 in 0 : vector<23x128xf32>, vector<1x128xf32> -> vector<24x128xf32>
    %660 = vector.extract_strided_slice %659 {offsets = [0, 1], sizes = [24, 127], strides = [1, 1]} : vector<24x128xf32> to vector<24x127xf32>
    %661 = vector.extract_strided_slice %659 {offsets = [0, 0], sizes = [24, 1], strides = [1, 1]} : vector<24x128xf32> to vector<24x1xf32>
    %662 = tpu.concatenate %660, %661 in 1 : vector<24x127xf32>, vector<24x1xf32> -> vector<24x128xf32>
    %663 = vector.extract_strided_slice %12 {offsets = [1, 0], sizes = [23, 128], strides = [1, 1]} : vector<24x128xf32> to vector<23x128xf32>
    %664 = vector.extract_strided_slice %12 {offsets = [0, 0], sizes = [1, 128], strides = [1, 1]} : vector<24x128xf32> to vector<1x128xf32>
    %665 = tpu.concatenate %663, %664 in 0 : vector<23x128xf32>, vector<1x128xf32> -> vector<24x128xf32>
    %666 = vector.extract_strided_slice %665 {offsets = [0, 1], sizes = [24, 127], strides = [1, 1]} : vector<24x128xf32> to vector<24x127xf32>
    %667 = vector.extract_strided_slice %665 {offsets = [0, 0], sizes = [24, 1], strides = [1, 1]} : vector<24x128xf32> to vector<24x1xf32>
    %668 = tpu.concatenate %666, %667 in 1 : vector<24x127xf32>, vector<24x1xf32> -> vector<24x128xf32>
    %669 = vector.extract_strided_slice %14 {offsets = [1, 0], sizes = [23, 128], strides = [1, 1]} : vector<24x128xf32> to vector<23x128xf32>
    %670 = vector.extract_strided_slice %14 {offsets = [0, 0], sizes = [1, 128], strides = [1, 1]} : vector<24x128xf32> to vector<1x128xf32>
    %671 = tpu.concatenate %669, %670 in 0 : vector<23x128xf32>, vector<1x128xf32> -> vector<24x128xf32>
    %672 = vector.extract_strided_slice %671 {offsets = [0, 1], sizes = [24, 127], strides = [1, 1]} : vector<24x128xf32> to vector<24x127xf32>
    %673 = vector.extract_strided_slice %671 {offsets = [0, 0], sizes = [24, 1], strides = [1, 1]} : vector<24x128xf32> to vector<24x1xf32>
    %674 = tpu.concatenate %672, %673 in 1 : vector<24x127xf32>, vector<24x1xf32> -> vector<24x128xf32>
    %675 = vector.extract_strided_slice %16 {offsets = [1, 0], sizes = [23, 128], strides = [1, 1]} : vector<24x128xf32> to vector<23x128xf32>
    %676 = vector.extract_strided_slice %16 {offsets = [0, 0], sizes = [1, 128], strides = [1, 1]} : vector<24x128xf32> to vector<1x128xf32>
    %677 = tpu.concatenate %675, %676 in 0 : vector<23x128xf32>, vector<1x128xf32> -> vector<24x128xf32>
    %678 = vector.extract_strided_slice %677 {offsets = [0, 1], sizes = [24, 127], strides = [1, 1]} : vector<24x128xf32> to vector<24x127xf32>
    %679 = vector.extract_strided_slice %677 {offsets = [0, 0], sizes = [24, 1], strides = [1, 1]} : vector<24x128xf32> to vector<24x1xf32>
    %680 = tpu.concatenate %678, %679 in 1 : vector<24x127xf32>, vector<24x1xf32> -> vector<24x128xf32>
    %c8 = arith.constant 8 : index
    %681 = memref.load %arg2[%c8] : memref<144xf32, #tpu.memory_space<smem>>
    %682 = vector.broadcast %681 : f32 to vector<24x128xf32>
    %683 = arith.mulf %682, %662 : vector<24x128xf32>
    %684 = arith.addf %608, %683 : vector<24x128xf32>
    %c17 = arith.constant 17 : index
    %685 = memref.load %arg2[%c17] : memref<144xf32, #tpu.memory_space<smem>>
    %686 = vector.broadcast %685 : f32 to vector<24x128xf32>
    %687 = arith.mulf %686, %668 : vector<24x128xf32>
    %688 = arith.addf %684, %687 : vector<24x128xf32>
    %c26 = arith.constant 26 : index
    %689 = memref.load %arg2[%c26] : memref<144xf32, #tpu.memory_space<smem>>
    %690 = vector.broadcast %689 : f32 to vector<24x128xf32>
    %691 = arith.mulf %690, %674 : vector<24x128xf32>
    %692 = arith.addf %688, %691 : vector<24x128xf32>
    %c35 = arith.constant 35 : index
    %693 = memref.load %arg2[%c35] : memref<144xf32, #tpu.memory_space<smem>>
    %694 = vector.broadcast %693 : f32 to vector<24x128xf32>
    %695 = arith.mulf %694, %680 : vector<24x128xf32>
    %696 = arith.addf %692, %695 : vector<24x128xf32>
    %c44 = arith.constant 44 : index
    %697 = memref.load %arg2[%c44] : memref<144xf32, #tpu.memory_space<smem>>
    %698 = vector.broadcast %697 : f32 to vector<24x128xf32>
    %699 = arith.mulf %698, %662 : vector<24x128xf32>
    %700 = arith.addf %624, %699 : vector<24x128xf32>
    %c53 = arith.constant 53 : index
    %701 = memref.load %arg2[%c53] : memref<144xf32, #tpu.memory_space<smem>>
    %702 = vector.broadcast %701 : f32 to vector<24x128xf32>
    %703 = arith.mulf %702, %668 : vector<24x128xf32>
    %704 = arith.addf %700, %703 : vector<24x128xf32>
    %c62 = arith.constant 62 : index
    %705 = memref.load %arg2[%c62] : memref<144xf32, #tpu.memory_space<smem>>
    %706 = vector.broadcast %705 : f32 to vector<24x128xf32>
    %707 = arith.mulf %706, %674 : vector<24x128xf32>
    %708 = arith.addf %704, %707 : vector<24x128xf32>
    %c71 = arith.constant 71 : index
    %709 = memref.load %arg2[%c71] : memref<144xf32, #tpu.memory_space<smem>>
    %710 = vector.broadcast %709 : f32 to vector<24x128xf32>
    %711 = arith.mulf %710, %680 : vector<24x128xf32>
    %712 = arith.addf %708, %711 : vector<24x128xf32>
    %c80 = arith.constant 80 : index
    %713 = memref.load %arg2[%c80] : memref<144xf32, #tpu.memory_space<smem>>
    %714 = vector.broadcast %713 : f32 to vector<24x128xf32>
    %715 = arith.mulf %714, %662 : vector<24x128xf32>
    %716 = arith.addf %640, %715 : vector<24x128xf32>
    %c89 = arith.constant 89 : index
    %717 = memref.load %arg2[%c89] : memref<144xf32, #tpu.memory_space<smem>>
    %718 = vector.broadcast %717 : f32 to vector<24x128xf32>
    %719 = arith.mulf %718, %668 : vector<24x128xf32>
    %720 = arith.addf %716, %719 : vector<24x128xf32>
    %c98 = arith.constant 98 : index
    %721 = memref.load %arg2[%c98] : memref<144xf32, #tpu.memory_space<smem>>
    %722 = vector.broadcast %721 : f32 to vector<24x128xf32>
    %723 = arith.mulf %722, %674 : vector<24x128xf32>
    %724 = arith.addf %720, %723 : vector<24x128xf32>
    %c107 = arith.constant 107 : index
    %725 = memref.load %arg2[%c107] : memref<144xf32, #tpu.memory_space<smem>>
    %726 = vector.broadcast %725 : f32 to vector<24x128xf32>
    %727 = arith.mulf %726, %680 : vector<24x128xf32>
    %728 = arith.addf %724, %727 : vector<24x128xf32>
    %c116 = arith.constant 116 : index
    %729 = memref.load %arg2[%c116] : memref<144xf32, #tpu.memory_space<smem>>
    %730 = vector.broadcast %729 : f32 to vector<24x128xf32>
    %731 = arith.mulf %730, %662 : vector<24x128xf32>
    %732 = arith.addf %656, %731 : vector<24x128xf32>
    %c125 = arith.constant 125 : index
    %733 = memref.load %arg2[%c125] : memref<144xf32, #tpu.memory_space<smem>>
    %734 = vector.broadcast %733 : f32 to vector<24x128xf32>
    %735 = arith.mulf %734, %668 : vector<24x128xf32>
    %736 = arith.addf %732, %735 : vector<24x128xf32>
    %c134 = arith.constant 134 : index
    %737 = memref.load %arg2[%c134] : memref<144xf32, #tpu.memory_space<smem>>
    %738 = vector.broadcast %737 : f32 to vector<24x128xf32>
    %739 = arith.mulf %738, %674 : vector<24x128xf32>
    %740 = arith.addf %736, %739 : vector<24x128xf32>
    %c143 = arith.constant 143 : index
    %741 = memref.load %arg2[%c143] : memref<144xf32, #tpu.memory_space<smem>>
    %742 = vector.broadcast %741 : f32 to vector<24x128xf32>
    %743 = arith.mulf %742, %680 : vector<24x128xf32>
    %744 = arith.addf %740, %743 : vector<24x128xf32>
    %cst = arith.constant 0.000000e+00 : f32
    %745 = vector.broadcast %cst : f32 to vector<24x128xf32>
    %746 = arith.maximumf %696, %745 : vector<24x128xf32>
    %747 = arith.mulf %746, %8 : vector<24x128xf32>
    %cst_21 = arith.constant 0.000000e+00 : f32
    %748 = vector.broadcast %cst_21 : f32 to vector<24x128xf32>
    %749 = arith.maximumf %712, %748 : vector<24x128xf32>
    %750 = arith.mulf %749, %8 : vector<24x128xf32>
    %cst_22 = arith.constant 0.000000e+00 : f32
    %751 = vector.broadcast %cst_22 : f32 to vector<24x128xf32>
    %752 = arith.maximumf %728, %751 : vector<24x128xf32>
    %753 = arith.mulf %752, %8 : vector<24x128xf32>
    %cst_23 = arith.constant 0.000000e+00 : f32
    %754 = vector.broadcast %cst_23 : f32 to vector<24x128xf32>
    %755 = arith.maximumf %744, %754 : vector<24x128xf32>
    %756 = arith.mulf %755, %8 : vector<24x128xf32>
    %c0_24 = arith.constant 0 : index
    %757 = memref.load %arg5[%c0_24] : memref<4xf32, #tpu.memory_space<smem>>
    %758 = vector.broadcast %757 : f32 to vector<24x128xf32>
    %c1_25 = arith.constant 1 : index
    %759 = memref.load %arg5[%c1_25] : memref<4xf32, #tpu.memory_space<smem>>
    %760 = vector.broadcast %759 : f32 to vector<24x128xf32>
    %c2_26 = arith.constant 2 : index
    %761 = memref.load %arg5[%c2_26] : memref<4xf32, #tpu.memory_space<smem>>
    %762 = vector.broadcast %761 : f32 to vector<24x128xf32>
    %c3_27 = arith.constant 3 : index
    %763 = memref.load %arg5[%c3_27] : memref<4xf32, #tpu.memory_space<smem>>
    %764 = vector.broadcast %763 : f32 to vector<24x128xf32>
    %765 = vector.extract_strided_slice %747 {offsets = [23, 0], sizes = [1, 128], strides = [1, 1]} : vector<24x128xf32> to vector<1x128xf32>
    %766 = vector.extract_strided_slice %747 {offsets = [0, 0], sizes = [23, 128], strides = [1, 1]} : vector<24x128xf32> to vector<23x128xf32>
    %767 = tpu.concatenate %765, %766 in 0 : vector<1x128xf32>, vector<23x128xf32> -> vector<24x128xf32>
    %768 = vector.extract_strided_slice %767 {offsets = [0, 127], sizes = [24, 1], strides = [1, 1]} : vector<24x128xf32> to vector<24x1xf32>
    %769 = vector.extract_strided_slice %767 {offsets = [0, 0], sizes = [24, 127], strides = [1, 1]} : vector<24x128xf32> to vector<24x127xf32>
    %770 = tpu.concatenate %768, %769 in 1 : vector<24x1xf32>, vector<24x127xf32> -> vector<24x128xf32>
    %771 = vector.extract_strided_slice %750 {offsets = [23, 0], sizes = [1, 128], strides = [1, 1]} : vector<24x128xf32> to vector<1x128xf32>
    %772 = vector.extract_strided_slice %750 {offsets = [0, 0], sizes = [23, 128], strides = [1, 1]} : vector<24x128xf32> to vector<23x128xf32>
    %773 = tpu.concatenate %771, %772 in 0 : vector<1x128xf32>, vector<23x128xf32> -> vector<24x128xf32>
    %774 = vector.extract_strided_slice %773 {offsets = [0, 127], sizes = [24, 1], strides = [1, 1]} : vector<24x128xf32> to vector<24x1xf32>
    %775 = vector.extract_strided_slice %773 {offsets = [0, 0], sizes = [24, 127], strides = [1, 1]} : vector<24x128xf32> to vector<24x127xf32>
    %776 = tpu.concatenate %774, %775 in 1 : vector<24x1xf32>, vector<24x127xf32> -> vector<24x128xf32>
    %777 = vector.extract_strided_slice %753 {offsets = [23, 0], sizes = [1, 128], strides = [1, 1]} : vector<24x128xf32> to vector<1x128xf32>
    %778 = vector.extract_strided_slice %753 {offsets = [0, 0], sizes = [23, 128], strides = [1, 1]} : vector<24x128xf32> to vector<23x128xf32>
    %779 = tpu.concatenate %777, %778 in 0 : vector<1x128xf32>, vector<23x128xf32> -> vector<24x128xf32>
    %780 = vector.extract_strided_slice %779 {offsets = [0, 127], sizes = [24, 1], strides = [1, 1]} : vector<24x128xf32> to vector<24x1xf32>
    %781 = vector.extract_strided_slice %779 {offsets = [0, 0], sizes = [24, 127], strides = [1, 1]} : vector<24x128xf32> to vector<24x127xf32>
    %782 = tpu.concatenate %780, %781 in 1 : vector<24x1xf32>, vector<24x127xf32> -> vector<24x128xf32>
    %783 = vector.extract_strided_slice %756 {offsets = [23, 0], sizes = [1, 128], strides = [1, 1]} : vector<24x128xf32> to vector<1x128xf32>
    %784 = vector.extract_strided_slice %756 {offsets = [0, 0], sizes = [23, 128], strides = [1, 1]} : vector<24x128xf32> to vector<23x128xf32>
    %785 = tpu.concatenate %783, %784 in 0 : vector<1x128xf32>, vector<23x128xf32> -> vector<24x128xf32>
    %786 = vector.extract_strided_slice %785 {offsets = [0, 127], sizes = [24, 1], strides = [1, 1]} : vector<24x128xf32> to vector<24x1xf32>
    %787 = vector.extract_strided_slice %785 {offsets = [0, 0], sizes = [24, 127], strides = [1, 1]} : vector<24x128xf32> to vector<24x127xf32>
    %788 = tpu.concatenate %786, %787 in 1 : vector<24x1xf32>, vector<24x127xf32> -> vector<24x128xf32>
    %c0_28 = arith.constant 0 : index
    %789 = memref.load %arg4[%c0_28] : memref<144xf32, #tpu.memory_space<smem>>
    %790 = vector.broadcast %789 : f32 to vector<24x128xf32>
    %791 = arith.mulf %790, %770 : vector<24x128xf32>
    %792 = arith.addf %758, %791 : vector<24x128xf32>
    %c9_29 = arith.constant 9 : index
    %793 = memref.load %arg4[%c9_29] : memref<144xf32, #tpu.memory_space<smem>>
    %794 = vector.broadcast %793 : f32 to vector<24x128xf32>
    %795 = arith.mulf %794, %776 : vector<24x128xf32>
    %796 = arith.addf %792, %795 : vector<24x128xf32>
    %c18_30 = arith.constant 18 : index
    %797 = memref.load %arg4[%c18_30] : memref<144xf32, #tpu.memory_space<smem>>
    %798 = vector.broadcast %797 : f32 to vector<24x128xf32>
    %799 = arith.mulf %798, %782 : vector<24x128xf32>
    %800 = arith.addf %796, %799 : vector<24x128xf32>
    %c27_31 = arith.constant 27 : index
    %801 = memref.load %arg4[%c27_31] : memref<144xf32, #tpu.memory_space<smem>>
    %802 = vector.broadcast %801 : f32 to vector<24x128xf32>
    %803 = arith.mulf %802, %788 : vector<24x128xf32>
    %804 = arith.addf %800, %803 : vector<24x128xf32>
    %c36_32 = arith.constant 36 : index
    %805 = memref.load %arg4[%c36_32] : memref<144xf32, #tpu.memory_space<smem>>
    %806 = vector.broadcast %805 : f32 to vector<24x128xf32>
    %807 = arith.mulf %806, %770 : vector<24x128xf32>
    %808 = arith.addf %760, %807 : vector<24x128xf32>
    %c45_33 = arith.constant 45 : index
    %809 = memref.load %arg4[%c45_33] : memref<144xf32, #tpu.memory_space<smem>>
    %810 = vector.broadcast %809 : f32 to vector<24x128xf32>
    %811 = arith.mulf %810, %776 : vector<24x128xf32>
    %812 = arith.addf %808, %811 : vector<24x128xf32>
    %c54_34 = arith.constant 54 : index
    %813 = memref.load %arg4[%c54_34] : memref<144xf32, #tpu.memory_space<smem>>
    %814 = vector.broadcast %813 : f32 to vector<24x128xf32>
    %815 = arith.mulf %814, %782 : vector<24x128xf32>
    %816 = arith.addf %812, %815 : vector<24x128xf32>
    %c63_35 = arith.constant 63 : index
    %817 = memref.load %arg4[%c63_35] : memref<144xf32, #tpu.memory_space<smem>>
    %818 = vector.broadcast %817 : f32 to vector<24x128xf32>
    %819 = arith.mulf %818, %788 : vector<24x128xf32>
    %820 = arith.addf %816, %819 : vector<24x128xf32>
    %c72_36 = arith.constant 72 : index
    %821 = memref.load %arg4[%c72_36] : memref<144xf32, #tpu.memory_space<smem>>
    %822 = vector.broadcast %821 : f32 to vector<24x128xf32>
    %823 = arith.mulf %822, %770 : vector<24x128xf32>
    %824 = arith.addf %762, %823 : vector<24x128xf32>
    %c81_37 = arith.constant 81 : index
    %825 = memref.load %arg4[%c81_37] : memref<144xf32, #tpu.memory_space<smem>>
    %826 = vector.broadcast %825 : f32 to vector<24x128xf32>
    %827 = arith.mulf %826, %776 : vector<24x128xf32>
    %828 = arith.addf %824, %827 : vector<24x128xf32>
    %c90_38 = arith.constant 90 : index
    %829 = memref.load %arg4[%c90_38] : memref<144xf32, #tpu.memory_space<smem>>
    %830 = vector.broadcast %829 : f32 to vector<24x128xf32>
    %831 = arith.mulf %830, %782 : vector<24x128xf32>
    %832 = arith.addf %828, %831 : vector<24x128xf32>
    %c99_39 = arith.constant 99 : index
    %833 = memref.load %arg4[%c99_39] : memref<144xf32, #tpu.memory_space<smem>>
    %834 = vector.broadcast %833 : f32 to vector<24x128xf32>
    %835 = arith.mulf %834, %788 : vector<24x128xf32>
    %836 = arith.addf %832, %835 : vector<24x128xf32>
    %c108_40 = arith.constant 108 : index
    %837 = memref.load %arg4[%c108_40] : memref<144xf32, #tpu.memory_space<smem>>
    %838 = vector.broadcast %837 : f32 to vector<24x128xf32>
    %839 = arith.mulf %838, %770 : vector<24x128xf32>
    %840 = arith.addf %764, %839 : vector<24x128xf32>
    %c117_41 = arith.constant 117 : index
    %841 = memref.load %arg4[%c117_41] : memref<144xf32, #tpu.memory_space<smem>>
    %842 = vector.broadcast %841 : f32 to vector<24x128xf32>
    %843 = arith.mulf %842, %776 : vector<24x128xf32>
    %844 = arith.addf %840, %843 : vector<24x128xf32>
    %c126_42 = arith.constant 126 : index
    %845 = memref.load %arg4[%c126_42] : memref<144xf32, #tpu.memory_space<smem>>
    %846 = vector.broadcast %845 : f32 to vector<24x128xf32>
    %847 = arith.mulf %846, %782 : vector<24x128xf32>
    %848 = arith.addf %844, %847 : vector<24x128xf32>
    %c135_43 = arith.constant 135 : index
    %849 = memref.load %arg4[%c135_43] : memref<144xf32, #tpu.memory_space<smem>>
    %850 = vector.broadcast %849 : f32 to vector<24x128xf32>
    %851 = arith.mulf %850, %788 : vector<24x128xf32>
    %852 = arith.addf %848, %851 : vector<24x128xf32>
    %853 = vector.extract_strided_slice %747 {offsets = [23, 0], sizes = [1, 128], strides = [1, 1]} : vector<24x128xf32> to vector<1x128xf32>
    %854 = vector.extract_strided_slice %747 {offsets = [0, 0], sizes = [23, 128], strides = [1, 1]} : vector<24x128xf32> to vector<23x128xf32>
    %855 = tpu.concatenate %853, %854 in 0 : vector<1x128xf32>, vector<23x128xf32> -> vector<24x128xf32>
    %856 = vector.extract_strided_slice %750 {offsets = [23, 0], sizes = [1, 128], strides = [1, 1]} : vector<24x128xf32> to vector<1x128xf32>
    %857 = vector.extract_strided_slice %750 {offsets = [0, 0], sizes = [23, 128], strides = [1, 1]} : vector<24x128xf32> to vector<23x128xf32>
    %858 = tpu.concatenate %856, %857 in 0 : vector<1x128xf32>, vector<23x128xf32> -> vector<24x128xf32>
    %859 = vector.extract_strided_slice %753 {offsets = [23, 0], sizes = [1, 128], strides = [1, 1]} : vector<24x128xf32> to vector<1x128xf32>
    %860 = vector.extract_strided_slice %753 {offsets = [0, 0], sizes = [23, 128], strides = [1, 1]} : vector<24x128xf32> to vector<23x128xf32>
    %861 = tpu.concatenate %859, %860 in 0 : vector<1x128xf32>, vector<23x128xf32> -> vector<24x128xf32>
    %862 = vector.extract_strided_slice %756 {offsets = [23, 0], sizes = [1, 128], strides = [1, 1]} : vector<24x128xf32> to vector<1x128xf32>
    %863 = vector.extract_strided_slice %756 {offsets = [0, 0], sizes = [23, 128], strides = [1, 1]} : vector<24x128xf32> to vector<23x128xf32>
    %864 = tpu.concatenate %862, %863 in 0 : vector<1x128xf32>, vector<23x128xf32> -> vector<24x128xf32>
    %c1_44 = arith.constant 1 : index
    %865 = memref.load %arg4[%c1_44] : memref<144xf32, #tpu.memory_space<smem>>
    %866 = vector.broadcast %865 : f32 to vector<24x128xf32>
    %867 = arith.mulf %866, %855 : vector<24x128xf32>
    %868 = arith.addf %804, %867 : vector<24x128xf32>
    %c10_45 = arith.constant 10 : index
    %869 = memref.load %arg4[%c10_45] : memref<144xf32, #tpu.memory_space<smem>>
    %870 = vector.broadcast %869 : f32 to vector<24x128xf32>
    %871 = arith.mulf %870, %858 : vector<24x128xf32>
    %872 = arith.addf %868, %871 : vector<24x128xf32>
    %c19_46 = arith.constant 19 : index
    %873 = memref.load %arg4[%c19_46] : memref<144xf32, #tpu.memory_space<smem>>
    %874 = vector.broadcast %873 : f32 to vector<24x128xf32>
    %875 = arith.mulf %874, %861 : vector<24x128xf32>
    %876 = arith.addf %872, %875 : vector<24x128xf32>
    %c28_47 = arith.constant 28 : index
    %877 = memref.load %arg4[%c28_47] : memref<144xf32, #tpu.memory_space<smem>>
    %878 = vector.broadcast %877 : f32 to vector<24x128xf32>
    %879 = arith.mulf %878, %864 : vector<24x128xf32>
    %880 = arith.addf %876, %879 : vector<24x128xf32>
    %c37_48 = arith.constant 37 : index
    %881 = memref.load %arg4[%c37_48] : memref<144xf32, #tpu.memory_space<smem>>
    %882 = vector.broadcast %881 : f32 to vector<24x128xf32>
    %883 = arith.mulf %882, %855 : vector<24x128xf32>
    %884 = arith.addf %820, %883 : vector<24x128xf32>
    %c46_49 = arith.constant 46 : index
    %885 = memref.load %arg4[%c46_49] : memref<144xf32, #tpu.memory_space<smem>>
    %886 = vector.broadcast %885 : f32 to vector<24x128xf32>
    %887 = arith.mulf %886, %858 : vector<24x128xf32>
    %888 = arith.addf %884, %887 : vector<24x128xf32>
    %c55_50 = arith.constant 55 : index
    %889 = memref.load %arg4[%c55_50] : memref<144xf32, #tpu.memory_space<smem>>
    %890 = vector.broadcast %889 : f32 to vector<24x128xf32>
    %891 = arith.mulf %890, %861 : vector<24x128xf32>
    %892 = arith.addf %888, %891 : vector<24x128xf32>
    %c64_51 = arith.constant 64 : index
    %893 = memref.load %arg4[%c64_51] : memref<144xf32, #tpu.memory_space<smem>>
    %894 = vector.broadcast %893 : f32 to vector<24x128xf32>
    %895 = arith.mulf %894, %864 : vector<24x128xf32>
    %896 = arith.addf %892, %895 : vector<24x128xf32>
    %c73_52 = arith.constant 73 : index
    %897 = memref.load %arg4[%c73_52] : memref<144xf32, #tpu.memory_space<smem>>
    %898 = vector.broadcast %897 : f32 to vector<24x128xf32>
    %899 = arith.mulf %898, %855 : vector<24x128xf32>
    %900 = arith.addf %836, %899 : vector<24x128xf32>
    %c82_53 = arith.constant 82 : index
    %901 = memref.load %arg4[%c82_53] : memref<144xf32, #tpu.memory_space<smem>>
    %902 = vector.broadcast %901 : f32 to vector<24x128xf32>
    %903 = arith.mulf %902, %858 : vector<24x128xf32>
    %904 = arith.addf %900, %903 : vector<24x128xf32>
    %c91_54 = arith.constant 91 : index
    %905 = memref.load %arg4[%c91_54] : memref<144xf32, #tpu.memory_space<smem>>
    %906 = vector.broadcast %905 : f32 to vector<24x128xf32>
    %907 = arith.mulf %906, %861 : vector<24x128xf32>
    %908 = arith.addf %904, %907 : vector<24x128xf32>
    %c100_55 = arith.constant 100 : index
    %909 = memref.load %arg4[%c100_55] : memref<144xf32, #tpu.memory_space<smem>>
    %910 = vector.broadcast %909 : f32 to vector<24x128xf32>
    %911 = arith.mulf %910, %864 : vector<24x128xf32>
    %912 = arith.addf %908, %911 : vector<24x128xf32>
    %c109_56 = arith.constant 109 : index
    %913 = memref.load %arg4[%c109_56] : memref<144xf32, #tpu.memory_space<smem>>
    %914 = vector.broadcast %913 : f32 to vector<24x128xf32>
    %915 = arith.mulf %914, %855 : vector<24x128xf32>
    %916 = arith.addf %852, %915 : vector<24x128xf32>
    %c118_57 = arith.constant 118 : index
    %917 = memref.load %arg4[%c118_57] : memref<144xf32, #tpu.memory_space<smem>>
    %918 = vector.broadcast %917 : f32 to vector<24x128xf32>
    %919 = arith.mulf %918, %858 : vector<24x128xf32>
    %920 = arith.addf %916, %919 : vector<24x128xf32>
    %c127_58 = arith.constant 127 : index
    %921 = memref.load %arg4[%c127_58] : memref<144xf32, #tpu.memory_space<smem>>
    %922 = vector.broadcast %921 : f32 to vector<24x128xf32>
    %923 = arith.mulf %922, %861 : vector<24x128xf32>
    %924 = arith.addf %920, %923 : vector<24x128xf32>
    %c136_59 = arith.constant 136 : index
    %925 = memref.load %arg4[%c136_59] : memref<144xf32, #tpu.memory_space<smem>>
    %926 = vector.broadcast %925 : f32 to vector<24x128xf32>
    %927 = arith.mulf %926, %864 : vector<24x128xf32>
    %928 = arith.addf %924, %927 : vector<24x128xf32>
    %929 = vector.extract_strided_slice %747 {offsets = [23, 0], sizes = [1, 128], strides = [1, 1]} : vector<24x128xf32> to vector<1x128xf32>
    %930 = vector.extract_strided_slice %747 {offsets = [0, 0], sizes = [23, 128], strides = [1, 1]} : vector<24x128xf32> to vector<23x128xf32>
    %931 = tpu.concatenate %929, %930 in 0 : vector<1x128xf32>, vector<23x128xf32> -> vector<24x128xf32>
    %932 = vector.extract_strided_slice %931 {offsets = [0, 1], sizes = [24, 127], strides = [1, 1]} : vector<24x128xf32> to vector<24x127xf32>
    %933 = vector.extract_strided_slice %931 {offsets = [0, 0], sizes = [24, 1], strides = [1, 1]} : vector<24x128xf32> to vector<24x1xf32>
    %934 = tpu.concatenate %932, %933 in 1 : vector<24x127xf32>, vector<24x1xf32> -> vector<24x128xf32>
    %935 = vector.extract_strided_slice %750 {offsets = [23, 0], sizes = [1, 128], strides = [1, 1]} : vector<24x128xf32> to vector<1x128xf32>
    %936 = vector.extract_strided_slice %750 {offsets = [0, 0], sizes = [23, 128], strides = [1, 1]} : vector<24x128xf32> to vector<23x128xf32>
    %937 = tpu.concatenate %935, %936 in 0 : vector<1x128xf32>, vector<23x128xf32> -> vector<24x128xf32>
    %938 = vector.extract_strided_slice %937 {offsets = [0, 1], sizes = [24, 127], strides = [1, 1]} : vector<24x128xf32> to vector<24x127xf32>
    %939 = vector.extract_strided_slice %937 {offsets = [0, 0], sizes = [24, 1], strides = [1, 1]} : vector<24x128xf32> to vector<24x1xf32>
    %940 = tpu.concatenate %938, %939 in 1 : vector<24x127xf32>, vector<24x1xf32> -> vector<24x128xf32>
    %941 = vector.extract_strided_slice %753 {offsets = [23, 0], sizes = [1, 128], strides = [1, 1]} : vector<24x128xf32> to vector<1x128xf32>
    %942 = vector.extract_strided_slice %753 {offsets = [0, 0], sizes = [23, 128], strides = [1, 1]} : vector<24x128xf32> to vector<23x128xf32>
    %943 = tpu.concatenate %941, %942 in 0 : vector<1x128xf32>, vector<23x128xf32> -> vector<24x128xf32>
    %944 = vector.extract_strided_slice %943 {offsets = [0, 1], sizes = [24, 127], strides = [1, 1]} : vector<24x128xf32> to vector<24x127xf32>
    %945 = vector.extract_strided_slice %943 {offsets = [0, 0], sizes = [24, 1], strides = [1, 1]} : vector<24x128xf32> to vector<24x1xf32>
    %946 = tpu.concatenate %944, %945 in 1 : vector<24x127xf32>, vector<24x1xf32> -> vector<24x128xf32>
    %947 = vector.extract_strided_slice %756 {offsets = [23, 0], sizes = [1, 128], strides = [1, 1]} : vector<24x128xf32> to vector<1x128xf32>
    %948 = vector.extract_strided_slice %756 {offsets = [0, 0], sizes = [23, 128], strides = [1, 1]} : vector<24x128xf32> to vector<23x128xf32>
    %949 = tpu.concatenate %947, %948 in 0 : vector<1x128xf32>, vector<23x128xf32> -> vector<24x128xf32>
    %950 = vector.extract_strided_slice %949 {offsets = [0, 1], sizes = [24, 127], strides = [1, 1]} : vector<24x128xf32> to vector<24x127xf32>
    %951 = vector.extract_strided_slice %949 {offsets = [0, 0], sizes = [24, 1], strides = [1, 1]} : vector<24x128xf32> to vector<24x1xf32>
    %952 = tpu.concatenate %950, %951 in 1 : vector<24x127xf32>, vector<24x1xf32> -> vector<24x128xf32>
    %c2_60 = arith.constant 2 : index
    %953 = memref.load %arg4[%c2_60] : memref<144xf32, #tpu.memory_space<smem>>
    %954 = vector.broadcast %953 : f32 to vector<24x128xf32>
    %955 = arith.mulf %954, %934 : vector<24x128xf32>
    %956 = arith.addf %880, %955 : vector<24x128xf32>
    %c11_61 = arith.constant 11 : index
    %957 = memref.load %arg4[%c11_61] : memref<144xf32, #tpu.memory_space<smem>>
    %958 = vector.broadcast %957 : f32 to vector<24x128xf32>
    %959 = arith.mulf %958, %940 : vector<24x128xf32>
    %960 = arith.addf %956, %959 : vector<24x128xf32>
    %c20_62 = arith.constant 20 : index
    %961 = memref.load %arg4[%c20_62] : memref<144xf32, #tpu.memory_space<smem>>
    %962 = vector.broadcast %961 : f32 to vector<24x128xf32>
    %963 = arith.mulf %962, %946 : vector<24x128xf32>
    %964 = arith.addf %960, %963 : vector<24x128xf32>
    %c29_63 = arith.constant 29 : index
    %965 = memref.load %arg4[%c29_63] : memref<144xf32, #tpu.memory_space<smem>>
    %966 = vector.broadcast %965 : f32 to vector<24x128xf32>
    %967 = arith.mulf %966, %952 : vector<24x128xf32>
    %968 = arith.addf %964, %967 : vector<24x128xf32>
    %c38_64 = arith.constant 38 : index
    %969 = memref.load %arg4[%c38_64] : memref<144xf32, #tpu.memory_space<smem>>
    %970 = vector.broadcast %969 : f32 to vector<24x128xf32>
    %971 = arith.mulf %970, %934 : vector<24x128xf32>
    %972 = arith.addf %896, %971 : vector<24x128xf32>
    %c47_65 = arith.constant 47 : index
    %973 = memref.load %arg4[%c47_65] : memref<144xf32, #tpu.memory_space<smem>>
    %974 = vector.broadcast %973 : f32 to vector<24x128xf32>
    %975 = arith.mulf %974, %940 : vector<24x128xf32>
    %976 = arith.addf %972, %975 : vector<24x128xf32>
    %c56_66 = arith.constant 56 : index
    %977 = memref.load %arg4[%c56_66] : memref<144xf32, #tpu.memory_space<smem>>
    %978 = vector.broadcast %977 : f32 to vector<24x128xf32>
    %979 = arith.mulf %978, %946 : vector<24x128xf32>
    %980 = arith.addf %976, %979 : vector<24x128xf32>
    %c65_67 = arith.constant 65 : index
    %981 = memref.load %arg4[%c65_67] : memref<144xf32, #tpu.memory_space<smem>>
    %982 = vector.broadcast %981 : f32 to vector<24x128xf32>
    %983 = arith.mulf %982, %952 : vector<24x128xf32>
    %984 = arith.addf %980, %983 : vector<24x128xf32>
    %c74_68 = arith.constant 74 : index
    %985 = memref.load %arg4[%c74_68] : memref<144xf32, #tpu.memory_space<smem>>
    %986 = vector.broadcast %985 : f32 to vector<24x128xf32>
    %987 = arith.mulf %986, %934 : vector<24x128xf32>
    %988 = arith.addf %912, %987 : vector<24x128xf32>
    %c83_69 = arith.constant 83 : index
    %989 = memref.load %arg4[%c83_69] : memref<144xf32, #tpu.memory_space<smem>>
    %990 = vector.broadcast %989 : f32 to vector<24x128xf32>
    %991 = arith.mulf %990, %940 : vector<24x128xf32>
    %992 = arith.addf %988, %991 : vector<24x128xf32>
    %c92_70 = arith.constant 92 : index
    %993 = memref.load %arg4[%c92_70] : memref<144xf32, #tpu.memory_space<smem>>
    %994 = vector.broadcast %993 : f32 to vector<24x128xf32>
    %995 = arith.mulf %994, %946 : vector<24x128xf32>
    %996 = arith.addf %992, %995 : vector<24x128xf32>
    %c101_71 = arith.constant 101 : index
    %997 = memref.load %arg4[%c101_71] : memref<144xf32, #tpu.memory_space<smem>>
    %998 = vector.broadcast %997 : f32 to vector<24x128xf32>
    %999 = arith.mulf %998, %952 : vector<24x128xf32>
    %1000 = arith.addf %996, %999 : vector<24x128xf32>
    %c110_72 = arith.constant 110 : index
    %1001 = memref.load %arg4[%c110_72] : memref<144xf32, #tpu.memory_space<smem>>
    %1002 = vector.broadcast %1001 : f32 to vector<24x128xf32>
    %1003 = arith.mulf %1002, %934 : vector<24x128xf32>
    %1004 = arith.addf %928, %1003 : vector<24x128xf32>
    %c119_73 = arith.constant 119 : index
    %1005 = memref.load %arg4[%c119_73] : memref<144xf32, #tpu.memory_space<smem>>
    %1006 = vector.broadcast %1005 : f32 to vector<24x128xf32>
    %1007 = arith.mulf %1006, %940 : vector<24x128xf32>
    %1008 = arith.addf %1004, %1007 : vector<24x128xf32>
    %c128_74 = arith.constant 128 : index
    %1009 = memref.load %arg4[%c128_74] : memref<144xf32, #tpu.memory_space<smem>>
    %1010 = vector.broadcast %1009 : f32 to vector<24x128xf32>
    %1011 = arith.mulf %1010, %946 : vector<24x128xf32>
    %1012 = arith.addf %1008, %1011 : vector<24x128xf32>
    %c137_75 = arith.constant 137 : index
    %1013 = memref.load %arg4[%c137_75] : memref<144xf32, #tpu.memory_space<smem>>
    %1014 = vector.broadcast %1013 : f32 to vector<24x128xf32>
    %1015 = arith.mulf %1014, %952 : vector<24x128xf32>
    %1016 = arith.addf %1012, %1015 : vector<24x128xf32>
    %1017 = vector.extract_strided_slice %747 {offsets = [0, 127], sizes = [24, 1], strides = [1, 1]} : vector<24x128xf32> to vector<24x1xf32>
    %1018 = vector.extract_strided_slice %747 {offsets = [0, 0], sizes = [24, 127], strides = [1, 1]} : vector<24x128xf32> to vector<24x127xf32>
    %1019 = tpu.concatenate %1017, %1018 in 1 : vector<24x1xf32>, vector<24x127xf32> -> vector<24x128xf32>
    %1020 = vector.extract_strided_slice %750 {offsets = [0, 127], sizes = [24, 1], strides = [1, 1]} : vector<24x128xf32> to vector<24x1xf32>
    %1021 = vector.extract_strided_slice %750 {offsets = [0, 0], sizes = [24, 127], strides = [1, 1]} : vector<24x128xf32> to vector<24x127xf32>
    %1022 = tpu.concatenate %1020, %1021 in 1 : vector<24x1xf32>, vector<24x127xf32> -> vector<24x128xf32>
    %1023 = vector.extract_strided_slice %753 {offsets = [0, 127], sizes = [24, 1], strides = [1, 1]} : vector<24x128xf32> to vector<24x1xf32>
    %1024 = vector.extract_strided_slice %753 {offsets = [0, 0], sizes = [24, 127], strides = [1, 1]} : vector<24x128xf32> to vector<24x127xf32>
    %1025 = tpu.concatenate %1023, %1024 in 1 : vector<24x1xf32>, vector<24x127xf32> -> vector<24x128xf32>
    %1026 = vector.extract_strided_slice %756 {offsets = [0, 127], sizes = [24, 1], strides = [1, 1]} : vector<24x128xf32> to vector<24x1xf32>
    %1027 = vector.extract_strided_slice %756 {offsets = [0, 0], sizes = [24, 127], strides = [1, 1]} : vector<24x128xf32> to vector<24x127xf32>
    %1028 = tpu.concatenate %1026, %1027 in 1 : vector<24x1xf32>, vector<24x127xf32> -> vector<24x128xf32>
    %c3_76 = arith.constant 3 : index
    %1029 = memref.load %arg4[%c3_76] : memref<144xf32, #tpu.memory_space<smem>>
    %1030 = vector.broadcast %1029 : f32 to vector<24x128xf32>
    %1031 = arith.mulf %1030, %1019 : vector<24x128xf32>
    %1032 = arith.addf %968, %1031 : vector<24x128xf32>
    %c12_77 = arith.constant 12 : index
    %1033 = memref.load %arg4[%c12_77] : memref<144xf32, #tpu.memory_space<smem>>
    %1034 = vector.broadcast %1033 : f32 to vector<24x128xf32>
    %1035 = arith.mulf %1034, %1022 : vector<24x128xf32>
    %1036 = arith.addf %1032, %1035 : vector<24x128xf32>
    %c21_78 = arith.constant 21 : index
    %1037 = memref.load %arg4[%c21_78] : memref<144xf32, #tpu.memory_space<smem>>
    %1038 = vector.broadcast %1037 : f32 to vector<24x128xf32>
    %1039 = arith.mulf %1038, %1025 : vector<24x128xf32>
    %1040 = arith.addf %1036, %1039 : vector<24x128xf32>
    %c30_79 = arith.constant 30 : index
    %1041 = memref.load %arg4[%c30_79] : memref<144xf32, #tpu.memory_space<smem>>
    %1042 = vector.broadcast %1041 : f32 to vector<24x128xf32>
    %1043 = arith.mulf %1042, %1028 : vector<24x128xf32>
    %1044 = arith.addf %1040, %1043 : vector<24x128xf32>
    %c39_80 = arith.constant 39 : index
    %1045 = memref.load %arg4[%c39_80] : memref<144xf32, #tpu.memory_space<smem>>
    %1046 = vector.broadcast %1045 : f32 to vector<24x128xf32>
    %1047 = arith.mulf %1046, %1019 : vector<24x128xf32>
    %1048 = arith.addf %984, %1047 : vector<24x128xf32>
    %c48_81 = arith.constant 48 : index
    %1049 = memref.load %arg4[%c48_81] : memref<144xf32, #tpu.memory_space<smem>>
    %1050 = vector.broadcast %1049 : f32 to vector<24x128xf32>
    %1051 = arith.mulf %1050, %1022 : vector<24x128xf32>
    %1052 = arith.addf %1048, %1051 : vector<24x128xf32>
    %c57_82 = arith.constant 57 : index
    %1053 = memref.load %arg4[%c57_82] : memref<144xf32, #tpu.memory_space<smem>>
    %1054 = vector.broadcast %1053 : f32 to vector<24x128xf32>
    %1055 = arith.mulf %1054, %1025 : vector<24x128xf32>
    %1056 = arith.addf %1052, %1055 : vector<24x128xf32>
    %c66_83 = arith.constant 66 : index
    %1057 = memref.load %arg4[%c66_83] : memref<144xf32, #tpu.memory_space<smem>>
    %1058 = vector.broadcast %1057 : f32 to vector<24x128xf32>
    %1059 = arith.mulf %1058, %1028 : vector<24x128xf32>
    %1060 = arith.addf %1056, %1059 : vector<24x128xf32>
    %c75_84 = arith.constant 75 : index
    %1061 = memref.load %arg4[%c75_84] : memref<144xf32, #tpu.memory_space<smem>>
    %1062 = vector.broadcast %1061 : f32 to vector<24x128xf32>
    %1063 = arith.mulf %1062, %1019 : vector<24x128xf32>
    %1064 = arith.addf %1000, %1063 : vector<24x128xf32>
    %c84_85 = arith.constant 84 : index
    %1065 = memref.load %arg4[%c84_85] : memref<144xf32, #tpu.memory_space<smem>>
    %1066 = vector.broadcast %1065 : f32 to vector<24x128xf32>
    %1067 = arith.mulf %1066, %1022 : vector<24x128xf32>
    %1068 = arith.addf %1064, %1067 : vector<24x128xf32>
    %c93_86 = arith.constant 93 : index
    %1069 = memref.load %arg4[%c93_86] : memref<144xf32, #tpu.memory_space<smem>>
    %1070 = vector.broadcast %1069 : f32 to vector<24x128xf32>
    %1071 = arith.mulf %1070, %1025 : vector<24x128xf32>
    %1072 = arith.addf %1068, %1071 : vector<24x128xf32>
    %c102_87 = arith.constant 102 : index
    %1073 = memref.load %arg4[%c102_87] : memref<144xf32, #tpu.memory_space<smem>>
    %1074 = vector.broadcast %1073 : f32 to vector<24x128xf32>
    %1075 = arith.mulf %1074, %1028 : vector<24x128xf32>
    %1076 = arith.addf %1072, %1075 : vector<24x128xf32>
    %c111_88 = arith.constant 111 : index
    %1077 = memref.load %arg4[%c111_88] : memref<144xf32, #tpu.memory_space<smem>>
    %1078 = vector.broadcast %1077 : f32 to vector<24x128xf32>
    %1079 = arith.mulf %1078, %1019 : vector<24x128xf32>
    %1080 = arith.addf %1016, %1079 : vector<24x128xf32>
    %c120_89 = arith.constant 120 : index
    %1081 = memref.load %arg4[%c120_89] : memref<144xf32, #tpu.memory_space<smem>>
    %1082 = vector.broadcast %1081 : f32 to vector<24x128xf32>
    %1083 = arith.mulf %1082, %1022 : vector<24x128xf32>
    %1084 = arith.addf %1080, %1083 : vector<24x128xf32>
    %c129_90 = arith.constant 129 : index
    %1085 = memref.load %arg4[%c129_90] : memref<144xf32, #tpu.memory_space<smem>>
    %1086 = vector.broadcast %1085 : f32 to vector<24x128xf32>
    %1087 = arith.mulf %1086, %1025 : vector<24x128xf32>
    %1088 = arith.addf %1084, %1087 : vector<24x128xf32>
    %c138_91 = arith.constant 138 : index
    %1089 = memref.load %arg4[%c138_91] : memref<144xf32, #tpu.memory_space<smem>>
    %1090 = vector.broadcast %1089 : f32 to vector<24x128xf32>
    %1091 = arith.mulf %1090, %1028 : vector<24x128xf32>
    %1092 = arith.addf %1088, %1091 : vector<24x128xf32>
    %c4_92 = arith.constant 4 : index
    %1093 = memref.load %arg4[%c4_92] : memref<144xf32, #tpu.memory_space<smem>>
    %1094 = vector.broadcast %1093 : f32 to vector<24x128xf32>
    %1095 = arith.mulf %1094, %747 : vector<24x128xf32>
    %1096 = arith.addf %1044, %1095 : vector<24x128xf32>
    %c13_93 = arith.constant 13 : index
    %1097 = memref.load %arg4[%c13_93] : memref<144xf32, #tpu.memory_space<smem>>
    %1098 = vector.broadcast %1097 : f32 to vector<24x128xf32>
    %1099 = arith.mulf %1098, %750 : vector<24x128xf32>
    %1100 = arith.addf %1096, %1099 : vector<24x128xf32>
    %c22_94 = arith.constant 22 : index
    %1101 = memref.load %arg4[%c22_94] : memref<144xf32, #tpu.memory_space<smem>>
    %1102 = vector.broadcast %1101 : f32 to vector<24x128xf32>
    %1103 = arith.mulf %1102, %753 : vector<24x128xf32>
    %1104 = arith.addf %1100, %1103 : vector<24x128xf32>
    %c31_95 = arith.constant 31 : index
    %1105 = memref.load %arg4[%c31_95] : memref<144xf32, #tpu.memory_space<smem>>
    %1106 = vector.broadcast %1105 : f32 to vector<24x128xf32>
    %1107 = arith.mulf %1106, %756 : vector<24x128xf32>
    %1108 = arith.addf %1104, %1107 : vector<24x128xf32>
    %c40_96 = arith.constant 40 : index
    %1109 = memref.load %arg4[%c40_96] : memref<144xf32, #tpu.memory_space<smem>>
    %1110 = vector.broadcast %1109 : f32 to vector<24x128xf32>
    %1111 = arith.mulf %1110, %747 : vector<24x128xf32>
    %1112 = arith.addf %1060, %1111 : vector<24x128xf32>
    %c49_97 = arith.constant 49 : index
    %1113 = memref.load %arg4[%c49_97] : memref<144xf32, #tpu.memory_space<smem>>
    %1114 = vector.broadcast %1113 : f32 to vector<24x128xf32>
    %1115 = arith.mulf %1114, %750 : vector<24x128xf32>
    %1116 = arith.addf %1112, %1115 : vector<24x128xf32>
    %c58_98 = arith.constant 58 : index
    %1117 = memref.load %arg4[%c58_98] : memref<144xf32, #tpu.memory_space<smem>>
    %1118 = vector.broadcast %1117 : f32 to vector<24x128xf32>
    %1119 = arith.mulf %1118, %753 : vector<24x128xf32>
    %1120 = arith.addf %1116, %1119 : vector<24x128xf32>
    %c67_99 = arith.constant 67 : index
    %1121 = memref.load %arg4[%c67_99] : memref<144xf32, #tpu.memory_space<smem>>
    %1122 = vector.broadcast %1121 : f32 to vector<24x128xf32>
    %1123 = arith.mulf %1122, %756 : vector<24x128xf32>
    %1124 = arith.addf %1120, %1123 : vector<24x128xf32>
    %c76_100 = arith.constant 76 : index
    %1125 = memref.load %arg4[%c76_100] : memref<144xf32, #tpu.memory_space<smem>>
    %1126 = vector.broadcast %1125 : f32 to vector<24x128xf32>
    %1127 = arith.mulf %1126, %747 : vector<24x128xf32>
    %1128 = arith.addf %1076, %1127 : vector<24x128xf32>
    %c85_101 = arith.constant 85 : index
    %1129 = memref.load %arg4[%c85_101] : memref<144xf32, #tpu.memory_space<smem>>
    %1130 = vector.broadcast %1129 : f32 to vector<24x128xf32>
    %1131 = arith.mulf %1130, %750 : vector<24x128xf32>
    %1132 = arith.addf %1128, %1131 : vector<24x128xf32>
    %c94_102 = arith.constant 94 : index
    %1133 = memref.load %arg4[%c94_102] : memref<144xf32, #tpu.memory_space<smem>>
    %1134 = vector.broadcast %1133 : f32 to vector<24x128xf32>
    %1135 = arith.mulf %1134, %753 : vector<24x128xf32>
    %1136 = arith.addf %1132, %1135 : vector<24x128xf32>
    %c103_103 = arith.constant 103 : index
    %1137 = memref.load %arg4[%c103_103] : memref<144xf32, #tpu.memory_space<smem>>
    %1138 = vector.broadcast %1137 : f32 to vector<24x128xf32>
    %1139 = arith.mulf %1138, %756 : vector<24x128xf32>
    %1140 = arith.addf %1136, %1139 : vector<24x128xf32>
    %c112_104 = arith.constant 112 : index
    %1141 = memref.load %arg4[%c112_104] : memref<144xf32, #tpu.memory_space<smem>>
    %1142 = vector.broadcast %1141 : f32 to vector<24x128xf32>
    %1143 = arith.mulf %1142, %747 : vector<24x128xf32>
    %1144 = arith.addf %1092, %1143 : vector<24x128xf32>
    %c121_105 = arith.constant 121 : index
    %1145 = memref.load %arg4[%c121_105] : memref<144xf32, #tpu.memory_space<smem>>
    %1146 = vector.broadcast %1145 : f32 to vector<24x128xf32>
    %1147 = arith.mulf %1146, %750 : vector<24x128xf32>
    %1148 = arith.addf %1144, %1147 : vector<24x128xf32>
    %c130_106 = arith.constant 130 : index
    %1149 = memref.load %arg4[%c130_106] : memref<144xf32, #tpu.memory_space<smem>>
    %1150 = vector.broadcast %1149 : f32 to vector<24x128xf32>
    %1151 = arith.mulf %1150, %753 : vector<24x128xf32>
    %1152 = arith.addf %1148, %1151 : vector<24x128xf32>
    %c139_107 = arith.constant 139 : index
    %1153 = memref.load %arg4[%c139_107] : memref<144xf32, #tpu.memory_space<smem>>
    %1154 = vector.broadcast %1153 : f32 to vector<24x128xf32>
    %1155 = arith.mulf %1154, %756 : vector<24x128xf32>
    %1156 = arith.addf %1152, %1155 : vector<24x128xf32>
    %1157 = vector.extract_strided_slice %747 {offsets = [0, 1], sizes = [24, 127], strides = [1, 1]} : vector<24x128xf32> to vector<24x127xf32>
    %1158 = vector.extract_strided_slice %747 {offsets = [0, 0], sizes = [24, 1], strides = [1, 1]} : vector<24x128xf32> to vector<24x1xf32>
    %1159 = tpu.concatenate %1157, %1158 in 1 : vector<24x127xf32>, vector<24x1xf32> -> vector<24x128xf32>
    %1160 = vector.extract_strided_slice %750 {offsets = [0, 1], sizes = [24, 127], strides = [1, 1]} : vector<24x128xf32> to vector<24x127xf32>
    %1161 = vector.extract_strided_slice %750 {offsets = [0, 0], sizes = [24, 1], strides = [1, 1]} : vector<24x128xf32> to vector<24x1xf32>
    %1162 = tpu.concatenate %1160, %1161 in 1 : vector<24x127xf32>, vector<24x1xf32> -> vector<24x128xf32>
    %1163 = vector.extract_strided_slice %753 {offsets = [0, 1], sizes = [24, 127], strides = [1, 1]} : vector<24x128xf32> to vector<24x127xf32>
    %1164 = vector.extract_strided_slice %753 {offsets = [0, 0], sizes = [24, 1], strides = [1, 1]} : vector<24x128xf32> to vector<24x1xf32>
    %1165 = tpu.concatenate %1163, %1164 in 1 : vector<24x127xf32>, vector<24x1xf32> -> vector<24x128xf32>
    %1166 = vector.extract_strided_slice %756 {offsets = [0, 1], sizes = [24, 127], strides = [1, 1]} : vector<24x128xf32> to vector<24x127xf32>
    %1167 = vector.extract_strided_slice %756 {offsets = [0, 0], sizes = [24, 1], strides = [1, 1]} : vector<24x128xf32> to vector<24x1xf32>
    %1168 = tpu.concatenate %1166, %1167 in 1 : vector<24x127xf32>, vector<24x1xf32> -> vector<24x128xf32>
    %c5_108 = arith.constant 5 : index
    %1169 = memref.load %arg4[%c5_108] : memref<144xf32, #tpu.memory_space<smem>>
    %1170 = vector.broadcast %1169 : f32 to vector<24x128xf32>
    %1171 = arith.mulf %1170, %1159 : vector<24x128xf32>
    %1172 = arith.addf %1108, %1171 : vector<24x128xf32>
    %c14_109 = arith.constant 14 : index
    %1173 = memref.load %arg4[%c14_109] : memref<144xf32, #tpu.memory_space<smem>>
    %1174 = vector.broadcast %1173 : f32 to vector<24x128xf32>
    %1175 = arith.mulf %1174, %1162 : vector<24x128xf32>
    %1176 = arith.addf %1172, %1175 : vector<24x128xf32>
    %c23_110 = arith.constant 23 : index
    %1177 = memref.load %arg4[%c23_110] : memref<144xf32, #tpu.memory_space<smem>>
    %1178 = vector.broadcast %1177 : f32 to vector<24x128xf32>
    %1179 = arith.mulf %1178, %1165 : vector<24x128xf32>
    %1180 = arith.addf %1176, %1179 : vector<24x128xf32>
    %c32_111 = arith.constant 32 : index
    %1181 = memref.load %arg4[%c32_111] : memref<144xf32, #tpu.memory_space<smem>>
    %1182 = vector.broadcast %1181 : f32 to vector<24x128xf32>
    %1183 = arith.mulf %1182, %1168 : vector<24x128xf32>
    %1184 = arith.addf %1180, %1183 : vector<24x128xf32>
    %c41_112 = arith.constant 41 : index
    %1185 = memref.load %arg4[%c41_112] : memref<144xf32, #tpu.memory_space<smem>>
    %1186 = vector.broadcast %1185 : f32 to vector<24x128xf32>
    %1187 = arith.mulf %1186, %1159 : vector<24x128xf32>
    %1188 = arith.addf %1124, %1187 : vector<24x128xf32>
    %c50_113 = arith.constant 50 : index
    %1189 = memref.load %arg4[%c50_113] : memref<144xf32, #tpu.memory_space<smem>>
    %1190 = vector.broadcast %1189 : f32 to vector<24x128xf32>
    %1191 = arith.mulf %1190, %1162 : vector<24x128xf32>
    %1192 = arith.addf %1188, %1191 : vector<24x128xf32>
    %c59_114 = arith.constant 59 : index
    %1193 = memref.load %arg4[%c59_114] : memref<144xf32, #tpu.memory_space<smem>>
    %1194 = vector.broadcast %1193 : f32 to vector<24x128xf32>
    %1195 = arith.mulf %1194, %1165 : vector<24x128xf32>
    %1196 = arith.addf %1192, %1195 : vector<24x128xf32>
    %c68_115 = arith.constant 68 : index
    %1197 = memref.load %arg4[%c68_115] : memref<144xf32, #tpu.memory_space<smem>>
    %1198 = vector.broadcast %1197 : f32 to vector<24x128xf32>
    %1199 = arith.mulf %1198, %1168 : vector<24x128xf32>
    %1200 = arith.addf %1196, %1199 : vector<24x128xf32>
    %c77_116 = arith.constant 77 : index
    %1201 = memref.load %arg4[%c77_116] : memref<144xf32, #tpu.memory_space<smem>>
    %1202 = vector.broadcast %1201 : f32 to vector<24x128xf32>
    %1203 = arith.mulf %1202, %1159 : vector<24x128xf32>
    %1204 = arith.addf %1140, %1203 : vector<24x128xf32>
    %c86_117 = arith.constant 86 : index
    %1205 = memref.load %arg4[%c86_117] : memref<144xf32, #tpu.memory_space<smem>>
    %1206 = vector.broadcast %1205 : f32 to vector<24x128xf32>
    %1207 = arith.mulf %1206, %1162 : vector<24x128xf32>
    %1208 = arith.addf %1204, %1207 : vector<24x128xf32>
    %c95_118 = arith.constant 95 : index
    %1209 = memref.load %arg4[%c95_118] : memref<144xf32, #tpu.memory_space<smem>>
    %1210 = vector.broadcast %1209 : f32 to vector<24x128xf32>
    %1211 = arith.mulf %1210, %1165 : vector<24x128xf32>
    %1212 = arith.addf %1208, %1211 : vector<24x128xf32>
    %c104_119 = arith.constant 104 : index
    %1213 = memref.load %arg4[%c104_119] : memref<144xf32, #tpu.memory_space<smem>>
    %1214 = vector.broadcast %1213 : f32 to vector<24x128xf32>
    %1215 = arith.mulf %1214, %1168 : vector<24x128xf32>
    %1216 = arith.addf %1212, %1215 : vector<24x128xf32>
    %c113_120 = arith.constant 113 : index
    %1217 = memref.load %arg4[%c113_120] : memref<144xf32, #tpu.memory_space<smem>>
    %1218 = vector.broadcast %1217 : f32 to vector<24x128xf32>
    %1219 = arith.mulf %1218, %1159 : vector<24x128xf32>
    %1220 = arith.addf %1156, %1219 : vector<24x128xf32>
    %c122_121 = arith.constant 122 : index
    %1221 = memref.load %arg4[%c122_121] : memref<144xf32, #tpu.memory_space<smem>>
    %1222 = vector.broadcast %1221 : f32 to vector<24x128xf32>
    %1223 = arith.mulf %1222, %1162 : vector<24x128xf32>
    %1224 = arith.addf %1220, %1223 : vector<24x128xf32>
    %c131_122 = arith.constant 131 : index
    %1225 = memref.load %arg4[%c131_122] : memref<144xf32, #tpu.memory_space<smem>>
    %1226 = vector.broadcast %1225 : f32 to vector<24x128xf32>
    %1227 = arith.mulf %1226, %1165 : vector<24x128xf32>
    %1228 = arith.addf %1224, %1227 : vector<24x128xf32>
    %c140_123 = arith.constant 140 : index
    %1229 = memref.load %arg4[%c140_123] : memref<144xf32, #tpu.memory_space<smem>>
    %1230 = vector.broadcast %1229 : f32 to vector<24x128xf32>
    %1231 = arith.mulf %1230, %1168 : vector<24x128xf32>
    %1232 = arith.addf %1228, %1231 : vector<24x128xf32>
    %1233 = vector.extract_strided_slice %747 {offsets = [1, 0], sizes = [23, 128], strides = [1, 1]} : vector<24x128xf32> to vector<23x128xf32>
    %1234 = vector.extract_strided_slice %747 {offsets = [0, 0], sizes = [1, 128], strides = [1, 1]} : vector<24x128xf32> to vector<1x128xf32>
    %1235 = tpu.concatenate %1233, %1234 in 0 : vector<23x128xf32>, vector<1x128xf32> -> vector<24x128xf32>
    %1236 = vector.extract_strided_slice %1235 {offsets = [0, 127], sizes = [24, 1], strides = [1, 1]} : vector<24x128xf32> to vector<24x1xf32>
    %1237 = vector.extract_strided_slice %1235 {offsets = [0, 0], sizes = [24, 127], strides = [1, 1]} : vector<24x128xf32> to vector<24x127xf32>
    %1238 = tpu.concatenate %1236, %1237 in 1 : vector<24x1xf32>, vector<24x127xf32> -> vector<24x128xf32>
    %1239 = vector.extract_strided_slice %750 {offsets = [1, 0], sizes = [23, 128], strides = [1, 1]} : vector<24x128xf32> to vector<23x128xf32>
    %1240 = vector.extract_strided_slice %750 {offsets = [0, 0], sizes = [1, 128], strides = [1, 1]} : vector<24x128xf32> to vector<1x128xf32>
    %1241 = tpu.concatenate %1239, %1240 in 0 : vector<23x128xf32>, vector<1x128xf32> -> vector<24x128xf32>
    %1242 = vector.extract_strided_slice %1241 {offsets = [0, 127], sizes = [24, 1], strides = [1, 1]} : vector<24x128xf32> to vector<24x1xf32>
    %1243 = vector.extract_strided_slice %1241 {offsets = [0, 0], sizes = [24, 127], strides = [1, 1]} : vector<24x128xf32> to vector<24x127xf32>
    %1244 = tpu.concatenate %1242, %1243 in 1 : vector<24x1xf32>, vector<24x127xf32> -> vector<24x128xf32>
    %1245 = vector.extract_strided_slice %753 {offsets = [1, 0], sizes = [23, 128], strides = [1, 1]} : vector<24x128xf32> to vector<23x128xf32>
    %1246 = vector.extract_strided_slice %753 {offsets = [0, 0], sizes = [1, 128], strides = [1, 1]} : vector<24x128xf32> to vector<1x128xf32>
    %1247 = tpu.concatenate %1245, %1246 in 0 : vector<23x128xf32>, vector<1x128xf32> -> vector<24x128xf32>
    %1248 = vector.extract_strided_slice %1247 {offsets = [0, 127], sizes = [24, 1], strides = [1, 1]} : vector<24x128xf32> to vector<24x1xf32>
    %1249 = vector.extract_strided_slice %1247 {offsets = [0, 0], sizes = [24, 127], strides = [1, 1]} : vector<24x128xf32> to vector<24x127xf32>
    %1250 = tpu.concatenate %1248, %1249 in 1 : vector<24x1xf32>, vector<24x127xf32> -> vector<24x128xf32>
    %1251 = vector.extract_strided_slice %756 {offsets = [1, 0], sizes = [23, 128], strides = [1, 1]} : vector<24x128xf32> to vector<23x128xf32>
    %1252 = vector.extract_strided_slice %756 {offsets = [0, 0], sizes = [1, 128], strides = [1, 1]} : vector<24x128xf32> to vector<1x128xf32>
    %1253 = tpu.concatenate %1251, %1252 in 0 : vector<23x128xf32>, vector<1x128xf32> -> vector<24x128xf32>
    %1254 = vector.extract_strided_slice %1253 {offsets = [0, 127], sizes = [24, 1], strides = [1, 1]} : vector<24x128xf32> to vector<24x1xf32>
    %1255 = vector.extract_strided_slice %1253 {offsets = [0, 0], sizes = [24, 127], strides = [1, 1]} : vector<24x128xf32> to vector<24x127xf32>
    %1256 = tpu.concatenate %1254, %1255 in 1 : vector<24x1xf32>, vector<24x127xf32> -> vector<24x128xf32>
    %c6_124 = arith.constant 6 : index
    %1257 = memref.load %arg4[%c6_124] : memref<144xf32, #tpu.memory_space<smem>>
    %1258 = vector.broadcast %1257 : f32 to vector<24x128xf32>
    %1259 = arith.mulf %1258, %1238 : vector<24x128xf32>
    %1260 = arith.addf %1184, %1259 : vector<24x128xf32>
    %c15_125 = arith.constant 15 : index
    %1261 = memref.load %arg4[%c15_125] : memref<144xf32, #tpu.memory_space<smem>>
    %1262 = vector.broadcast %1261 : f32 to vector<24x128xf32>
    %1263 = arith.mulf %1262, %1244 : vector<24x128xf32>
    %1264 = arith.addf %1260, %1263 : vector<24x128xf32>
    %c24_126 = arith.constant 24 : index
    %1265 = memref.load %arg4[%c24_126] : memref<144xf32, #tpu.memory_space<smem>>
    %1266 = vector.broadcast %1265 : f32 to vector<24x128xf32>
    %1267 = arith.mulf %1266, %1250 : vector<24x128xf32>
    %1268 = arith.addf %1264, %1267 : vector<24x128xf32>
    %c33_127 = arith.constant 33 : index
    %1269 = memref.load %arg4[%c33_127] : memref<144xf32, #tpu.memory_space<smem>>
    %1270 = vector.broadcast %1269 : f32 to vector<24x128xf32>
    %1271 = arith.mulf %1270, %1256 : vector<24x128xf32>
    %1272 = arith.addf %1268, %1271 : vector<24x128xf32>
    %c42_128 = arith.constant 42 : index
    %1273 = memref.load %arg4[%c42_128] : memref<144xf32, #tpu.memory_space<smem>>
    %1274 = vector.broadcast %1273 : f32 to vector<24x128xf32>
    %1275 = arith.mulf %1274, %1238 : vector<24x128xf32>
    %1276 = arith.addf %1200, %1275 : vector<24x128xf32>
    %c51_129 = arith.constant 51 : index
    %1277 = memref.load %arg4[%c51_129] : memref<144xf32, #tpu.memory_space<smem>>
    %1278 = vector.broadcast %1277 : f32 to vector<24x128xf32>
    %1279 = arith.mulf %1278, %1244 : vector<24x128xf32>
    %1280 = arith.addf %1276, %1279 : vector<24x128xf32>
    %c60_130 = arith.constant 60 : index
    %1281 = memref.load %arg4[%c60_130] : memref<144xf32, #tpu.memory_space<smem>>
    %1282 = vector.broadcast %1281 : f32 to vector<24x128xf32>
    %1283 = arith.mulf %1282, %1250 : vector<24x128xf32>
    %1284 = arith.addf %1280, %1283 : vector<24x128xf32>
    %c69_131 = arith.constant 69 : index
    %1285 = memref.load %arg4[%c69_131] : memref<144xf32, #tpu.memory_space<smem>>
    %1286 = vector.broadcast %1285 : f32 to vector<24x128xf32>
    %1287 = arith.mulf %1286, %1256 : vector<24x128xf32>
    %1288 = arith.addf %1284, %1287 : vector<24x128xf32>
    %c78_132 = arith.constant 78 : index
    %1289 = memref.load %arg4[%c78_132] : memref<144xf32, #tpu.memory_space<smem>>
    %1290 = vector.broadcast %1289 : f32 to vector<24x128xf32>
    %1291 = arith.mulf %1290, %1238 : vector<24x128xf32>
    %1292 = arith.addf %1216, %1291 : vector<24x128xf32>
    %c87_133 = arith.constant 87 : index
    %1293 = memref.load %arg4[%c87_133] : memref<144xf32, #tpu.memory_space<smem>>
    %1294 = vector.broadcast %1293 : f32 to vector<24x128xf32>
    %1295 = arith.mulf %1294, %1244 : vector<24x128xf32>
    %1296 = arith.addf %1292, %1295 : vector<24x128xf32>
    %c96_134 = arith.constant 96 : index
    %1297 = memref.load %arg4[%c96_134] : memref<144xf32, #tpu.memory_space<smem>>
    %1298 = vector.broadcast %1297 : f32 to vector<24x128xf32>
    %1299 = arith.mulf %1298, %1250 : vector<24x128xf32>
    %1300 = arith.addf %1296, %1299 : vector<24x128xf32>
    %c105_135 = arith.constant 105 : index
    %1301 = memref.load %arg4[%c105_135] : memref<144xf32, #tpu.memory_space<smem>>
    %1302 = vector.broadcast %1301 : f32 to vector<24x128xf32>
    %1303 = arith.mulf %1302, %1256 : vector<24x128xf32>
    %1304 = arith.addf %1300, %1303 : vector<24x128xf32>
    %c114_136 = arith.constant 114 : index
    %1305 = memref.load %arg4[%c114_136] : memref<144xf32, #tpu.memory_space<smem>>
    %1306 = vector.broadcast %1305 : f32 to vector<24x128xf32>
    %1307 = arith.mulf %1306, %1238 : vector<24x128xf32>
    %1308 = arith.addf %1232, %1307 : vector<24x128xf32>
    %c123_137 = arith.constant 123 : index
    %1309 = memref.load %arg4[%c123_137] : memref<144xf32, #tpu.memory_space<smem>>
    %1310 = vector.broadcast %1309 : f32 to vector<24x128xf32>
    %1311 = arith.mulf %1310, %1244 : vector<24x128xf32>
    %1312 = arith.addf %1308, %1311 : vector<24x128xf32>
    %c132_138 = arith.constant 132 : index
    %1313 = memref.load %arg4[%c132_138] : memref<144xf32, #tpu.memory_space<smem>>
    %1314 = vector.broadcast %1313 : f32 to vector<24x128xf32>
    %1315 = arith.mulf %1314, %1250 : vector<24x128xf32>
    %1316 = arith.addf %1312, %1315 : vector<24x128xf32>
    %c141_139 = arith.constant 141 : index
    %1317 = memref.load %arg4[%c141_139] : memref<144xf32, #tpu.memory_space<smem>>
    %1318 = vector.broadcast %1317 : f32 to vector<24x128xf32>
    %1319 = arith.mulf %1318, %1256 : vector<24x128xf32>
    %1320 = arith.addf %1316, %1319 : vector<24x128xf32>
    %1321 = vector.extract_strided_slice %747 {offsets = [1, 0], sizes = [23, 128], strides = [1, 1]} : vector<24x128xf32> to vector<23x128xf32>
    %1322 = vector.extract_strided_slice %747 {offsets = [0, 0], sizes = [1, 128], strides = [1, 1]} : vector<24x128xf32> to vector<1x128xf32>
    %1323 = tpu.concatenate %1321, %1322 in 0 : vector<23x128xf32>, vector<1x128xf32> -> vector<24x128xf32>
    %1324 = vector.extract_strided_slice %750 {offsets = [1, 0], sizes = [23, 128], strides = [1, 1]} : vector<24x128xf32> to vector<23x128xf32>
    %1325 = vector.extract_strided_slice %750 {offsets = [0, 0], sizes = [1, 128], strides = [1, 1]} : vector<24x128xf32> to vector<1x128xf32>
    %1326 = tpu.concatenate %1324, %1325 in 0 : vector<23x128xf32>, vector<1x128xf32> -> vector<24x128xf32>
    %1327 = vector.extract_strided_slice %753 {offsets = [1, 0], sizes = [23, 128], strides = [1, 1]} : vector<24x128xf32> to vector<23x128xf32>
    %1328 = vector.extract_strided_slice %753 {offsets = [0, 0], sizes = [1, 128], strides = [1, 1]} : vector<24x128xf32> to vector<1x128xf32>
    %1329 = tpu.concatenate %1327, %1328 in 0 : vector<23x128xf32>, vector<1x128xf32> -> vector<24x128xf32>
    %1330 = vector.extract_strided_slice %756 {offsets = [1, 0], sizes = [23, 128], strides = [1, 1]} : vector<24x128xf32> to vector<23x128xf32>
    %1331 = vector.extract_strided_slice %756 {offsets = [0, 0], sizes = [1, 128], strides = [1, 1]} : vector<24x128xf32> to vector<1x128xf32>
    %1332 = tpu.concatenate %1330, %1331 in 0 : vector<23x128xf32>, vector<1x128xf32> -> vector<24x128xf32>
    %c7_140 = arith.constant 7 : index
    %1333 = memref.load %arg4[%c7_140] : memref<144xf32, #tpu.memory_space<smem>>
    %1334 = vector.broadcast %1333 : f32 to vector<24x128xf32>
    %1335 = arith.mulf %1334, %1323 : vector<24x128xf32>
    %1336 = arith.addf %1272, %1335 : vector<24x128xf32>
    %c16_141 = arith.constant 16 : index
    %1337 = memref.load %arg4[%c16_141] : memref<144xf32, #tpu.memory_space<smem>>
    %1338 = vector.broadcast %1337 : f32 to vector<24x128xf32>
    %1339 = arith.mulf %1338, %1326 : vector<24x128xf32>
    %1340 = arith.addf %1336, %1339 : vector<24x128xf32>
    %c25_142 = arith.constant 25 : index
    %1341 = memref.load %arg4[%c25_142] : memref<144xf32, #tpu.memory_space<smem>>
    %1342 = vector.broadcast %1341 : f32 to vector<24x128xf32>
    %1343 = arith.mulf %1342, %1329 : vector<24x128xf32>
    %1344 = arith.addf %1340, %1343 : vector<24x128xf32>
    %c34_143 = arith.constant 34 : index
    %1345 = memref.load %arg4[%c34_143] : memref<144xf32, #tpu.memory_space<smem>>
    %1346 = vector.broadcast %1345 : f32 to vector<24x128xf32>
    %1347 = arith.mulf %1346, %1332 : vector<24x128xf32>
    %1348 = arith.addf %1344, %1347 : vector<24x128xf32>
    %c43_144 = arith.constant 43 : index
    %1349 = memref.load %arg4[%c43_144] : memref<144xf32, #tpu.memory_space<smem>>
    %1350 = vector.broadcast %1349 : f32 to vector<24x128xf32>
    %1351 = arith.mulf %1350, %1323 : vector<24x128xf32>
    %1352 = arith.addf %1288, %1351 : vector<24x128xf32>
    %c52_145 = arith.constant 52 : index
    %1353 = memref.load %arg4[%c52_145] : memref<144xf32, #tpu.memory_space<smem>>
    %1354 = vector.broadcast %1353 : f32 to vector<24x128xf32>
    %1355 = arith.mulf %1354, %1326 : vector<24x128xf32>
    %1356 = arith.addf %1352, %1355 : vector<24x128xf32>
    %c61_146 = arith.constant 61 : index
    %1357 = memref.load %arg4[%c61_146] : memref<144xf32, #tpu.memory_space<smem>>
    %1358 = vector.broadcast %1357 : f32 to vector<24x128xf32>
    %1359 = arith.mulf %1358, %1329 : vector<24x128xf32>
    %1360 = arith.addf %1356, %1359 : vector<24x128xf32>
    %c70_147 = arith.constant 70 : index
    %1361 = memref.load %arg4[%c70_147] : memref<144xf32, #tpu.memory_space<smem>>
    %1362 = vector.broadcast %1361 : f32 to vector<24x128xf32>
    %1363 = arith.mulf %1362, %1332 : vector<24x128xf32>
    %1364 = arith.addf %1360, %1363 : vector<24x128xf32>
    %c79_148 = arith.constant 79 : index
    %1365 = memref.load %arg4[%c79_148] : memref<144xf32, #tpu.memory_space<smem>>
    %1366 = vector.broadcast %1365 : f32 to vector<24x128xf32>
    %1367 = arith.mulf %1366, %1323 : vector<24x128xf32>
    %1368 = arith.addf %1304, %1367 : vector<24x128xf32>
    %c88_149 = arith.constant 88 : index
    %1369 = memref.load %arg4[%c88_149] : memref<144xf32, #tpu.memory_space<smem>>
    %1370 = vector.broadcast %1369 : f32 to vector<24x128xf32>
    %1371 = arith.mulf %1370, %1326 : vector<24x128xf32>
    %1372 = arith.addf %1368, %1371 : vector<24x128xf32>
    %c97_150 = arith.constant 97 : index
    %1373 = memref.load %arg4[%c97_150] : memref<144xf32, #tpu.memory_space<smem>>
    %1374 = vector.broadcast %1373 : f32 to vector<24x128xf32>
    %1375 = arith.mulf %1374, %1329 : vector<24x128xf32>
    %1376 = arith.addf %1372, %1375 : vector<24x128xf32>
    %c106_151 = arith.constant 106 : index
    %1377 = memref.load %arg4[%c106_151] : memref<144xf32, #tpu.memory_space<smem>>
    %1378 = vector.broadcast %1377 : f32 to vector<24x128xf32>
    %1379 = arith.mulf %1378, %1332 : vector<24x128xf32>
    %1380 = arith.addf %1376, %1379 : vector<24x128xf32>
    %c115_152 = arith.constant 115 : index
    %1381 = memref.load %arg4[%c115_152] : memref<144xf32, #tpu.memory_space<smem>>
    %1382 = vector.broadcast %1381 : f32 to vector<24x128xf32>
    %1383 = arith.mulf %1382, %1323 : vector<24x128xf32>
    %1384 = arith.addf %1320, %1383 : vector<24x128xf32>
    %c124_153 = arith.constant 124 : index
    %1385 = memref.load %arg4[%c124_153] : memref<144xf32, #tpu.memory_space<smem>>
    %1386 = vector.broadcast %1385 : f32 to vector<24x128xf32>
    %1387 = arith.mulf %1386, %1326 : vector<24x128xf32>
    %1388 = arith.addf %1384, %1387 : vector<24x128xf32>
    %c133_154 = arith.constant 133 : index
    %1389 = memref.load %arg4[%c133_154] : memref<144xf32, #tpu.memory_space<smem>>
    %1390 = vector.broadcast %1389 : f32 to vector<24x128xf32>
    %1391 = arith.mulf %1390, %1329 : vector<24x128xf32>
    %1392 = arith.addf %1388, %1391 : vector<24x128xf32>
    %c142_155 = arith.constant 142 : index
    %1393 = memref.load %arg4[%c142_155] : memref<144xf32, #tpu.memory_space<smem>>
    %1394 = vector.broadcast %1393 : f32 to vector<24x128xf32>
    %1395 = arith.mulf %1394, %1332 : vector<24x128xf32>
    %1396 = arith.addf %1392, %1395 : vector<24x128xf32>
    %1397 = vector.extract_strided_slice %747 {offsets = [1, 0], sizes = [23, 128], strides = [1, 1]} : vector<24x128xf32> to vector<23x128xf32>
    %1398 = vector.extract_strided_slice %747 {offsets = [0, 0], sizes = [1, 128], strides = [1, 1]} : vector<24x128xf32> to vector<1x128xf32>
    %1399 = tpu.concatenate %1397, %1398 in 0 : vector<23x128xf32>, vector<1x128xf32> -> vector<24x128xf32>
    %1400 = vector.extract_strided_slice %1399 {offsets = [0, 1], sizes = [24, 127], strides = [1, 1]} : vector<24x128xf32> to vector<24x127xf32>
    %1401 = vector.extract_strided_slice %1399 {offsets = [0, 0], sizes = [24, 1], strides = [1, 1]} : vector<24x128xf32> to vector<24x1xf32>
    %1402 = tpu.concatenate %1400, %1401 in 1 : vector<24x127xf32>, vector<24x1xf32> -> vector<24x128xf32>
    %1403 = vector.extract_strided_slice %750 {offsets = [1, 0], sizes = [23, 128], strides = [1, 1]} : vector<24x128xf32> to vector<23x128xf32>
    %1404 = vector.extract_strided_slice %750 {offsets = [0, 0], sizes = [1, 128], strides = [1, 1]} : vector<24x128xf32> to vector<1x128xf32>
    %1405 = tpu.concatenate %1403, %1404 in 0 : vector<23x128xf32>, vector<1x128xf32> -> vector<24x128xf32>
    %1406 = vector.extract_strided_slice %1405 {offsets = [0, 1], sizes = [24, 127], strides = [1, 1]} : vector<24x128xf32> to vector<24x127xf32>
    %1407 = vector.extract_strided_slice %1405 {offsets = [0, 0], sizes = [24, 1], strides = [1, 1]} : vector<24x128xf32> to vector<24x1xf32>
    %1408 = tpu.concatenate %1406, %1407 in 1 : vector<24x127xf32>, vector<24x1xf32> -> vector<24x128xf32>
    %1409 = vector.extract_strided_slice %753 {offsets = [1, 0], sizes = [23, 128], strides = [1, 1]} : vector<24x128xf32> to vector<23x128xf32>
    %1410 = vector.extract_strided_slice %753 {offsets = [0, 0], sizes = [1, 128], strides = [1, 1]} : vector<24x128xf32> to vector<1x128xf32>
    %1411 = tpu.concatenate %1409, %1410 in 0 : vector<23x128xf32>, vector<1x128xf32> -> vector<24x128xf32>
    %1412 = vector.extract_strided_slice %1411 {offsets = [0, 1], sizes = [24, 127], strides = [1, 1]} : vector<24x128xf32> to vector<24x127xf32>
    %1413 = vector.extract_strided_slice %1411 {offsets = [0, 0], sizes = [24, 1], strides = [1, 1]} : vector<24x128xf32> to vector<24x1xf32>
    %1414 = tpu.concatenate %1412, %1413 in 1 : vector<24x127xf32>, vector<24x1xf32> -> vector<24x128xf32>
    %1415 = vector.extract_strided_slice %756 {offsets = [1, 0], sizes = [23, 128], strides = [1, 1]} : vector<24x128xf32> to vector<23x128xf32>
    %1416 = vector.extract_strided_slice %756 {offsets = [0, 0], sizes = [1, 128], strides = [1, 1]} : vector<24x128xf32> to vector<1x128xf32>
    %1417 = tpu.concatenate %1415, %1416 in 0 : vector<23x128xf32>, vector<1x128xf32> -> vector<24x128xf32>
    %1418 = vector.extract_strided_slice %1417 {offsets = [0, 1], sizes = [24, 127], strides = [1, 1]} : vector<24x128xf32> to vector<24x127xf32>
    %1419 = vector.extract_strided_slice %1417 {offsets = [0, 0], sizes = [24, 1], strides = [1, 1]} : vector<24x128xf32> to vector<24x1xf32>
    %1420 = tpu.concatenate %1418, %1419 in 1 : vector<24x127xf32>, vector<24x1xf32> -> vector<24x128xf32>
    %c8_156 = arith.constant 8 : index
    %1421 = memref.load %arg4[%c8_156] : memref<144xf32, #tpu.memory_space<smem>>
    %1422 = vector.broadcast %1421 : f32 to vector<24x128xf32>
    %1423 = arith.mulf %1422, %1402 : vector<24x128xf32>
    %1424 = arith.addf %1348, %1423 : vector<24x128xf32>
    %c17_157 = arith.constant 17 : index
    %1425 = memref.load %arg4[%c17_157] : memref<144xf32, #tpu.memory_space<smem>>
    %1426 = vector.broadcast %1425 : f32 to vector<24x128xf32>
    %1427 = arith.mulf %1426, %1408 : vector<24x128xf32>
    %1428 = arith.addf %1424, %1427 : vector<24x128xf32>
    %c26_158 = arith.constant 26 : index
    %1429 = memref.load %arg4[%c26_158] : memref<144xf32, #tpu.memory_space<smem>>
    %1430 = vector.broadcast %1429 : f32 to vector<24x128xf32>
    %1431 = arith.mulf %1430, %1414 : vector<24x128xf32>
    %1432 = arith.addf %1428, %1431 : vector<24x128xf32>
    %c35_159 = arith.constant 35 : index
    %1433 = memref.load %arg4[%c35_159] : memref<144xf32, #tpu.memory_space<smem>>
    %1434 = vector.broadcast %1433 : f32 to vector<24x128xf32>
    %1435 = arith.mulf %1434, %1420 : vector<24x128xf32>
    %1436 = arith.addf %1432, %1435 : vector<24x128xf32>
    %c44_160 = arith.constant 44 : index
    %1437 = memref.load %arg4[%c44_160] : memref<144xf32, #tpu.memory_space<smem>>
    %1438 = vector.broadcast %1437 : f32 to vector<24x128xf32>
    %1439 = arith.mulf %1438, %1402 : vector<24x128xf32>
    %1440 = arith.addf %1364, %1439 : vector<24x128xf32>
    %c53_161 = arith.constant 53 : index
    %1441 = memref.load %arg4[%c53_161] : memref<144xf32, #tpu.memory_space<smem>>
    %1442 = vector.broadcast %1441 : f32 to vector<24x128xf32>
    %1443 = arith.mulf %1442, %1408 : vector<24x128xf32>
    %1444 = arith.addf %1440, %1443 : vector<24x128xf32>
    %c62_162 = arith.constant 62 : index
    %1445 = memref.load %arg4[%c62_162] : memref<144xf32, #tpu.memory_space<smem>>
    %1446 = vector.broadcast %1445 : f32 to vector<24x128xf32>
    %1447 = arith.mulf %1446, %1414 : vector<24x128xf32>
    %1448 = arith.addf %1444, %1447 : vector<24x128xf32>
    %c71_163 = arith.constant 71 : index
    %1449 = memref.load %arg4[%c71_163] : memref<144xf32, #tpu.memory_space<smem>>
    %1450 = vector.broadcast %1449 : f32 to vector<24x128xf32>
    %1451 = arith.mulf %1450, %1420 : vector<24x128xf32>
    %1452 = arith.addf %1448, %1451 : vector<24x128xf32>
    %c80_164 = arith.constant 80 : index
    %1453 = memref.load %arg4[%c80_164] : memref<144xf32, #tpu.memory_space<smem>>
    %1454 = vector.broadcast %1453 : f32 to vector<24x128xf32>
    %1455 = arith.mulf %1454, %1402 : vector<24x128xf32>
    %1456 = arith.addf %1380, %1455 : vector<24x128xf32>
    %c89_165 = arith.constant 89 : index
    %1457 = memref.load %arg4[%c89_165] : memref<144xf32, #tpu.memory_space<smem>>
    %1458 = vector.broadcast %1457 : f32 to vector<24x128xf32>
    %1459 = arith.mulf %1458, %1408 : vector<24x128xf32>
    %1460 = arith.addf %1456, %1459 : vector<24x128xf32>
    %c98_166 = arith.constant 98 : index
    %1461 = memref.load %arg4[%c98_166] : memref<144xf32, #tpu.memory_space<smem>>
    %1462 = vector.broadcast %1461 : f32 to vector<24x128xf32>
    %1463 = arith.mulf %1462, %1414 : vector<24x128xf32>
    %1464 = arith.addf %1460, %1463 : vector<24x128xf32>
    %c107_167 = arith.constant 107 : index
    %1465 = memref.load %arg4[%c107_167] : memref<144xf32, #tpu.memory_space<smem>>
    %1466 = vector.broadcast %1465 : f32 to vector<24x128xf32>
    %1467 = arith.mulf %1466, %1420 : vector<24x128xf32>
    %1468 = arith.addf %1464, %1467 : vector<24x128xf32>
    %c116_168 = arith.constant 116 : index
    %1469 = memref.load %arg4[%c116_168] : memref<144xf32, #tpu.memory_space<smem>>
    %1470 = vector.broadcast %1469 : f32 to vector<24x128xf32>
    %1471 = arith.mulf %1470, %1402 : vector<24x128xf32>
    %1472 = arith.addf %1396, %1471 : vector<24x128xf32>
    %c125_169 = arith.constant 125 : index
    %1473 = memref.load %arg4[%c125_169] : memref<144xf32, #tpu.memory_space<smem>>
    %1474 = vector.broadcast %1473 : f32 to vector<24x128xf32>
    %1475 = arith.mulf %1474, %1408 : vector<24x128xf32>
    %1476 = arith.addf %1472, %1475 : vector<24x128xf32>
    %c134_170 = arith.constant 134 : index
    %1477 = memref.load %arg4[%c134_170] : memref<144xf32, #tpu.memory_space<smem>>
    %1478 = vector.broadcast %1477 : f32 to vector<24x128xf32>
    %1479 = arith.mulf %1478, %1414 : vector<24x128xf32>
    %1480 = arith.addf %1476, %1479 : vector<24x128xf32>
    %c143_171 = arith.constant 143 : index
    %1481 = memref.load %arg4[%c143_171] : memref<144xf32, #tpu.memory_space<smem>>
    %1482 = vector.broadcast %1481 : f32 to vector<24x128xf32>
    %1483 = arith.mulf %1482, %1420 : vector<24x128xf32>
    %1484 = arith.addf %1480, %1483 : vector<24x128xf32>
    %c0_172 = arith.constant 0 : index
    %c0_173 = arith.constant 0 : index
    %c0_174 = arith.constant 0 : index
    %c0_175 = arith.constant 0 : index
    %1485 = vector.load %arg1[%c0_172, %c0_173, %c0_174, %c0_175] : memref<1x4x24x128xf32, #tpu.memory_space<vmem>>, vector<1x1x16x128xf32>
    %1486 = vector.shape_cast %1485 : vector<1x1x16x128xf32> to vector<16x128xf32>
    %1487 = vector.extract_strided_slice %1436 {offsets = [0, 0], sizes = [16, 128], strides = [1, 1]} : vector<24x128xf32> to vector<16x128xf32>
    %1488 = arith.addf %1487, %1486 : vector<16x128xf32>
    %c0_176 = arith.constant 0 : index
    %c0_177 = arith.constant 0 : index
    %c0_178 = arith.constant 0 : index
    %c0_179 = arith.constant 0 : index
    %1489 = vector.load %arg6[%c0_176, %c0_177, %c0_178, %c0_179] : memref<1x4x16x128xf32, #tpu.memory_space<vmem>>, vector<1x1x16x128xf32>
    %1490 = vector.shape_cast %1489 : vector<1x1x16x128xf32> to vector<16x128xf32>
    %1491 = vector.shape_cast %1488 : vector<16x128xf32> to vector<1x1x16x128xf32>
    tpu.vector_store %arg6[%c0_176, %c0_177, %c0_178, %c0_179], %1491 {strides = array<i32>} : memref<1x4x16x128xf32, #tpu.memory_space<vmem>>, vector<1x1x16x128xf32>,
    %c0_180 = arith.constant 0 : index
    %c1_181 = arith.constant 1 : index
    %c0_182 = arith.constant 0 : index
    %c0_183 = arith.constant 0 : index
    %1492 = vector.load %arg1[%c0_180, %c1_181, %c0_182, %c0_183] : memref<1x4x24x128xf32, #tpu.memory_space<vmem>>, vector<1x1x16x128xf32>
    %1493 = vector.shape_cast %1492 : vector<1x1x16x128xf32> to vector<16x128xf32>
    %1494 = vector.extract_strided_slice %1452 {offsets = [0, 0], sizes = [16, 128], strides = [1, 1]} : vector<24x128xf32> to vector<16x128xf32>
    %1495 = arith.addf %1494, %1493 : vector<16x128xf32>
    %c0_184 = arith.constant 0 : index
    %c1_185 = arith.constant 1 : index
    %c0_186 = arith.constant 0 : index
    %c0_187 = arith.constant 0 : index
    %1496 = vector.load %arg6[%c0_184, %c1_185, %c0_186, %c0_187] : memref<1x4x16x128xf32, #tpu.memory_space<vmem>>, vector<1x1x16x128xf32>
    %1497 = vector.shape_cast %1496 : vector<1x1x16x128xf32> to vector<16x128xf32>
    %1498 = vector.shape_cast %1495 : vector<16x128xf32> to vector<1x1x16x128xf32>
    tpu.vector_store %arg6[%c0_184, %c1_185, %c0_186, %c0_187], %1498 {strides = array<i32>} : memref<1x4x16x128xf32, #tpu.memory_space<vmem>>, vector<1x1x16x128xf32>,
    %c0_188 = arith.constant 0 : index
    %c2_189 = arith.constant 2 : index
    %c0_190 = arith.constant 0 : index
    %c0_191 = arith.constant 0 : index
    %1499 = vector.load %arg1[%c0_188, %c2_189, %c0_190, %c0_191] : memref<1x4x24x128xf32, #tpu.memory_space<vmem>>, vector<1x1x16x128xf32>
    %1500 = vector.shape_cast %1499 : vector<1x1x16x128xf32> to vector<16x128xf32>
    %1501 = vector.extract_strided_slice %1468 {offsets = [0, 0], sizes = [16, 128], strides = [1, 1]} : vector<24x128xf32> to vector<16x128xf32>
    %1502 = arith.addf %1501, %1500 : vector<16x128xf32>
    %c0_192 = arith.constant 0 : index
    %c2_193 = arith.constant 2 : index
    %c0_194 = arith.constant 0 : index
    %c0_195 = arith.constant 0 : index
    %1503 = vector.load %arg6[%c0_192, %c2_193, %c0_194, %c0_195] : memref<1x4x16x128xf32, #tpu.memory_space<vmem>>, vector<1x1x16x128xf32>
    %1504 = vector.shape_cast %1503 : vector<1x1x16x128xf32> to vector<16x128xf32>
    %1505 = vector.shape_cast %1502 : vector<16x128xf32> to vector<1x1x16x128xf32>
    tpu.vector_store %arg6[%c0_192, %c2_193, %c0_194, %c0_195], %1505 {strides = array<i32>} : memref<1x4x16x128xf32, #tpu.memory_space<vmem>>, vector<1x1x16x128xf32>,
    %c0_196 = arith.constant 0 : index
    %c3_197 = arith.constant 3 : index
    %c0_198 = arith.constant 0 : index
    %c0_199 = arith.constant 0 : index
    %1506 = vector.load %arg1[%c0_196, %c3_197, %c0_198, %c0_199] : memref<1x4x24x128xf32, #tpu.memory_space<vmem>>, vector<1x1x16x128xf32>
    %1507 = vector.shape_cast %1506 : vector<1x1x16x128xf32> to vector<16x128xf32>
    %1508 = vector.extract_strided_slice %1484 {offsets = [0, 0], sizes = [16, 128], strides = [1, 1]} : vector<24x128xf32> to vector<16x128xf32>
    %1509 = arith.addf %1508, %1507 : vector<16x128xf32>
    %c0_200 = arith.constant 0 : index
    %c3_201 = arith.constant 3 : index
    %c0_202 = arith.constant 0 : index
    %c0_203 = arith.constant 0 : index
    %1510 = vector.load %arg6[%c0_200, %c3_201, %c0_202, %c0_203] : memref<1x4x16x128xf32, #tpu.memory_space<vmem>>, vector<1x1x16x128xf32>
    %1511 = vector.shape_cast %1510 : vector<1x1x16x128xf32> to vector<16x128xf32>
    %1512 = vector.shape_cast %1509 : vector<16x128xf32> to vector<1x1x16x128xf32>
    tpu.vector_store %arg6[%c0_200, %c3_201, %c0_202, %c0_203], %1512 {strides = array<i32>} : memref<1x4x16x128xf32, #tpu.memory_space<vmem>>, vector<1x1x16x128xf32>,
    return
  }
  func.func @transform_0(%arg0: i32) -> (i32, i32, i32, i32) {
    %c0_i32 = arith.constant 0 : i32
    %c0_i32_0 = arith.constant 0 : i32
    %c0_i32_1 = arith.constant 0 : i32
    %c0_i32_2 = arith.constant 0 : i32
    return %arg0, %c0_i32, %c0_i32_0, %c0_i32_1 : i32, i32, i32, i32
  }
  func.func @transform_1(%arg0: i32) -> i32 {
    %c0_i32 = arith.constant 0 : i32
    %c0_i32_0 = arith.constant 0 : i32
    return %c0_i32 : i32
  }
  func.func @transform_2(%arg0: i32) -> i32 {
    %c0_i32 = arith.constant 0 : i32
    %c0_i32_0 = arith.constant 0 : i32
    return %c0_i32 : i32
  }
  func.func @transform_3(%arg0: i32) -> i32 {
    %c0_i32 = arith.constant 0 : i32
    %c0_i32_0 = arith.constant 0 : i32
    return %c0_i32 : i32
  }
  func.func @transform_4(%arg0: i32) -> i32 {
    %c0_i32 = arith.constant 0 : i32
    %c0_i32_0 = arith.constant 0 : i32
    return %c0_i32 : i32
  }
  func.func @transform_5(%arg0: i32) -> (i32, i32, i32, i32) {
    %c0_i32 = arith.constant 0 : i32
    %c0_i32_0 = arith.constant 0 : i32
    %c0_i32_1 = arith.constant 0 : i32
    %c0_i32_2 = arith.constant 0 : i32
    return %arg0, %c0_i32, %c0_i32_0, %c0_i32_1 : i32, i32, i32, i32
  }
}

</mosaic_0001>

<llo_original>
// kernel: residual_forward.1
$region0: #{residual_forward.1}
  #allocation0 [shape = 'u32[]', space=smem, size = 0x4, offset = 0x4, fixed_abs, tag = 'smem constant byte address 0x4 - core index']
  #allocation1 [shape = 'u32[144,128]{1,0:T(1,128)}', space=vmem, size = 0x12000, scoped, tag = 'internal scratch']
  %s0 = inlined_call_operand.vmem [shape: f32[2,4,24,128], index: 0, kind: input, shape index: {}]
  %s1 = inlined_call_operand.vmem [shape: f32[144], index: 1, kind: input, shape index: {}]
  %s2 = inlined_call_operand.vmem [shape: f32[4], index: 2, kind: input, shape index: {}]
  %s3 = inlined_call_operand.vmem [shape: f32[144], index: 3, kind: input, shape index: {}]
  %s4 = inlined_call_operand.vmem [shape: f32[4], index: 4, kind: input, shape index: {}]
  %s5 = inlined_call_operand.hbm [shape: f32[2,4,16,128], index: 5, kind: output, shape index: {}]
  %s6 = sld [smem:[#allocation0]]
  $region69: #{residual_forward.1} parent=0
    _
  %s8 = ssub.s32 1, %s6
  %s9 = scalar_select 0, %s8, %s6
  $region1: #{residual_forward.1} parent=0
    #allocation2 [shape = 'u8[1024]{0}', space=smem, size = 0x400, scoped, tag = 'input window, operand 1, single buffered']
    #allocation3 [shape = 's32[2]{0}', space=sflag, size = 0x8, scoped, tag = 'scoped memory for residual_forward.1']
    #allocation4 [shape = 's32[2]{0}', space=sflag, size = 0x8, scoped, tag = 'scoped memory for residual_forward.1']
    #allocation5 [shape = 'u8[512]{0}', space=smem, size = 0x200, scoped, tag = 'input window, operand 2, single buffered']
    #allocation6 [shape = 's32[1]{0}', space=sflag, size = 0x4, scoped, tag = 'scoped memory for residual_forward.1']
    #allocation7 [shape = 'u8[1024]{0}', space=smem, size = 0x400, scoped, tag = 'input window, operand 3, single buffered']
    #allocation8 [shape = 'u8[512]{0}', space=smem, size = 0x200, scoped, tag = 'input window, operand 4, single buffered']
    #allocation9 [shape = 's32[1]{0}', space=sflag, size = 0x4, scoped, tag = 'scoped memory for residual_forward.1']
    #allocation10 [shape = 'u8[65536]{0}', space=vmem, size = 0x10000, scoped, tag = 'output window, operand 0']
    %10 = vsyncpa [#allocation4], 0
    %11 = vsyncpa [#allocation6], 0
    %12 = vsyncpa [#allocation9], 0
    %13 = vsyncpa [#allocation3], 0
    %s14 = scalar_lea.sflag [#allocation3], 1
    %15 = vsyncpa %s14, 0
    loop: start=0, step=1, limit=4
    $region2: #{residual_forward.1} parent=1 // loop_pre_header
      _
    $region3: #{residual_forward.1} parent=1 // loop_header
      %s17 = sphi 0, %s21
      %p18 = scmp.ge.s32.totalorder %s17, 4
      %s27 = sphi 0, %s29
      %s30 = sphi 0, %s27
      %s31 = sphi 0, %s30
      %s47 = sphi 0, %s31
      %s51 = sphi 0, %s51
      %s53 = sphi 0, %s51
      %s54 = sphi 0, %s53
      %s68 = sphi 0, %s54
      %s72 = sphi 0, %s72
      %s74 = sphi 0, %s72
      %s75 = sphi 0, %s74
      %s89 = sphi 0, %s75
      %s93 = sphi 0, %s93
      %s95 = sphi 0, %s93
      %s96 = sphi 0, %s95
      %s110 = sphi 0, %s96
      %s114 = sphi 0, %s114
      %s116 = sphi 0, %s114
      %s117 = sphi 0, %s116
      %s131 = sphi 0, %s117
      %s137 = sphi 0, %s139
      %s140 = sphi 0, %s137
      %s141 = sphi 0, %s140
      %s157 = sphi 0, %s141
    $region4: #{residual_forward.1} parent=1 // loop_header_branch
      %20 = sbr.rel (%p18) target = $region8
    $region5: #{residual_forward.1} parent=1 // loop_body
      %s22 = ssub.s32 %s17, 1
      %s23 = ssub.s32 %s17, 2
      %s24 = sadd.s32 %s17, 1
      %s25 = ssub.s32 %s17, %s24
      %p26 = scmp.eq.s32.totalorder %s25, 0
      %s28 = sadd.s32 %s27, 1
      %s29 = scalar_select %p26, %s27, %s28
      %p32 = pneg %p26
      %p33 = scmp.eq.s32.totalorder %s17, 1
      %p34 = por %p32, %p33
      %p35 = scmp.ne.s32.totalorder %s27, %s30
      %p36 = scmp.eq.s32.totalorder %s17, 0
      %p37 = por %p35, %p36
      %p38 = scmp.ne.s32.totalorder %s27, %s30
      %p39 = scmp.eq.s32.totalorder %s22, 1
      %p40 = por %p38, %p39
      %p41 = scmp.ne.s32.totalorder %s30, %s31
      %p42 = scmp.eq.s32.totalorder %s22, 0
      %p43 = por %p41, %p42
      %p44 = scmp.ne.s32.totalorder %s30, %s31
      %p45 = scmp.eq.s32.totalorder %s23, 1
      %p46 = por %p44, %p45
      %p48 = scmp.ne.s32.totalorder %s31, %s47
      %p49 = scmp.eq.s32.totalorder %s23, 0
      %p50 = por %p48, %p49
      %s52 = sadd.s32 %s51, 1
      %p55 = scmp.eq.s32.totalorder %s17, 1
      %p56 = scmp.ne.s32.totalorder %s51, %s53
      %p57 = scmp.eq.s32.totalorder %s17, 0
      %p58 = por %p56, %p57
      %p59 = scmp.ne.s32.totalorder %s51, %s53
      %p60 = scmp.eq.s32.totalorder %s22, 1
      %p61 = por %p59, %p60
      %p62 = scmp.ne.s32.totalorder %s53, %s54
      %p63 = scmp.eq.s32.totalorder %s22, 0
      %p64 = por %p62, %p63
      %p65 = scmp.ne.s32.totalorder %s53, %s54
      %p66 = scmp.eq.s32.totalorder %s23, 1
      %p67 = por %p65, %p66
      %p69 = scmp.ne.s32.totalorder %s54, %s68
      %p70 = scmp.eq.s32.totalorder %s23, 0
      %p71 = por %p69, %p70
      %s73 = sadd.s32 %s72, 1
      %p76 = scmp.eq.s32.totalorder %s17, 1
      %p77 = scmp.ne.s32.totalorder %s72, %s74
      %p78 = scmp.eq.s32.totalorder %s17, 0
      %p79 = por %p77, %p78
      %p80 = scmp.ne.s32.totalorder %s72, %s74
      %p81 = scmp.eq.s32.totalorder %s22, 1
      %p82 = por %p80, %p81
      %p83 = scmp.ne.s32.totalorder %s74, %s75
      %p84 = scmp.eq.s32.totalorder %s22, 0
      %p85 = por %p83, %p84
      %p86 = scmp.ne.s32.totalorder %s74, %s75
      %p87 = scmp.eq.s32.totalorder %s23, 1
      %p88 = por %p86, %p87
      %p90 = scmp.ne.s32.totalorder %s75, %s89
      %p91 = scmp.eq.s32.totalorder %s23, 0
      %p92 = por %p90, %p91
      %s94 = sadd.s32 %s93, 1
      %p97 = scmp.eq.s32.totalorder %s17, 1
      %p98 = scmp.ne.s32.totalorder %s93, %s95
      %p99 = scmp.eq.s32.totalorder %s17, 0
      %p100 = por %p98, %p99
      %p101 = scmp.ne.s32.totalorder %s93, %s95
      %p102 = scmp.eq.s32.totalorder %s22, 1
      %p103 = por %p101, %p102
      %p104 = scmp.ne.s32.totalorder %s95, %s96
      %p105 = scmp.eq.s32.totalorder %s22, 0
      %p106 = por %p104, %p105
      %p107 = scmp.ne.s32.totalorder %s95, %s96
      %p108 = scmp.eq.s32.totalorder %s23, 1
      %p109 = por %p107, %p108
      %p111 = scmp.ne.s32.totalorder %s96, %s110
      %p112 = scmp.eq.s32.totalorder %s23, 0
      %p113 = por %p111, %p112
      %s115 = sadd.s32 %s114, 1
      %p118 = scmp.eq.s32.totalorder %s17, 1
      %p119 = scmp.ne.s32.totalorder %s114, %s116
      %p120 = scmp.eq.s32.totalorder %s17, 0
      %p121 = por %p119, %p120
      %p122 = scmp.ne.s32.totalorder %s114, %s116
      %p123 = scmp.eq.s32.totalorder %s22, 1
      %p124 = por %p122, %p123
      %p125 = scmp.ne.s32.totalorder %s116, %s117
      %p126 = scmp.eq.s32.totalorder %s22, 0
      %p127 = por %p125, %p126
      %p128 = scmp.ne.s32.totalorder %s116, %s117
      %p129 = scmp.eq.s32.totalorder %s23, 1
      %p130 = por %p128, %p129
      %p132 = scmp.ne.s32.totalorder %s117, %s131
      %p133 = scmp.eq.s32.totalorder %s23, 0
      %p134 = por %p132, %p133
      %s135 = ssub.s32 %s17, %s24
      %p136 = scmp.eq.s32.totalorder %s135, 0
      %s138 = sadd.s32 %s137, 1
      %s139 = scalar_select %p136, %s137, %s138
      %p142 = pneg %p136
      %p143 = scmp.eq.s32.totalorder %s17, 1
      %p144 = por %p142, %p143
      %p145 = scmp.ne.s32.totalorder %s137, %s140
      %p146 = scmp.eq.s32.totalorder %s17, 0
      %p147 = por %p145, %p146
      %p148 = scmp.ne.s32.totalorder %s137, %s140
      %p149 = scmp.eq.s32.totalorder %s22, 1
      %p150 = por %p148, %p149
      %p151 = scmp.ne.s32.totalorder %s140, %s141
      %p152 = scmp.eq.s32.totalorder %s22, 0
      %p153 = por %p151, %p152
      %p154 = scmp.ne.s32.totalorder %s140, %s141
      %p155 = scmp.eq.s32.totalorder %s23, 1
      %p156 = por %p154, %p155
      %p158 = scmp.ne.s32.totalorder %s141, %s157
      %p159 = scmp.eq.s32.totalorder %s23, 0
      %p160 = por %p158, %p159
      %p161 = scmp.le.s32.totalorder 1, %s17
      %p162 = scmp.lt.s32.totalorder %s17, 3
      %p163 = pnand %p161, %p162
      %p164 = pneg %p163
      // Predicated region
      $region9: #{residual_forward.1} parent=5 // pred_check
        _
      $region10: #{residual_forward.1} parent=5 // pred_check_branch
        %166 = sbr.rel (%p163) target = $region12
      $region11: #{residual_forward.1} parent=5 // pred_region
        %s167 = ssub.s32 %s17, 1
        // Predicated region
        $region13: #{residual_forward.1} parent=11 // pred_check
          %p168 = pneg %p64
        $region14: #{residual_forward.1} parent=11 // pred_check_branch
          %170 = sbr.rel (%p168) target = $region16
        $region15: #{residual_forward.1} parent=11 // pred_region
          %s172 = ssub.s32 32, 32
          %173 = vsyncadd [#allocation4], %s172
          %s175 = sshll.u32 %s1, 4
          %s176 = int_to_ptr.vmem [resolvable:$true] %s175
          %178 = dma.vmem_to_smem %s176, 32, [#allocation2], [#allocation4]
        $region16: #{residual_forward.1} parent=11 // pred_fallthru
          _
        // Predicated region
        $region17: #{residual_forward.1} parent=11 // pred_check
          %p179 = pneg %p85
        $region18: #{residual_forward.1} parent=11 // pred_check_branch
          %181 = sbr.rel (%p179) target = $region20
        $region19: #{residual_forward.1} parent=11 // pred_region
          %s183 = ssub.s32 16, 16
          %184 = vsyncadd [#allocation6], %s183
          %s186 = sshll.u32 %s2, 4
          %s187 = int_to_ptr.vmem [resolvable:$true] %s186
          %189 = dma.vmem_to_smem %s187, 16, [#allocation5], [#allocation6]
        $region20: #{residual_forward.1} parent=11 // pred_fallthru
          _
        // Predicated region
        $region21: #{residual_forward.1} parent=11 // pred_check
          %p190 = pneg %p106
        $region22: #{residual_forward.1} parent=11 // pred_check_branch
          %192 = sbr.rel (%p190) target = $region24
        $region23: #{residual_forward.1} parent=11 // pred_region
          %s194 = ssub.s32 32, 32
          %195 = vsyncadd [#allocation6], %s194
          %s197 = sshll.u32 %s3, 4
          %s198 = int_to_ptr.vmem [resolvable:$true] %s197
          %200 = dma.vmem_to_smem %s198, 32, [#allocation7], [#allocation6]
        $region24: #{residual_forward.1} parent=11 // pred_fallthru
          _
        // Predicated region
        $region25: #{residual_forward.1} parent=11 // pred_check
          %p201 = pneg %p127
        $region26: #{residual_forward.1} parent=11 // pred_check_branch
          %203 = sbr.rel (%p201) target = $region28
        $region27: #{residual_forward.1} parent=11 // pred_region
          %s205 = ssub.s32 16, 16
          %206 = vsyncadd [#allocation9], %s205
          %s208 = sshll.u32 %s4, 4
          %s209 = int_to_ptr.vmem [resolvable:$true] %s208
          %211 = dma.vmem_to_smem %s209, 16, [#allocation8], [#allocation9]
        $region28: #{residual_forward.1} parent=11 // pred_fallthru
          _
      $region12: #{residual_forward.1} parent=5 // pred_fallthru
        _
      %p212 = scmp.lt.s32.totalorder %s17, 2
      // Predicated region
      $region29: #{residual_forward.1} parent=5 // pred_check
        %p213 = pneg %p212
      $region30: #{residual_forward.1} parent=5 // pred_check_branch
        %215 = sbr.rel (%p213) target = $region32
      $region31: #{residual_forward.1} parent=5 // pred_region
        // Predicated region
        $region33: #{residual_forward.1} parent=31 // pred_check
          %p216 = pneg %p37
        $region34: #{residual_forward.1} parent=31 // pred_check_branch
          %218 = sbr.rel (%p216) target = $region36
        $region35: #{residual_forward.1} parent=31 // pred_region
          %p219 = scmp.lt.s32.totalorder %s17, 1
          %s220 = scalar_select %p219, %s17, 1
          %s221 = smul.addr %s220, 12
          %s222 = smul.addr %s221, 8
          %s223 = scalar_lea.vmem %s0, %s222
        $region36: #{residual_forward.1} parent=31 // pred_fallthru
          _
      $region32: #{residual_forward.1} parent=5 // pred_fallthru
        _
      %p224 = scmp.le.s32.totalorder 1, %s17
      %p225 = scmp.lt.s32.totalorder %s17, 3
      %p226 = pnand %p224, %p225
      %p227 = pneg %p226
      // Predicated region
      $region37: #{residual_forward.1} parent=5 // pred_check
        _
      $region38: #{residual_forward.1} parent=5 // pred_check_branch
        %229 = sbr.rel (%p226) target = $region40
      $region39: #{residual_forward.1} parent=5 // pred_region
        %s230 = ssub.s32 %s17, 1
        // Predicated region
        $region41: #{residual_forward.1} parent=39 // pred_check
          %p231 = pneg %p64
        $region42: #{residual_forward.1} parent=39 // pred_check_branch
          %233 = sbr.rel (%p231) target = $region44
        $region43: #{residual_forward.1} parent=39 // pred_region
          %234 = dma.done [#allocation4], 32
        $region44: #{residual_forward.1} parent=39 // pred_fallthru
          _
        // Predicated region
        $region45: #{residual_forward.1} parent=39 // pred_check
          %p235 = pneg %p85
        $region46: #{residual_forward.1} parent=39 // pred_check_branch
          %237 = sbr.rel (%p235) target = $region48
        $region47: #{residual_forward.1} parent=39 // pred_region
          %238 = dma.done [#allocation6], 16
        $region48: #{residual_forward.1} parent=39 // pred_fallthru
          _
        // Predicated region
        $region49: #{residual_forward.1} parent=39 // pred_check
          %p239 = pneg %p106
        $region50: #{residual_forward.1} parent=39 // pred_check_branch
          %241 = sbr.rel (%p239) target = $region52
        $region51: #{residual_forward.1} parent=39 // pred_region
          %242 = dma.done [#allocation6], 32
        $region52: #{residual_forward.1} parent=39 // pred_fallthru
          _
        // Predicated region
        $region53: #{residual_forward.1} parent=39 // pred_check
          %p243 = pneg %p127
        $region54: #{residual_forward.1} parent=39 // pred_check_branch
          %245 = sbr.rel (%p243) target = $region56
        $region55: #{residual_forward.1} parent=39 // pred_region
          %246 = dma.done [#allocation9], 16
        $region56: #{residual_forward.1} parent=39 // pred_fallthru
          _
        %247 = sfence
        %p248 = scmp.lt.s32.totalorder %s22, 1
        %s249 = scalar_select %p248, %s22, 1
        %s250 = smul.addr %s249, 12
        %s251 = smul.addr %s250, 8
        %s252 = scalar_lea.vmem %s0, %s251
        %p253 = pneg %p43
        %p254 = pneg %p40
        %p255 = pneg %p64
        %p256 = pneg %p61
        %p257 = pneg %p85
        %p258 = pneg %p82
        %p259 = pneg %p106
        %p260 = pneg %p103
        %p261 = pneg %p127
        %p262 = pneg %p124
        %p263 = pneg %p153
        %p264 = pneg %p150
        %s265 = sand.u32 %s140, 1
        %s266 = scalar_lea.sflag [#allocation3], %s265
        %s267 = sand.u32 %s140, 1
        %s268 = smul.addr %s267, 64
        %s269 = scalar_lea.vmem [#allocation10], %s268
        %p270 = scmp.lt.s32.totalorder %s22, 1
        %s271 = scalar_select %p270, %s22, 1
        %s272 = smul.addr %s271, 12
        %s273 = smul.addr %s272, 8
        %s274 = scalar_lea.vmem %s0, %s273
        %v275 = vlaneseq
        %v276 = vshrl.u32 %v275, 7
        %v277 = vadd.s32 %v276, 8
        %v278 = vadd.s32 %v276, 16
        %v279 = vlaneseq
        %v280 = vand.u32 %v279, 127
        %vm281 = vcmp.lt.s32.totalorder %v276, 16
        %vm282 = vcmp.lt.s32.totalorder %v277, 16
        %vm283 = vcmp.lt.s32.totalorder %v278, 16
        %vm284 = vcmp.lt.s32.totalorder %v280, 16
        %vm285 = vmand %vm281, %vm284
        %vm286 = vmand %vm282, %vm284
        %vm287 = vmand %vm283, %vm284
        %v288 = vsel %vm285, 1, 0
        %v289 = vsel %vm286, 1, 0
        %v290 = vsel %vm287, 1, 0
        %v291 = vcvt.s32.f32 %v288
        %v292 = vcvt.s32.f32 %v289
        %v293 = vcvt.s32.f32 %v290
        %v294 = vld [vmem:[%s274] sm:$0xff]
        %v295 = vld [vmem:[%s274 + $0x8] sm:$0xff]
        %v296 = vld [vmem:[%s274 + $0x10] sm:$0xff]
        %s297 = scalar_lea.vmem %s274, 24
        %v298 = vld [vmem:[%s297] sm:$0xff]
        %v299 = vld [vmem:[%s297 + $0x8] sm:$0xff]
        %v300 = vld [vmem:[%s297 + $0x10] sm:$0xff]
        %s301 = scalar_lea.vmem %s274, 48
        %v302 = vld [vmem:[%s301] sm:$0xff]
        %v303 = vld [vmem:[%s301 + $0x8] sm:$0xff]
        %v304 = vld [vmem:[%s301 + $0x10] sm:$0xff]
        %s305 = scalar_lea.vmem %s274, 72
        %v306 = vld [vmem:[%s305] sm:$0xff]
        %v307 = vld [vmem:[%s305 + $0x8] sm:$0xff]
        %v308 = vld [vmem:[%s305 + $0x10] sm:$0xff]
        %s309 = sld [smem:[#allocation5]]
        %v310 = vstv %s309
        %s311 = sld [smem:[#allocation5 + $0x1]]
        %v312 = vstv %s311
        %s313 = sld [smem:[#allocation5 + $0x2]]
        %v314 = vstv %s313
        %s315 = sld [smem:[#allocation5 + $0x3]]
        %v316 = vstv %s315
        %v318 = vrot.slane %v296, 7
        %vm322 = vcmask 1040384
        %v323 = vrot.slane %v294, 7
        %v324 = vrot.slane %v295, 7
        %v325 = vsel %vm322, %v323, %v324
        %v326 = vsel %vm322, %v324, %v318
        %v330 = vsel %vm322, %v318, %v323
        %332 = vrot.lane.b32.xlu0 %v330, 1
        %v333 = vpop.permute.xlu0 %332
        %334 = vrot.lane.b32.xlu0 %v325, 1
        %v335 = vpop.permute.xlu0 %334
        %336 = vrot.lane.b32.xlu0 %v326, 1
        %v337 = vpop.permute.xlu0 %336
        %v342 = vrot.slane %v300, 7
        %v346 = vrot.slane %v298, 7
        %v347 = vrot.slane %v299, 7
        %v348 = vsel %vm322, %v346, %v347
        %v349 = vsel %vm322, %v347, %v342
        %v353 = vsel %vm322, %v342, %v346
        %355 = vrot.lane.b32.xlu0 %v353, 1
        %v356 = vpop.permute.xlu0 %355
        %357 = vrot.lane.b32.xlu0 %v348, 1
        %v358 = vpop.permute.xlu0 %357
        %359 = vrot.lane.b32.xlu0 %v349, 1
        %v360 = vpop.permute.xlu0 %359
        %v365 = vrot.slane %v304, 7
        %v369 = vrot.slane %v302, 7
        %v370 = vrot.slane %v303, 7
        %v371 = vsel %vm322, %v369, %v370
        %v372 = vsel %vm322, %v370, %v365
        %v376 = vsel %vm322, %v365, %v369
        %378 = vrot.lane.b32.xlu0 %v376, 1
        %v379 = vpop.permute.xlu0 %378
        %380 = vrot.lane.b32.xlu0 %v371, 1
        %v381 = vpop.permute.xlu0 %380
        %382 = vrot.lane.b32.xlu0 %v372, 1
        %v383 = vpop.permute.xlu0 %382
        %v388 = vrot.slane %v308, 7
        %v392 = vrot.slane %v306, 7
        %v393 = vrot.slane %v307, 7
        %v394 = vsel %vm322, %v392, %v393
        %v395 = vsel %vm322, %v393, %v388
        %v399 = vsel %vm322, %v388, %v392
        %401 = vrot.lane.b32.xlu0 %v399, 1
        %v402 = vpop.permute.xlu0 %401
        %403 = vrot.lane.b32.xlu0 %v394, 1
        %v404 = vpop.permute.xlu0 %403
        %405 = vrot.lane.b32.xlu0 %v395, 1
        %v406 = vpop.permute.xlu0 %405
        %s410 = sld [smem:[#allocation2]]
        %v411 = vstv %s410
        %v412 = vmul.f32 %v411, %v333
        %v413 = vmul.f32 %v411, %v335
        %v414 = vmul.f32 %v411, %v337
        %v415 = vadd.f32 %v310, %v412
        %v416 = vadd.f32 %v310, %v413
        %v417 = vadd.f32 %v310, %v414
        %s418 = sld [smem:[#allocation2 + $0x9]]
        %v419 = vstv %s418
        %v420 = vmul.f32 %v419, %v356
        %v421 = vmul.f32 %v419, %v358
        %v422 = vmul.f32 %v419, %v360
        %v423 = vadd.f32 %v415, %v420
        %v424 = vadd.f32 %v416, %v421
        %v425 = vadd.f32 %v417, %v422
        %s426 = sld [smem:[#allocation2 + $0x12]]
        %v427 = vstv %s426
        %v428 = vmul.f32 %v427, %v379
        %v429 = vmul.f32 %v427, %v381
        %v430 = vmul.f32 %v427, %v383
        %v431 = vadd.f32 %v423, %v428
        %v432 = vadd.f32 %v424, %v429
        %v433 = vadd.f32 %v425, %v430
        %s434 = sld [smem:[#allocation2 + $0x1b]]
        %v435 = vstv %s434
        %v436 = vmul.f32 %v435, %v402
        %v437 = vmul.f32 %v435, %v404
        %v438 = vmul.f32 %v435, %v406
        %v439 = vadd.f32 %v431, %v436
        %v440 = vadd.f32 %v432, %v437
        %v441 = vadd.f32 %v433, %v438
        %s442 = sld [smem:[#allocation2 + $0x24]]
        %v443 = vstv %s442
        %v444 = vmul.f32 %v443, %v333
        %v445 = vmul.f32 %v443, %v335
        %v446 = vmul.f32 %v443, %v337
        %v447 = vadd.f32 %v312, %v444
        %v448 = vadd.f32 %v312, %v445
        %v449 = vadd.f32 %v312, %v446
        %s450 = sld [smem:[#allocation2 + $0x2d]]
        %v451 = vstv %s450
        %v452 = vmul.f32 %v451, %v356
        %v453 = vmul.f32 %v451, %v358
        %v454 = vmul.f32 %v451, %v360
        %v455 = vadd.f32 %v447, %v452
        %v456 = vadd.f32 %v448, %v453
        %v457 = vadd.f32 %v449, %v454
        %s458 = sld [smem:[#allocation2 + $0x36]]
        %v459 = vstv %s458
        %v460 = vmul.f32 %v459, %v379
        %v461 = vmul.f32 %v459, %v381
        %v462 = vmul.f32 %v459, %v383
        %v463 = vadd.f32 %v455, %v460
        %v464 = vadd.f32 %v456, %v461
        %v465 = vadd.f32 %v457, %v462
        %s466 = sld [smem:[#allocation2 + $0x3f]]
        %v467 = vstv %s466
        %v468 = vmul.f32 %v467, %v402
        %v469 = vmul.f32 %v467, %v404
        %v470 = vmul.f32 %v467, %v406
        %v471 = vadd.f32 %v463, %v468
        %v472 = vadd.f32 %v464, %v469
        %v473 = vadd.f32 %v465, %v470
        %s474 = sld [smem:[#allocation2 + $0x48]]
        %v475 = vstv %s474
        %v476 = vmul.f32 %v475, %v333
        %v477 = vmul.f32 %v475, %v335
        %v478 = vmul.f32 %v475, %v337
        %v479 = vadd.f32 %v314, %v476
        %v480 = vadd.f32 %v314, %v477
        %v481 = vadd.f32 %v314, %v478
        %s482 = sld [smem:[#allocation2 + $0x51]]
        %v483 = vstv %s482
        %v484 = vmul.f32 %v483, %v356
        %v485 = vmul.f32 %v483, %v358
        %v486 = vmul.f32 %v483, %v360
        %v487 = vadd.f32 %v479, %v484
        %v488 = vadd.f32 %v480, %v485
        %v489 = vadd.f32 %v481, %v486
        %s490 = sld [smem:[#allocation2 + $0x5a]]
        %v491 = vstv %s490
        %v492 = vmul.f32 %v491, %v379
        %v493 = vmul.f32 %v491, %v381
        %v494 = vmul.f32 %v491, %v383
        %v495 = vadd.f32 %v487, %v492
        %v496 = vadd.f32 %v488, %v493
        %v497 = vadd.f32 %v489, %v494
        %s498 = sld [smem:[#allocation2 + $0x63]]
        %v499 = vstv %s498
        %v500 = vmul.f32 %v499, %v402
        %v501 = vmul.f32 %v499, %v404
        %v502 = vmul.f32 %v499, %v406
        %v503 = vadd.f32 %v495, %v500
        %v504 = vadd.f32 %v496, %v501
        %v505 = vadd.f32 %v497, %v502
        %s506 = sld [smem:[#allocation2 + $0x6c]]
        %v507 = vstv %s506
        %v508 = vmul.f32 %v507, %v333
        %v509 = vmul.f32 %v507, %v335
        %v510 = vmul.f32 %v507, %v337
        %v511 = vadd.f32 %v316, %v508
        %v512 = vadd.f32 %v316, %v509
        %v513 = vadd.f32 %v316, %v510
        %s514 = sld [smem:[#allocation2 + $0x75]]
        %v515 = vstv %s514
        %v516 = vmul.f32 %v515, %v356
        %v517 = vmul.f32 %v515, %v358
        %v518 = vmul.f32 %v515, %v360
        %v519 = vadd.f32 %v511, %v516
        %v520 = vadd.f32 %v512, %v517
        %v521 = vadd.f32 %v513, %v518
        %s522 = sld [smem:[#allocation2 + $0x7e]]
        %v523 = vstv %s522
        %v524 = vmul.f32 %v523, %v379
        %v525 = vmul.f32 %v523, %v381
        %v526 = vmul.f32 %v523, %v383
        %v527 = vadd.f32 %v519, %v524
        %v528 = vadd.f32 %v520, %v525
        %v529 = vadd.f32 %v521, %v526
        %s530 = sld [smem:[#allocation2 + $0x87]]
        %v531 = vstv %s530
        %v532 = vmul.f32 %v531, %v402
        %v533 = vmul.f32 %v531, %v404
        %v534 = vmul.f32 %v531, %v406
        %v535 = vadd.f32 %v527, %v532
        %v536 = vadd.f32 %v528, %v533
        %v537 = vadd.f32 %v529, %v534
        %s538 = sld [smem:[#allocation2 + $0x1]]
        %v539 = vstv %s538
        %v540 = vmul.f32 %v539, %v330
        %v541 = vmul.f32 %v539, %v325
        %v542 = vmul.f32 %v539, %v326
        %v543 = vadd.f32 %v439, %v540
        %v544 = vadd.f32 %v440, %v541
        %v545 = vadd.f32 %v441, %v542
        %s546 = sld [smem:[#allocation2 + $0xa]]
        %v547 = vstv %s546
        %v548 = vmul.f32 %v547, %v353
        %v549 = vmul.f32 %v547, %v348
        %v550 = vmul.f32 %v547, %v349
        %v551 = vadd.f32 %v543, %v548
        %v552 = vadd.f32 %v544, %v549
        %v553 = vadd.f32 %v545, %v550
        %s554 = sld [smem:[#allocation2 + $0x13]]
        %v555 = vstv %s554
        %v556 = vmul.f32 %v555, %v376
        %v557 = vmul.f32 %v555, %v371
        %v558 = vmul.f32 %v555, %v372
        %v559 = vadd.f32 %v551, %v556
        %v560 = vadd.f32 %v552, %v557
        %v561 = vadd.f32 %v553, %v558
        %s562 = sld [smem:[#allocation2 + $0x1c]]
        %v563 = vstv %s562
        %v564 = vmul.f32 %v563, %v399
        %v565 = vmul.f32 %v563, %v394
        %v566 = vmul.f32 %v563, %v395
        %v567 = vadd.f32 %v559, %v564
        %v568 = vadd.f32 %v560, %v565
        %v569 = vadd.f32 %v561, %v566
        %s570 = sld [smem:[#allocation2 + $0x25]]
        %v571 = vstv %s570
        %v572 = vmul.f32 %v571, %v330
        %v573 = vmul.f32 %v571, %v325
        %v574 = vmul.f32 %v571, %v326
        %v575 = vadd.f32 %v471, %v572
        %v576 = vadd.f32 %v472, %v573
        %v577 = vadd.f32 %v473, %v574
        %s578 = sld [smem:[#allocation2 + $0x2e]]
        %v579 = vstv %s578
        %v580 = vmul.f32 %v579, %v353
        %v581 = vmul.f32 %v579, %v348
        %v582 = vmul.f32 %v579, %v349
        %v583 = vadd.f32 %v575, %v580
        %v584 = vadd.f32 %v576, %v581
        %v585 = vadd.f32 %v577, %v582
        %s586 = sld [smem:[#allocation2 + $0x37]]
        %v587 = vstv %s586
        %v588 = vmul.f32 %v587, %v376
        %v589 = vmul.f32 %v587, %v371
        %v590 = vmul.f32 %v587, %v372
        %v591 = vadd.f32 %v583, %v588
        %v592 = vadd.f32 %v584, %v589
        %v593 = vadd.f32 %v585, %v590
        %s594 = sld [smem:[#allocation2 + $0x40]]
        %v595 = vstv %s594
        %v596 = vmul.f32 %v595, %v399
        %v597 = vmul.f32 %v595, %v394
        %v598 = vmul.f32 %v595, %v395
        %v599 = vadd.f32 %v591, %v596
        %v600 = vadd.f32 %v592, %v597
        %v601 = vadd.f32 %v593, %v598
        %s602 = sld [smem:[#allocation2 + $0x49]]
        %v603 = vstv %s602
        %v604 = vmul.f32 %v603, %v330
        %v605 = vmul.f32 %v603, %v325
        %v606 = vmul.f32 %v603, %v326
        %v607 = vadd.f32 %v503, %v604
        %v608 = vadd.f32 %v504, %v605
        %v609 = vadd.f32 %v505, %v606
        %s610 = sld [smem:[#allocation2 + $0x52]]
        %v611 = vstv %s610
        %v612 = vmul.f32 %v611, %v353
        %v613 = vmul.f32 %v611, %v348
        %v614 = vmul.f32 %v611, %v349
        %v615 = vadd.f32 %v607, %v612
        %v616 = vadd.f32 %v608, %v613
        %v617 = vadd.f32 %v609, %v614
        %s618 = sld [smem:[#allocation2 + $0x5b]]
        %v619 = vstv %s618
        %v620 = vmul.f32 %v619, %v376
        %v621 = vmul.f32 %v619, %v371
        %v622 = vmul.f32 %v619, %v372
        %v623 = vadd.f32 %v615, %v620
        %v624 = vadd.f32 %v616, %v621
        %v625 = vadd.f32 %v617, %v622
        %s626 = sld [smem:[#allocation2 + $0x64]]
        %v627 = vstv %s626
        %v628 = vmul.f32 %v627, %v399
        %v629 = vmul.f32 %v627, %v394
        %v630 = vmul.f32 %v627, %v395
        %v631 = vadd.f32 %v623, %v628
        %v632 = vadd.f32 %v624, %v629
        %v633 = vadd.f32 %v625, %v630
        %s634 = sld [smem:[#allocation2 + $0x6d]]
        %v635 = vstv %s634
        %v636 = vmul.f32 %v635, %v330
        %v637 = vmul.f32 %v635, %v325
        %v638 = vmul.f32 %v635, %v326
        %v639 = vadd.f32 %v535, %v636
        %v640 = vadd.f32 %v536, %v637
        %v641 = vadd.f32 %v537, %v638
        %s642 = sld [smem:[#allocation2 + $0x76]]
        %v643 = vstv %s642
        %v644 = vmul.f32 %v643, %v353
        %v645 = vmul.f32 %v643, %v348
        %v646 = vmul.f32 %v643, %v349
        %v647 = vadd.f32 %v639, %v644
        %v648 = vadd.f32 %v640, %v645
        %v649 = vadd.f32 %v641, %v646
        %s650 = sld [smem:[#allocation2 + $0x7f]]
        %v651 = vstv %s650
        %v652 = vmul.f32 %v651, %v376
        %v653 = vmul.f32 %v651, %v371
        %v654 = vmul.f32 %v651, %v372
        %v655 = vadd.f32 %v647, %v652
        %v656 = vadd.f32 %v648, %v653
        %v657 = vadd.f32 %v649, %v654
        %s658 = sld [smem:[#allocation2 + $0x88]]
        %v659 = vstv %s658
        %v660 = vmul.f32 %v659, %v399
        %v661 = vmul.f32 %v659, %v394
        %v662 = vmul.f32 %v659, %v395
        %v663 = vadd.f32 %v655, %v660
        %v664 = vadd.f32 %v656, %v661
        %v665 = vadd.f32 %v657, %v662
        %666 = vrot.lane.b32.xlu0 %v330, 127
        %v667 = vpop.permute.xlu0 %666
        %668 = vrot.lane.b32.xlu0 %v325, 127
        %v669 = vpop.permute.xlu0 %668
        %670 = vrot.lane.b32.xlu0 %v326, 127
        %v671 = vpop.permute.xlu0 %670
        %675 = vrot.lane.b32.xlu0 %v353, 127
        %v676 = vpop.permute.xlu0 %675
        %677 = vrot.lane.b32.xlu0 %v348, 127
        %v678 = vpop.permute.xlu0 %677
        %679 = vrot.lane.b32.xlu0 %v349, 127
        %v680 = vpop.permute.xlu0 %679
        %684 = vrot.lane.b32.xlu0 %v376, 127
        %v685 = vpop.permute.xlu0 %684
        %686 = vrot.lane.b32.xlu0 %v371, 127
        %v687 = vpop.permute.xlu0 %686
        %688 = vrot.lane.b32.xlu0 %v372, 127
        %v689 = vpop.permute.xlu0 %688
        %693 = vrot.lane.b32.xlu0 %v399, 127
        %v694 = vpop.permute.xlu0 %693
        %695 = vrot.lane.b32.xlu0 %v394, 127
        %v696 = vpop.permute.xlu0 %695
        %697 = vrot.lane.b32.xlu0 %v395, 127
        %v698 = vpop.permute.xlu0 %697
        %s702 = sld [smem:[#allocation2 + $0x2]]
        %v703 = vstv %s702
        %v704 = vmul.f32 %v703, %v667
        %v705 = vmul.f32 %v703, %v669
        %v706 = vmul.f32 %v703, %v671
        %v707 = vadd.f32 %v567, %v704
        %v708 = vadd.f32 %v568, %v705
        %v709 = vadd.f32 %v569, %v706
        %s710 = sld [smem:[#allocation2 + $0xb]]
        %v711 = vstv %s710
        %v712 = vmul.f32 %v711, %v676
        %v713 = vmul.f32 %v711, %v678
        %v714 = vmul.f32 %v711, %v680
        %v715 = vadd.f32 %v707, %v712
        %v716 = vadd.f32 %v708, %v713
        %v717 = vadd.f32 %v709, %v714
        %s718 = sld [smem:[#allocation2 + $0x14]]
        %v719 = vstv %s718
        %v720 = vmul.f32 %v719, %v685
        %v721 = vmul.f32 %v719, %v687
        %v722 = vmul.f32 %v719, %v689
        %v723 = vadd.f32 %v715, %v720
        %v724 = vadd.f32 %v716, %v721
        %v725 = vadd.f32 %v717, %v722
        %s726 = sld [smem:[#allocation2 + $0x1d]]
        %v727 = vstv %s726
        %v728 = vmul.f32 %v727, %v694
        %v729 = vmul.f32 %v727, %v696
        %v730 = vmul.f32 %v727, %v698
        %v731 = vadd.f32 %v723, %v728
        %v732 = vadd.f32 %v724, %v729
        %v733 = vadd.f32 %v725, %v730
        %s734 = sld [smem:[#allocation2 + $0x26]]
        %v735 = vstv %s734
        %v736 = vmul.f32 %v735, %v667
        %v737 = vmul.f32 %v735, %v669
        %v738 = vmul.f32 %v735, %v671
        %v739 = vadd.f32 %v599, %v736
        %v740 = vadd.f32 %v600, %v737
        %v741 = vadd.f32 %v601, %v738
        %s742 = sld [smem:[#allocation2 + $0x2f]]
        %v743 = vstv %s742
        %v744 = vmul.f32 %v743, %v676
        %v745 = vmul.f32 %v743, %v678
        %v746 = vmul.f32 %v743, %v680
        %v747 = vadd.f32 %v739, %v744
        %v748 = vadd.f32 %v740, %v745
        %v749 = vadd.f32 %v741, %v746
        %s750 = sld [smem:[#allocation2 + $0x38]]
        %v751 = vstv %s750
        %v752 = vmul.f32 %v751, %v685
        %v753 = vmul.f32 %v751, %v687
        %v754 = vmul.f32 %v751, %v689
        %v755 = vadd.f32 %v747, %v752
        %v756 = vadd.f32 %v748, %v753
        %v757 = vadd.f32 %v749, %v754
        %s758 = sld [smem:[#allocation2 + $0x41]]
        %v759 = vstv %s758
        %v760 = vmul.f32 %v759, %v694
        %v761 = vmul.f32 %v759, %v696
        %v762 = vmul.f32 %v759, %v698
        %v763 = vadd.f32 %v755, %v760
        %v764 = vadd.f32 %v756, %v761
        %v765 = vadd.f32 %v757, %v762
        %s766 = sld [smem:[#allocation2 + $0x4a]]
        %v767 = vstv %s766
        %v768 = vmul.f32 %v767, %v667
        %v769 = vmul.f32 %v767, %v669
        %v770 = vmul.f32 %v767, %v671
        %v771 = vadd.f32 %v631, %v768
        %v772 = vadd.f32 %v632, %v769
        %v773 = vadd.f32 %v633, %v770
        %s774 = sld [smem:[#allocation2 + $0x53]]
        %v775 = vstv %s774
        %v776 = vmul.f32 %v775, %v676
        %v777 = vmul.f32 %v775, %v678
        %v778 = vmul.f32 %v775, %v680
        %v779 = vadd.f32 %v771, %v776
        %v780 = vadd.f32 %v772, %v777
        %v781 = vadd.f32 %v773, %v778
        %s782 = sld [smem:[#allocation2 + $0x5c]]
        %v783 = vstv %s782
        %v784 = vmul.f32 %v783, %v685
        %v785 = vmul.f32 %v783, %v687
        %v786 = vmul.f32 %v783, %v689
        %v787 = vadd.f32 %v779, %v784
        %v788 = vadd.f32 %v780, %v785
        %v789 = vadd.f32 %v781, %v786
        %s790 = sld [smem:[#allocation2 + $0x65]]
        %v791 = vstv %s790
        %v792 = vmul.f32 %v791, %v694
        %v793 = vmul.f32 %v791, %v696
        %v794 = vmul.f32 %v791, %v698
        %v795 = vadd.f32 %v787, %v792
        %v796 = vadd.f32 %v788, %v793
        %v797 = vadd.f32 %v789, %v794
        %s798 = sld [smem:[#allocation2 + $0x6e]]
        %v799 = vstv %s798
        %v800 = vmul.f32 %v799, %v667
        %v801 = vmul.f32 %v799, %v669
        %v802 = vmul.f32 %v799, %v671
        %v803 = vadd.f32 %v663, %v800
        %v804 = vadd.f32 %v664, %v801
        %v805 = vadd.f32 %v665, %v802
        %s806 = sld [smem:[#allocation2 + $0x77]]
        %v807 = vstv %s806
        %v808 = vmul.f32 %v807, %v676
        %v809 = vmul.f32 %v807, %v678
        %v810 = vmul.f32 %v807, %v680
        %v811 = vadd.f32 %v803, %v808
        %v812 = vadd.f32 %v804, %v809
        %v813 = vadd.f32 %v805, %v810
        %s814 = sld [smem:[#allocation2 + $0x80]]
        %v815 = vstv %s814
        %v816 = vmul.f32 %v815, %v685
        %v817 = vmul.f32 %v815, %v687
        %v818 = vmul.f32 %v815, %v689
        %v819 = vadd.f32 %v811, %v816
        %v820 = vadd.f32 %v812, %v817
        %v821 = vadd.f32 %v813, %v818
        %s822 = sld [smem:[#allocation2 + $0x89]]
        %v823 = vstv %s822
        %v824 = vmul.f32 %v823, %v694
        %v825 = vmul.f32 %v823, %v696
        %v826 = vmul.f32 %v823, %v698
        %v827 = vadd.f32 %v819, %v824
        %v828 = vadd.f32 %v820, %v825
        %v829 = vadd.f32 %v821, %v826
        %830 = vrot.lane.b32.xlu0 %v294, 1
        %v831 = vpop.permute.xlu0 %830
        %832 = vrot.lane.b32.xlu0 %v295, 1
        %v833 = vpop.permute.xlu0 %832
        %834 = vrot.lane.b32.xlu0 %v296, 1
        %v835 = vpop.permute.xlu0 %834
        %839 = vrot.lane.b32.xlu0 %v298, 1
        %v840 = vpop.permute.xlu0 %839
        %841 = vrot.lane.b32.xlu0 %v299, 1
        %v842 = vpop.permute.xlu0 %841
        %843 = vrot.lane.b32.xlu0 %v300, 1
        %v844 = vpop.permute.xlu0 %843
        %848 = vrot.lane.b32.xlu0 %v302, 1
        %v849 = vpop.permute.xlu0 %848
        %850 = vrot.lane.b32.xlu0 %v303, 1
        %v851 = vpop.permute.xlu0 %850
        %852 = vrot.lane.b32.xlu0 %v304, 1
        %v853 = vpop.permute.xlu0 %852
        %857 = vrot.lane.b32.xlu0 %v306, 1
        %v858 = vpop.permute.xlu0 %857
        %859 = vrot.lane.b32.xlu0 %v307, 1
        %v860 = vpop.permute.xlu0 %859
        %861 = vrot.lane.b32.xlu0 %v308, 1
        %v862 = vpop.permute.xlu0 %861
        %s866 = sld [smem:[#allocation2 + $0x3]]
        %v867 = vstv %s866
        %v868 = vmul.f32 %v867, %v831
        %v869 = vmul.f32 %v867, %v833
        %v870 = vmul.f32 %v867, %v835
        %v871 = vadd.f32 %v731, %v868
        %v872 = vadd.f32 %v732, %v869
        %v873 = vadd.f32 %v733, %v870
        %s874 = sld [smem:[#allocation2 + $0xc]]
        %v875 = vstv %s874
        %v876 = vmul.f32 %v875, %v840
        %v877 = vmul.f32 %v875, %v842
        %v878 = vmul.f32 %v875, %v844
        %v879 = vadd.f32 %v871, %v876
        %v880 = vadd.f32 %v872, %v877
        %v881 = vadd.f32 %v873, %v878
        %s882 = sld [smem:[#allocation2 + $0x15]]
        %v883 = vstv %s882
        %v884 = vmul.f32 %v883, %v849
        %v885 = vmul.f32 %v883, %v851
        %v886 = vmul.f32 %v883, %v853
        %v887 = vadd.f32 %v879, %v884
        %v888 = vadd.f32 %v880, %v885
        %v889 = vadd.f32 %v881, %v886
        %s890 = sld [smem:[#allocation2 + $0x1e]]
        %v891 = vstv %s890
        %v892 = vmul.f32 %v891, %v858
        %v893 = vmul.f32 %v891, %v860
        %v894 = vmul.f32 %v891, %v862
        %v895 = vadd.f32 %v887, %v892
        %v896 = vadd.f32 %v888, %v893
        %v897 = vadd.f32 %v889, %v894
        %s898 = sld [smem:[#allocation2 + $0x27]]
        %v899 = vstv %s898
        %v900 = vmul.f32 %v899, %v831
        %v901 = vmul.f32 %v899, %v833
        %v902 = vmul.f32 %v899, %v835
        %v903 = vadd.f32 %v763, %v900
        %v904 = vadd.f32 %v764, %v901
        %v905 = vadd.f32 %v765, %v902
        %s906 = sld [smem:[#allocation2 + $0x30]]
        %v907 = vstv %s906
        %v908 = vmul.f32 %v907, %v840
        %v909 = vmul.f32 %v907, %v842
        %v910 = vmul.f32 %v907, %v844
        %v911 = vadd.f32 %v903, %v908
        %v912 = vadd.f32 %v904, %v909
        %v913 = vadd.f32 %v905, %v910
        %s914 = sld [smem:[#allocation2 + $0x39]]
        %v915 = vstv %s914
        %v916 = vmul.f32 %v915, %v849
        %v917 = vmul.f32 %v915, %v851
        %v918 = vmul.f32 %v915, %v853
        %v919 = vadd.f32 %v911, %v916
        %v920 = vadd.f32 %v912, %v917
        %v921 = vadd.f32 %v913, %v918
        %s922 = sld [smem:[#allocation2 + $0x42]]
        %v923 = vstv %s922
        %v924 = vmul.f32 %v923, %v858
        %v925 = vmul.f32 %v923, %v860
        %v926 = vmul.f32 %v923, %v862
        %v927 = vadd.f32 %v919, %v924
        %v928 = vadd.f32 %v920, %v925
        %v929 = vadd.f32 %v921, %v926
        %s930 = sld [smem:[#allocation2 + $0x4b]]
        %v931 = vstv %s930
        %v932 = vmul.f32 %v931, %v831
        %v933 = vmul.f32 %v931, %v833
        %v934 = vmul.f32 %v931, %v835
        %v935 = vadd.f32 %v795, %v932
        %v936 = vadd.f32 %v796, %v933
        %v937 = vadd.f32 %v797, %v934
        %s938 = sld [smem:[#allocation2 + $0x54]]
        %v939 = vstv %s938
        %v940 = vmul.f32 %v939, %v840
        %v941 = vmul.f32 %v939, %v842
        %v942 = vmul.f32 %v939, %v844
        %v943 = vadd.f32 %v935, %v940
        %v944 = vadd.f32 %v936, %v941
        %v945 = vadd.f32 %v937, %v942
        %s946 = sld [smem:[#allocation2 + $0x5d]]
        %v947 = vstv %s946
        %v948 = vmul.f32 %v947, %v849
        %v949 = vmul.f32 %v947, %v851
        %v950 = vmul.f32 %v947, %v853
        %v951 = vadd.f32 %v943, %v948
        %v952 = vadd.f32 %v944, %v949
        %v953 = vadd.f32 %v945, %v950
        %s954 = sld [smem:[#allocation2 + $0x66]]
        %v955 = vstv %s954
        %v956 = vmul.f32 %v955, %v858
        %v957 = vmul.f32 %v955, %v860
        %v958 = vmul.f32 %v955, %v862
        %v959 = vadd.f32 %v951, %v956
        %v960 = vadd.f32 %v952, %v957
        %v961 = vadd.f32 %v953, %v958
        %s962 = sld [smem:[#allocation2 + $0x6f]]
        %v963 = vstv %s962
        %v964 = vmul.f32 %v963, %v831
        %v965 = vmul.f32 %v963, %v833
        %v966 = vmul.f32 %v963, %v835
        %v967 = vadd.f32 %v827, %v964
        %v968 = vadd.f32 %v828, %v965
        %v969 = vadd.f32 %v829, %v966
        %s970 = sld [smem:[#allocation2 + $0x78]]
        %v971 = vstv %s970
        %v972 = vmul.f32 %v971, %v840
        %v973 = vmul.f32 %v971, %v842
        %v974 = vmul.f32 %v971, %v844
        %v975 = vadd.f32 %v967, %v972
        %v976 = vadd.f32 %v968, %v973
        %v977 = vadd.f32 %v969, %v974
        %s978 = sld [smem:[#allocation2 + $0x81]]
        %v979 = vstv %s978
        %v980 = vmul.f32 %v979, %v849
        %v981 = vmul.f32 %v979, %v851
        %v982 = vmul.f32 %v979, %v853
        %v983 = vadd.f32 %v975, %v980
        %v984 = vadd.f32 %v976, %v981
        %v985 = vadd.f32 %v977, %v982
        %s986 = sld [smem:[#allocation2 + $0x8a]]
        %v987 = vstv %s986
        %v988 = vmul.f32 %v987, %v858
        %v989 = vmul.f32 %v987, %v860
        %v990 = vmul.f32 %v987, %v862
        %v991 = vadd.f32 %v983, %v988
        %v992 = vadd.f32 %v984, %v989
        %v993 = vadd.f32 %v985, %v990
        %s994 = sld [smem:[#allocation2 + $0x4]]
        %v995 = vstv %s994
        %v996 = vmul.f32 %v995, %v294
        %v997 = vmul.f32 %v995, %v295
        %v998 = vmul.f32 %v995, %v296
        %v999 = vadd.f32 %v895, %v996
        %v1000 = vadd.f32 %v896, %v997
        %v1001 = vadd.f32 %v897, %v998
        %s1002 = sld [smem:[#allocation2 + $0xd]]
        %v1003 = vstv %s1002
        %v1004 = vmul.f32 %v1003, %v298
        %v1005 = vmul.f32 %v1003, %v299
        %v1006 = vmul.f32 %v1003, %v300
        %v1007 = vadd.f32 %v999, %v1004
        %v1008 = vadd.f32 %v1000, %v1005
        %v1009 = vadd.f32 %v1001, %v1006
        %s1010 = sld [smem:[#allocation2 + $0x16]]
        %v1011 = vstv %s1010
        %v1012 = vmul.f32 %v1011, %v302
        %v1013 = vmul.f32 %v1011, %v303
        %v1014 = vmul.f32 %v1011, %v304
        %v1015 = vadd.f32 %v1007, %v1012
        %v1016 = vadd.f32 %v1008, %v1013
        %v1017 = vadd.f32 %v1009, %v1014
        %s1018 = sld [smem:[#allocation2 + $0x1f]]
        %v1019 = vstv %s1018
        %v1020 = vmul.f32 %v1019, %v306
        %v1021 = vmul.f32 %v1019, %v307
        %v1022 = vmul.f32 %v1019, %v308
        %v1023 = vadd.f32 %v1015, %v1020
        %v1024 = vadd.f32 %v1016, %v1021
        %v1025 = vadd.f32 %v1017, %v1022
        %s1026 = sld [smem:[#allocation2 + $0x28]]
        %v1027 = vstv %s1026
        %v1028 = vmul.f32 %v1027, %v294
        %v1029 = vmul.f32 %v1027, %v295
        %v1030 = vmul.f32 %v1027, %v296
        %v1031 = vadd.f32 %v927, %v1028
        %v1032 = vadd.f32 %v928, %v1029
        %v1033 = vadd.f32 %v929, %v1030
        %s1034 = sld [smem:[#allocation2 + $0x31]]
        %v1035 = vstv %s1034
        %v1036 = vmul.f32 %v1035, %v298
        %v1037 = vmul.f32 %v1035, %v299
        %v1038 = vmul.f32 %v1035, %v300
        %v1039 = vadd.f32 %v1031, %v1036
        %v1040 = vadd.f32 %v1032, %v1037
        %v1041 = vadd.f32 %v1033, %v1038
        %s1042 = sld [smem:[#allocation2 + $0x3a]]
        %v1043 = vstv %s1042
        %v1044 = vmul.f32 %v1043, %v302
        %v1045 = vmul.f32 %v1043, %v303
        %v1046 = vmul.f32 %v1043, %v304
        %v1047 = vadd.f32 %v1039, %v1044
        %v1048 = vadd.f32 %v1040, %v1045
        %v1049 = vadd.f32 %v1041, %v1046
        %s1050 = sld [smem:[#allocation2 + $0x43]]
        %v1051 = vstv %s1050
        %v1052 = vmul.f32 %v1051, %v306
        %v1053 = vmul.f32 %v1051, %v307
        %v1054 = vmul.f32 %v1051, %v308
        %v1055 = vadd.f32 %v1047, %v1052
        %v1056 = vadd.f32 %v1048, %v1053
        %v1057 = vadd.f32 %v1049, %v1054
        %s1058 = sld [smem:[#allocation2 + $0x4c]]
        %v1059 = vstv %s1058
        %v1060 = vmul.f32 %v1059, %v294
        %v1061 = vmul.f32 %v1059, %v295
        %v1062 = vmul.f32 %v1059, %v296
        %v1063 = vadd.f32 %v959, %v1060
        %v1064 = vadd.f32 %v960, %v1061
        %v1065 = vadd.f32 %v961, %v1062
        %s1066 = sld [smem:[#allocation2 + $0x55]]
        %v1067 = vstv %s1066
        %v1068 = vmul.f32 %v1067, %v298
        %v1069 = vmul.f32 %v1067, %v299
        %v1070 = vmul.f32 %v1067, %v300
        %v1071 = vadd.f32 %v1063, %v1068
        %v1072 = vadd.f32 %v1064, %v1069
        %v1073 = vadd.f32 %v1065, %v1070
        %s1074 = sld [smem:[#allocation2 + $0x5e]]
        %v1075 = vstv %s1074
        %v1076 = vmul.f32 %v1075, %v302
        %v1077 = vmul.f32 %v1075, %v303
        %v1078 = vmul.f32 %v1075, %v304
        %v1079 = vadd.f32 %v1071, %v1076
        %v1080 = vadd.f32 %v1072, %v1077
        %v1081 = vadd.f32 %v1073, %v1078
        %s1082 = sld [smem:[#allocation2 + $0x67]]
        %v1083 = vstv %s1082
        %v1084 = vmul.f32 %v1083, %v306
        %v1085 = vmul.f32 %v1083, %v307
        %v1086 = vmul.f32 %v1083, %v308
        %v1087 = vadd.f32 %v1079, %v1084
        %v1088 = vadd.f32 %v1080, %v1085
        %v1089 = vadd.f32 %v1081, %v1086
        %s1090 = sld [smem:[#allocation2 + $0x70]]
        %v1091 = vstv %s1090
        %v1092 = vmul.f32 %v1091, %v294
        %v1093 = vmul.f32 %v1091, %v295
        %v1094 = vmul.f32 %v1091, %v296
        %v1095 = vadd.f32 %v991, %v1092
        %v1096 = vadd.f32 %v992, %v1093
        %v1097 = vadd.f32 %v993, %v1094
        %s1098 = sld [smem:[#allocation2 + $0x79]]
        %v1099 = vstv %s1098
        %v1100 = vmul.f32 %v1099, %v298
        %v1101 = vmul.f32 %v1099, %v299
        %v1102 = vmul.f32 %v1099, %v300
        %v1103 = vadd.f32 %v1095, %v1100
        %v1104 = vadd.f32 %v1096, %v1101
        %v1105 = vadd.f32 %v1097, %v1102
        %s1106 = sld [smem:[#allocation2 + $0x82]]
        %v1107 = vstv %s1106
        %v1108 = vmul.f32 %v1107, %v302
        %v1109 = vmul.f32 %v1107, %v303
        %v1110 = vmul.f32 %v1107, %v304
        %v1111 = vadd.f32 %v1103, %v1108
        %v1112 = vadd.f32 %v1104, %v1109
        %v1113 = vadd.f32 %v1105, %v1110
        %s1114 = sld [smem:[#allocation2 + $0x8b]]
        %v1115 = vstv %s1114
        %v1116 = vmul.f32 %v1115, %v306
        %v1117 = vmul.f32 %v1115, %v307
        %v1118 = vmul.f32 %v1115, %v308
        %v1119 = vadd.f32 %v1111, %v1116
        %v1120 = vadd.f32 %v1112, %v1117
        %v1121 = vadd.f32 %v1113, %v1118
        %1122 = vrot.lane.b32.xlu0 %v294, 127
        %v1123 = vpop.permute.xlu0 %1122
        %1124 = vrot.lane.b32.xlu0 %v295, 127
        %v1125 = vpop.permute.xlu0 %1124
        %1126 = vrot.lane.b32.xlu0 %v296, 127
        %v1127 = vpop.permute.xlu0 %1126
        %1131 = vrot.lane.b32.xlu0 %v298, 127
        %v1132 = vpop.permute.xlu0 %1131
        %1133 = vrot.lane.b32.xlu0 %v299, 127
        %v1134 = vpop.permute.xlu0 %1133
        %1135 = vrot.lane.b32.xlu0 %v300, 127
        %v1136 = vpop.permute.xlu0 %1135
        %1140 = vrot.lane.b32.xlu0 %v302, 127
        %v1141 = vpop.permute.xlu0 %1140
        %1142 = vrot.lane.b32.xlu0 %v303, 127
        %v1143 = vpop.permute.xlu0 %1142
        %1144 = vrot.lane.b32.xlu0 %v304, 127
        %v1145 = vpop.permute.xlu0 %1144
        %1149 = vrot.lane.b32.xlu0 %v306, 127
        %v1150 = vpop.permute.xlu0 %1149
        %1151 = vrot.lane.b32.xlu0 %v307, 127
        %v1152 = vpop.permute.xlu0 %1151
        %1153 = vrot.lane.b32.xlu0 %v308, 127
        %v1154 = vpop.permute.xlu0 %1153
        %s1158 = sld [smem:[#allocation2 + $0x5]]
        %v1159 = vstv %s1158
        %v1160 = vmul.f32 %v1159, %v1123
        %v1161 = vmul.f32 %v1159, %v1125
        %v1162 = vmul.f32 %v1159, %v1127
        %v1163 = vadd.f32 %v1023, %v1160
        %v1164 = vadd.f32 %v1024, %v1161
        %v1165 = vadd.f32 %v1025, %v1162
        %s1166 = sld [smem:[#allocation2 + $0xe]]
        %v1167 = vstv %s1166
        %v1168 = vmul.f32 %v1167, %v1132
        %v1169 = vmul.f32 %v1167, %v1134
        %v1170 = vmul.f32 %v1167, %v1136
        %v1171 = vadd.f32 %v1163, %v1168
        %v1172 = vadd.f32 %v1164, %v1169
        %v1173 = vadd.f32 %v1165, %v1170
        %s1174 = sld [smem:[#allocation2 + $0x17]]
        %v1175 = vstv %s1174
        %v1176 = vmul.f32 %v1175, %v1141
        %v1177 = vmul.f32 %v1175, %v1143
        %v1178 = vmul.f32 %v1175, %v1145
        %v1179 = vadd.f32 %v1171, %v1176
        %v1180 = vadd.f32 %v1172, %v1177
        %v1181 = vadd.f32 %v1173, %v1178
        %s1182 = sld [smem:[#allocation2 + $0x20]]
        %v1183 = vstv %s1182
        %v1184 = vmul.f32 %v1183, %v1150
        %v1185 = vmul.f32 %v1183, %v1152
        %v1186 = vmul.f32 %v1183, %v1154
        %v1187 = vadd.f32 %v1179, %v1184
        %v1188 = vadd.f32 %v1180, %v1185
        %v1189 = vadd.f32 %v1181, %v1186
        %s1190 = sld [smem:[#allocation2 + $0x29]]
        %v1191 = vstv %s1190
        %v1192 = vmul.f32 %v1191, %v1123
        %v1193 = vmul.f32 %v1191, %v1125
        %v1194 = vmul.f32 %v1191, %v1127
        %v1195 = vadd.f32 %v1055, %v1192
        %v1196 = vadd.f32 %v1056, %v1193
        %v1197 = vadd.f32 %v1057, %v1194
        %s1198 = sld [smem:[#allocation2 + $0x32]]
        %v1199 = vstv %s1198
        %v1200 = vmul.f32 %v1199, %v1132
        %v1201 = vmul.f32 %v1199, %v1134
        %v1202 = vmul.f32 %v1199, %v1136
        %v1203 = vadd.f32 %v1195, %v1200
        %v1204 = vadd.f32 %v1196, %v1201
        %v1205 = vadd.f32 %v1197, %v1202
        %s1206 = sld [smem:[#allocation2 + $0x3b]]
        %v1207 = vstv %s1206
        %v1208 = vmul.f32 %v1207, %v1141
        %v1209 = vmul.f32 %v1207, %v1143
        %v1210 = vmul.f32 %v1207, %v1145
        %v1211 = vadd.f32 %v1203, %v1208
        %v1212 = vadd.f32 %v1204, %v1209
        %v1213 = vadd.f32 %v1205, %v1210
        %s1214 = sld [smem:[#allocation2 + $0x44]]
        %v1215 = vstv %s1214
        %v1216 = vmul.f32 %v1215, %v1150
        %v1217 = vmul.f32 %v1215, %v1152
        %v1218 = vmul.f32 %v1215, %v1154
        %v1219 = vadd.f32 %v1211, %v1216
        %v1220 = vadd.f32 %v1212, %v1217
        %v1221 = vadd.f32 %v1213, %v1218
        %s1222 = sld [smem:[#allocation2 + $0x4d]]
        %v1223 = vstv %s1222
        %v1224 = vmul.f32 %v1223, %v1123
        %v1225 = vmul.f32 %v1223, %v1125
        %v1226 = vmul.f32 %v1223, %v1127
        %v1227 = vadd.f32 %v1087, %v1224
        %v1228 = vadd.f32 %v1088, %v1225
        %v1229 = vadd.f32 %v1089, %v1226
        %s1230 = sld [smem:[#allocation2 + $0x56]]
        %v1231 = vstv %s1230
        %v1232 = vmul.f32 %v1231, %v1132
        %v1233 = vmul.f32 %v1231, %v1134
        %v1234 = vmul.f32 %v1231, %v1136
        %v1235 = vadd.f32 %v1227, %v1232
        %v1236 = vadd.f32 %v1228, %v1233
        %v1237 = vadd.f32 %v1229, %v1234
        %s1238 = sld [smem:[#allocation2 + $0x5f]]
        %v1239 = vstv %s1238
        %v1240 = vmul.f32 %v1239, %v1141
        %v1241 = vmul.f32 %v1239, %v1143
        %v1242 = vmul.f32 %v1239, %v1145
        %v1243 = vadd.f32 %v1235, %v1240
        %v1244 = vadd.f32 %v1236, %v1241
        %v1245 = vadd.f32 %v1237, %v1242
        %s1246 = sld [smem:[#allocation2 + $0x68]]
        %v1247 = vstv %s1246
        %v1248 = vmul.f32 %v1247, %v1150
        %v1249 = vmul.f32 %v1247, %v1152
        %v1250 = vmul.f32 %v1247, %v1154
        %v1251 = vadd.f32 %v1243, %v1248
        %v1252 = vadd.f32 %v1244, %v1249
        %v1253 = vadd.f32 %v1245, %v1250
        %s1254 = sld [smem:[#allocation2 + $0x71]]
        %v1255 = vstv %s1254
        %v1256 = vmul.f32 %v1255, %v1123
        %v1257 = vmul.f32 %v1255, %v1125
        %v1258 = vmul.f32 %v1255, %v1127
        %v1259 = vadd.f32 %v1119, %v1256
        %v1260 = vadd.f32 %v1120, %v1257
        %v1261 = vadd.f32 %v1121, %v1258
        %s1262 = sld [smem:[#allocation2 + $0x7a]]
        %v1263 = vstv %s1262
        %v1264 = vmul.f32 %v1263, %v1132
        %v1265 = vmul.f32 %v1263, %v1134
        %v1266 = vmul.f32 %v1263, %v1136
        %v1267 = vadd.f32 %v1259, %v1264
        %v1268 = vadd.f32 %v1260, %v1265
        %v1269 = vadd.f32 %v1261, %v1266
        %s1270 = sld [smem:[#allocation2 + $0x83]]
        %v1271 = vstv %s1270
        %v1272 = vmul.f32 %v1271, %v1141
        %v1273 = vmul.f32 %v1271, %v1143
        %v1274 = vmul.f32 %v1271, %v1145
        %v1275 = vadd.f32 %v1267, %v1272
        %v1276 = vadd.f32 %v1268, %v1273
        %v1277 = vadd.f32 %v1269, %v1274
        %s1278 = sld [smem:[#allocation2 + $0x8c]]
        %v1279 = vstv %s1278
        %v1280 = vmul.f32 %v1279, %v1150
        %v1281 = vmul.f32 %v1279, %v1152
        %v1282 = vmul.f32 %v1279, %v1154
        %v1283 = vadd.f32 %v1275, %v1280
        %v1284 = vadd.f32 %v1276, %v1281
        %v1285 = vadd.f32 %v1277, %v1282
        %vm1286 = vcmask 1046528
        %v1287 = vrot.slane %v294, 1
        %v1288 = vrot.slane %v295, 1
        %v1289 = vsel %vm1286, %v1287, %v1288
        %v1290 = vrot.slane %v296, 1
        %v1291 = vsel %vm1286, %v1288, %v1290
        %v1296 = vsel %vm1286, %v1290, %v1287
        %1298 = vrot.lane.b32.xlu0 %v1289, 1
        %v1299 = vpop.permute.xlu0 %1298
        %1300 = vrot.lane.b32.xlu0 %v1291, 1
        %v1301 = vpop.permute.xlu0 %1300
        %1302 = vrot.lane.b32.xlu0 %v1296, 1
        %v1303 = vpop.permute.xlu0 %1302
        %v1307 = vrot.slane %v298, 1
        %v1308 = vrot.slane %v299, 1
        %v1309 = vsel %vm1286, %v1307, %v1308
        %v1310 = vrot.slane %v300, 1
        %v1311 = vsel %vm1286, %v1308, %v1310
        %v1316 = vsel %vm1286, %v1310, %v1307
        %1318 = vrot.lane.b32.xlu0 %v1309, 1
        %v1319 = vpop.permute.xlu0 %1318
        %1320 = vrot.lane.b32.xlu0 %v1311, 1
        %v1321 = vpop.permute.xlu0 %1320
        %1322 = vrot.lane.b32.xlu0 %v1316, 1
        %v1323 = vpop.permute.xlu0 %1322
        %v1327 = vrot.slane %v302, 1
        %v1328 = vrot.slane %v303, 1
        %v1329 = vsel %vm1286, %v1327, %v1328
        %v1330 = vrot.slane %v304, 1
        %v1331 = vsel %vm1286, %v1328, %v1330
        %v1336 = vsel %vm1286, %v1330, %v1327
        %1338 = vrot.lane.b32.xlu0 %v1329, 1
        %v1339 = vpop.permute.xlu0 %1338
        %1340 = vrot.lane.b32.xlu0 %v1331, 1
        %v1341 = vpop.permute.xlu0 %1340
        %1342 = vrot.lane.b32.xlu0 %v1336, 1
        %v1343 = vpop.permute.xlu0 %1342
        %v1347 = vrot.slane %v306, 1
        %v1348 = vrot.slane %v307, 1
        %v1349 = vsel %vm1286, %v1347, %v1348
        %v1350 = vrot.slane %v308, 1
        %v1351 = vsel %vm1286, %v1348, %v1350
        %v1356 = vsel %vm1286, %v1350, %v1347
        %1358 = vrot.lane.b32.xlu0 %v1349, 1
        %v1359 = vpop.permute.xlu0 %1358
        %1360 = vrot.lane.b32.xlu0 %v1351, 1
        %v1361 = vpop.permute.xlu0 %1360
        %1362 = vrot.lane.b32.xlu0 %v1356, 1
        %v1363 = vpop.permute.xlu0 %1362
        %s1367 = sld [smem:[#allocation2 + $0x6]]
        %v1368 = vstv %s1367
        %v1369 = vmul.f32 %v1368, %v1299
        %v1370 = vmul.f32 %v1368, %v1301
        %v1371 = vmul.f32 %v1368, %v1303
        %v1372 = vadd.f32 %v1187, %v1369
        %v1373 = vadd.f32 %v1188, %v1370
        %v1374 = vadd.f32 %v1189, %v1371
        %s1375 = sld [smem:[#allocation2 + $0xf]]
        %v1376 = vstv %s1375
        %v1377 = vmul.f32 %v1376, %v1319
        %v1378 = vmul.f32 %v1376, %v1321
        %v1379 = vmul.f32 %v1376, %v1323
        %v1380 = vadd.f32 %v1372, %v1377
        %v1381 = vadd.f32 %v1373, %v1378
        %v1382 = vadd.f32 %v1374, %v1379
        %s1383 = sld [smem:[#allocation2 + $0x18]]
        %v1384 = vstv %s1383
        %v1385 = vmul.f32 %v1384, %v1339
        %v1386 = vmul.f32 %v1384, %v1341
        %v1387 = vmul.f32 %v1384, %v1343
        %v1388 = vadd.f32 %v1380, %v1385
        %v1389 = vadd.f32 %v1381, %v1386
        %v1390 = vadd.f32 %v1382, %v1387
        %s1391 = sld [smem:[#allocation2 + $0x21]]
        %v1392 = vstv %s1391
        %v1393 = vmul.f32 %v1392, %v1359
        %v1394 = vmul.f32 %v1392, %v1361
        %v1395 = vmul.f32 %v1392, %v1363
        %v1396 = vadd.f32 %v1388, %v1393
        %v1397 = vadd.f32 %v1389, %v1394
        %v1398 = vadd.f32 %v1390, %v1395
        %s1399 = sld [smem:[#allocation2 + $0x2a]]
        %v1400 = vstv %s1399
        %v1401 = vmul.f32 %v1400, %v1299
        %v1402 = vmul.f32 %v1400, %v1301
        %v1403 = vmul.f32 %v1400, %v1303
        %v1404 = vadd.f32 %v1219, %v1401
        %v1405 = vadd.f32 %v1220, %v1402
        %v1406 = vadd.f32 %v1221, %v1403
        %s1407 = sld [smem:[#allocation2 + $0x33]]
        %v1408 = vstv %s1407
        %v1409 = vmul.f32 %v1408, %v1319
        %v1410 = vmul.f32 %v1408, %v1321
        %v1411 = vmul.f32 %v1408, %v1323
        %v1412 = vadd.f32 %v1404, %v1409
        %v1413 = vadd.f32 %v1405, %v1410
        %v1414 = vadd.f32 %v1406, %v1411
        %s1415 = sld [smem:[#allocation2 + $0x3c]]
        %v1416 = vstv %s1415
        %v1417 = vmul.f32 %v1416, %v1339
        %v1418 = vmul.f32 %v1416, %v1341
        %v1419 = vmul.f32 %v1416, %v1343
        %v1420 = vadd.f32 %v1412, %v1417
        %v1421 = vadd.f32 %v1413, %v1418
        %v1422 = vadd.f32 %v1414, %v1419
        %s1423 = sld [smem:[#allocation2 + $0x45]]
        %v1424 = vstv %s1423
        %v1425 = vmul.f32 %v1424, %v1359
        %v1426 = vmul.f32 %v1424, %v1361
        %v1427 = vmul.f32 %v1424, %v1363
        %v1428 = vadd.f32 %v1420, %v1425
        %v1429 = vadd.f32 %v1421, %v1426
        %v1430 = vadd.f32 %v1422, %v1427
        %s1431 = sld [smem:[#allocation2 + $0x4e]]
        %v1432 = vstv %s1431
        %v1433 = vmul.f32 %v1432, %v1299
        %v1434 = vmul.f32 %v1432, %v1301
        %v1435 = vmul.f32 %v1432, %v1303
        %v1436 = vadd.f32 %v1251, %v1433
        %v1437 = vadd.f32 %v1252, %v1434
        %v1438 = vadd.f32 %v1253, %v1435
        %s1439 = sld [smem:[#allocation2 + $0x57]]
        %v1440 = vstv %s1439
        %v1441 = vmul.f32 %v1440, %v1319
        %v1442 = vmul.f32 %v1440, %v1321
        %v1443 = vmul.f32 %v1440, %v1323
        %v1444 = vadd.f32 %v1436, %v1441
        %v1445 = vadd.f32 %v1437, %v1442
        %v1446 = vadd.f32 %v1438, %v1443
        %s1447 = sld [smem:[#allocation2 + $0x60]]
        %v1448 = vstv %s1447
        %v1449 = vmul.f32 %v1448, %v1339
        %v1450 = vmul.f32 %v1448, %v1341
        %v1451 = vmul.f32 %v1448, %v1343
        %v1452 = vadd.f32 %v1444, %v1449
        %v1453 = vadd.f32 %v1445, %v1450
        %v1454 = vadd.f32 %v1446, %v1451
        %s1455 = sld [smem:[#allocation2 + $0x69]]
        %v1456 = vstv %s1455
        %v1457 = vmul.f32 %v1456, %v1359
        %v1458 = vmul.f32 %v1456, %v1361
        %v1459 = vmul.f32 %v1456, %v1363
        %v1460 = vadd.f32 %v1452, %v1457
        %v1461 = vadd.f32 %v1453, %v1458
        %v1462 = vadd.f32 %v1454, %v1459
        %s1463 = sld [smem:[#allocation2 + $0x72]]
        %v1464 = vstv %s1463
        %v1465 = vmul.f32 %v1464, %v1299
        %v1466 = vmul.f32 %v1464, %v1301
        %v1467 = vmul.f32 %v1464, %v1303
        %v1468 = vadd.f32 %v1283, %v1465
        %v1469 = vadd.f32 %v1284, %v1466
        %v1470 = vadd.f32 %v1285, %v1467
        %s1471 = sld [smem:[#allocation2 + $0x7b]]
        %v1472 = vstv %s1471
        %v1473 = vmul.f32 %v1472, %v1319
        %v1474 = vmul.f32 %v1472, %v1321
        %v1475 = vmul.f32 %v1472, %v1323
        %v1476 = vadd.f32 %v1468, %v1473
        %v1477 = vadd.f32 %v1469, %v1474
        %v1478 = vadd.f32 %v1470, %v1475
        %s1479 = sld [smem:[#allocation2 + $0x84]]
        %v1480 = vstv %s1479
        %v1481 = vmul.f32 %v1480, %v1339
        %v1482 = vmul.f32 %v1480, %v1341
        %v1483 = vmul.f32 %v1480, %v1343
        %v1484 = vadd.f32 %v1476, %v1481
        %v1485 = vadd.f32 %v1477, %v1482
        %v1486 = vadd.f32 %v1478, %v1483
        %s1487 = sld [smem:[#allocation2 + $0x8d]]
        %v1488 = vstv %s1487
        %v1489 = vmul.f32 %v1488, %v1359
        %v1490 = vmul.f32 %v1488, %v1361
        %v1491 = vmul.f32 %v1488, %v1363
        %v1492 = vadd.f32 %v1484, %v1489
        %v1493 = vadd.f32 %v1485, %v1490
        %v1494 = vadd.f32 %v1486, %v1491
        %s1495 = sld [smem:[#allocation2 + $0x7]]
        %v1496 = vstv %s1495
        %v1497 = vmul.f32 %v1496, %v1289
        %v1498 = vmul.f32 %v1496, %v1291
        %v1499 = vmul.f32 %v1496, %v1296
        %v1500 = vadd.f32 %v1396, %v1497
        %v1501 = vadd.f32 %v1397, %v1498
        %v1502 = vadd.f32 %v1398, %v1499
        %s1503 = sld [smem:[#allocation2 + $0x10]]
        %v1504 = vstv %s1503
        %v1505 = vmul.f32 %v1504, %v1309
        %v1506 = vmul.f32 %v1504, %v1311
        %v1507 = vmul.f32 %v1504, %v1316
        %v1508 = vadd.f32 %v1500, %v1505
        %v1509 = vadd.f32 %v1501, %v1506
        %v1510 = vadd.f32 %v1502, %v1507
        %s1511 = sld [smem:[#allocation2 + $0x19]]
        %v1512 = vstv %s1511
        %v1513 = vmul.f32 %v1512, %v1329
        %v1514 = vmul.f32 %v1512, %v1331
        %v1515 = vmul.f32 %v1512, %v1336
        %v1516 = vadd.f32 %v1508, %v1513
        %v1517 = vadd.f32 %v1509, %v1514
        %v1518 = vadd.f32 %v1510, %v1515
        %s1519 = sld [smem:[#allocation2 + $0x22]]
        %v1520 = vstv %s1519
        %v1521 = vmul.f32 %v1520, %v1349
        %v1522 = vmul.f32 %v1520, %v1351
        %v1523 = vmul.f32 %v1520, %v1356
        %v1524 = vadd.f32 %v1516, %v1521
        %v1525 = vadd.f32 %v1517, %v1522
        %v1526 = vadd.f32 %v1518, %v1523
        %s1527 = sld [smem:[#allocation2 + $0x2b]]
        %v1528 = vstv %s1527
        %v1529 = vmul.f32 %v1528, %v1289
        %v1530 = vmul.f32 %v1528, %v1291
        %v1531 = vmul.f32 %v1528, %v1296
        %v1532 = vadd.f32 %v1428, %v1529
        %v1533 = vadd.f32 %v1429, %v1530
        %v1534 = vadd.f32 %v1430, %v1531
        %s1535 = sld [smem:[#allocation2 + $0x34]]
        %v1536 = vstv %s1535
        %v1537 = vmul.f32 %v1536, %v1309
        %v1538 = vmul.f32 %v1536, %v1311
        %v1539 = vmul.f32 %v1536, %v1316
        %v1540 = vadd.f32 %v1532, %v1537
        %v1541 = vadd.f32 %v1533, %v1538
        %v1542 = vadd.f32 %v1534, %v1539
        %s1543 = sld [smem:[#allocation2 + $0x3d]]
        %v1544 = vstv %s1543
        %v1545 = vmul.f32 %v1544, %v1329
        %v1546 = vmul.f32 %v1544, %v1331
        %v1547 = vmul.f32 %v1544, %v1336
        %v1548 = vadd.f32 %v1540, %v1545
        %v1549 = vadd.f32 %v1541, %v1546
        %v1550 = vadd.f32 %v1542, %v1547
        %s1551 = sld [smem:[#allocation2 + $0x46]]
        %v1552 = vstv %s1551
        %v1553 = vmul.f32 %v1552, %v1349
        %v1554 = vmul.f32 %v1552, %v1351
        %v1555 = vmul.f32 %v1552, %v1356
        %v1556 = vadd.f32 %v1548, %v1553
        %v1557 = vadd.f32 %v1549, %v1554
        %v1558 = vadd.f32 %v1550, %v1555
        %s1559 = sld [smem:[#allocation2 + $0x4f]]
        %v1560 = vstv %s1559
        %v1561 = vmul.f32 %v1560, %v1289
        %v1562 = vmul.f32 %v1560, %v1291
        %v1563 = vmul.f32 %v1560, %v1296
        %v1564 = vadd.f32 %v1460, %v1561
        %v1565 = vadd.f32 %v1461, %v1562
        %v1566 = vadd.f32 %v1462, %v1563
        %s1567 = sld [smem:[#allocation2 + $0x58]]
        %v1568 = vstv %s1567
        %v1569 = vmul.f32 %v1568, %v1309
        %v1570 = vmul.f32 %v1568, %v1311
        %v1571 = vmul.f32 %v1568, %v1316
        %v1572 = vadd.f32 %v1564, %v1569
        %v1573 = vadd.f32 %v1565, %v1570
        %v1574 = vadd.f32 %v1566, %v1571
        %s1575 = sld [smem:[#allocation2 + $0x61]]
        %v1576 = vstv %s1575
        %v1577 = vmul.f32 %v1576, %v1329
        %v1578 = vmul.f32 %v1576, %v1331
        %v1579 = vmul.f32 %v1576, %v1336
        %v1580 = vadd.f32 %v1572, %v1577
        %v1581 = vadd.f32 %v1573, %v1578
        %v1582 = vadd.f32 %v1574, %v1579
        %s1583 = sld [smem:[#allocation2 + $0x6a]]
        %v1584 = vstv %s1583
        %v1585 = vmul.f32 %v1584, %v1349
        %v1586 = vmul.f32 %v1584, %v1351
        %v1587 = vmul.f32 %v1584, %v1356
        %v1588 = vadd.f32 %v1580, %v1585
        %v1589 = vadd.f32 %v1581, %v1586
        %v1590 = vadd.f32 %v1582, %v1587
        %s1591 = sld [smem:[#allocation2 + $0x73]]
        %v1592 = vstv %s1591
        %v1593 = vmul.f32 %v1592, %v1289
        %v1594 = vmul.f32 %v1592, %v1291
        %v1595 = vmul.f32 %v1592, %v1296
        %v1596 = vadd.f32 %v1492, %v1593
        %v1597 = vadd.f32 %v1493, %v1594
        %v1598 = vadd.f32 %v1494, %v1595
        %s1599 = sld [smem:[#allocation2 + $0x7c]]
        %v1600 = vstv %s1599
        %v1601 = vmul.f32 %v1600, %v1309
        %v1602 = vmul.f32 %v1600, %v1311
        %v1603 = vmul.f32 %v1600, %v1316
        %v1604 = vadd.f32 %v1596, %v1601
        %v1605 = vadd.f32 %v1597, %v1602
        %v1606 = vadd.f32 %v1598, %v1603
        %s1607 = sld [smem:[#allocation2 + $0x85]]
        %v1608 = vstv %s1607
        %v1609 = vmul.f32 %v1608, %v1329
        %v1610 = vmul.f32 %v1608, %v1331
        %v1611 = vmul.f32 %v1608, %v1336
        %v1612 = vadd.f32 %v1604, %v1609
        %v1613 = vadd.f32 %v1605, %v1610
        %v1614 = vadd.f32 %v1606, %v1611
        %s1615 = sld [smem:[#allocation2 + $0x8e]]
        %v1616 = vstv %s1615
        %v1617 = vmul.f32 %v1616, %v1349
        %v1618 = vmul.f32 %v1616, %v1351
        %v1619 = vmul.f32 %v1616, %v1356
        %v1620 = vadd.f32 %v1612, %v1617
        %v1621 = vadd.f32 %v1613, %v1618
        %v1622 = vadd.f32 %v1614, %v1619
        %1623 = vrot.lane.b32.xlu0 %v1289, 127
        %v1624 = vpop.permute.xlu0 %1623
        %1625 = vrot.lane.b32.xlu0 %v1291, 127
        %v1626 = vpop.permute.xlu0 %1625
        %1627 = vrot.lane.b32.xlu0 %v1296, 127
        %v1628 = vpop.permute.xlu0 %1627
        %1632 = vrot.lane.b32.xlu0 %v1309, 127
        %v1633 = vpop.permute.xlu0 %1632
        %1634 = vrot.lane.b32.xlu0 %v1311, 127
        %v1635 = vpop.permute.xlu0 %1634
        %1636 = vrot.lane.b32.xlu0 %v1316, 127
        %v1637 = vpop.permute.xlu0 %1636
        %1641 = vrot.lane.b32.xlu0 %v1329, 127
        %v1642 = vpop.permute.xlu0 %1641
        %1643 = vrot.lane.b32.xlu0 %v1331, 127
        %v1644 = vpop.permute.xlu0 %1643
        %1645 = vrot.lane.b32.xlu0 %v1336, 127
        %v1646 = vpop.permute.xlu0 %1645
        %1650 = vrot.lane.b32.xlu0 %v1349, 127
        %v1651 = vpop.permute.xlu0 %1650
        %1652 = vrot.lane.b32.xlu0 %v1351, 127
        %v1653 = vpop.permute.xlu0 %1652
        %1654 = vrot.lane.b32.xlu0 %v1356, 127
        %v1655 = vpop.permute.xlu0 %1654
        %s1659 = sld [smem:[#allocation2 + $0x8]]
        %v1660 = vstv %s1659
        %v1661 = vmul.f32 %v1660, %v1624
        %v1662 = vmul.f32 %v1660, %v1626
        %v1663 = vmul.f32 %v1660, %v1628
        %v1664 = vadd.f32 %v1524, %v1661
        %v1665 = vadd.f32 %v1525, %v1662
        %v1666 = vadd.f32 %v1526, %v1663
        %s1667 = sld [smem:[#allocation2 + $0x11]]
        %v1668 = vstv %s1667
        %v1669 = vmul.f32 %v1668, %v1633
        %v1670 = vmul.f32 %v1668, %v1635
        %v1671 = vmul.f32 %v1668, %v1637
        %v1672 = vadd.f32 %v1664, %v1669
        %v1673 = vadd.f32 %v1665, %v1670
        %v1674 = vadd.f32 %v1666, %v1671
        %s1675 = sld [smem:[#allocation2 + $0x1a]]
        %v1676 = vstv %s1675
        %v1677 = vmul.f32 %v1676, %v1642
        %v1678 = vmul.f32 %v1676, %v1644
        %v1679 = vmul.f32 %v1676, %v1646
        %v1680 = vadd.f32 %v1672, %v1677
        %v1681 = vadd.f32 %v1673, %v1678
        %v1682 = vadd.f32 %v1674, %v1679
        %s1683 = sld [smem:[#allocation2 + $0x23]]
        %v1684 = vstv %s1683
        %v1685 = vmul.f32 %v1684, %v1651
        %v1686 = vmul.f32 %v1684, %v1653
        %v1687 = vmul.f32 %v1684, %v1655
        %v1688 = vadd.f32 %v1680, %v1685
        %v1689 = vadd.f32 %v1681, %v1686
        %v1690 = vadd.f32 %v1682, %v1687
        %s1691 = sld [smem:[#allocation2 + $0x2c]]
        %v1692 = vstv %s1691
        %v1693 = vmul.f32 %v1692, %v1624
        %v1694 = vmul.f32 %v1692, %v1626
        %v1695 = vmul.f32 %v1692, %v1628
        %v1696 = vadd.f32 %v1556, %v1693
        %v1697 = vadd.f32 %v1557, %v1694
        %v1698 = vadd.f32 %v1558, %v1695
        %s1699 = sld [smem:[#allocation2 + $0x35]]
        %v1700 = vstv %s1699
        %v1701 = vmul.f32 %v1700, %v1633
        %v1702 = vmul.f32 %v1700, %v1635
        %v1703 = vmul.f32 %v1700, %v1637
        %v1704 = vadd.f32 %v1696, %v1701
        %v1705 = vadd.f32 %v1697, %v1702
        %v1706 = vadd.f32 %v1698, %v1703
        %s1707 = sld [smem:[#allocation2 + $0x3e]]
        %v1708 = vstv %s1707
        %v1709 = vmul.f32 %v1708, %v1642
        %v1710 = vmul.f32 %v1708, %v1644
        %v1711 = vmul.f32 %v1708, %v1646
        %v1712 = vadd.f32 %v1704, %v1709
        %v1713 = vadd.f32 %v1705, %v1710
        %v1714 = vadd.f32 %v1706, %v1711
        %s1715 = sld [smem:[#allocation2 + $0x47]]
        %v1716 = vstv %s1715
        %v1717 = vmul.f32 %v1716, %v1651
        %v1718 = vmul.f32 %v1716, %v1653
        %v1719 = vmul.f32 %v1716, %v1655
        %v1720 = vadd.f32 %v1712, %v1717
        %v1721 = vadd.f32 %v1713, %v1718
        %v1722 = vadd.f32 %v1714, %v1719
        %s1723 = sld [smem:[#allocation2 + $0x50]]
        %v1724 = vstv %s1723
        %v1725 = vmul.f32 %v1724, %v1624
        %v1726 = vmul.f32 %v1724, %v1626
        %v1727 = vmul.f32 %v1724, %v1628
        %v1728 = vadd.f32 %v1588, %v1725
        %v1729 = vadd.f32 %v1589, %v1726
        %v1730 = vadd.f32 %v1590, %v1727
        %s1731 = sld [smem:[#allocation2 + $0x59]]
        %v1732 = vstv %s1731
        %v1733 = vmul.f32 %v1732, %v1633
        %v1734 = vmul.f32 %v1732, %v1635
        %v1735 = vmul.f32 %v1732, %v1637
        %v1736 = vadd.f32 %v1728, %v1733
        %v1737 = vadd.f32 %v1729, %v1734
        %v1738 = vadd.f32 %v1730, %v1735
        %s1739 = sld [smem:[#allocation2 + $0x62]]
        %v1740 = vstv %s1739
        %v1741 = vmul.f32 %v1740, %v1642
        %v1742 = vmul.f32 %v1740, %v1644
        %v1743 = vmul.f32 %v1740, %v1646
        %v1744 = vadd.f32 %v1736, %v1741
        %v1745 = vadd.f32 %v1737, %v1742
        %v1746 = vadd.f32 %v1738, %v1743
        %s1747 = sld [smem:[#allocation2 + $0x6b]]
        %v1748 = vstv %s1747
        %v1749 = vmul.f32 %v1748, %v1651
        %v1750 = vmul.f32 %v1748, %v1653
        %v1751 = vmul.f32 %v1748, %v1655
        %v1752 = vadd.f32 %v1744, %v1749
        %v1753 = vadd.f32 %v1745, %v1750
        %v1754 = vadd.f32 %v1746, %v1751
        %s1755 = sld [smem:[#allocation2 + $0x74]]
        %v1756 = vstv %s1755
        %v1757 = vmul.f32 %v1756, %v1624
        %v1758 = vmul.f32 %v1756, %v1626
        %v1759 = vmul.f32 %v1756, %v1628
        %v1760 = vadd.f32 %v1620, %v1757
        %v1761 = vadd.f32 %v1621, %v1758
        %v1762 = vadd.f32 %v1622, %v1759
        %s1763 = sld [smem:[#allocation2 + $0x7d]]
        %v1764 = vstv %s1763
        %v1765 = vmul.f32 %v1764, %v1633
        %v1766 = vmul.f32 %v1764, %v1635
        %v1767 = vmul.f32 %v1764, %v1637
        %v1768 = vadd.f32 %v1760, %v1765
        %v1769 = vadd.f32 %v1761, %v1766
        %v1770 = vadd.f32 %v1762, %v1767
        %s1771 = sld [smem:[#allocation2 + $0x86]]
        %v1772 = vstv %s1771
        %v1773 = vmul.f32 %v1772, %v1642
        %v1774 = vmul.f32 %v1772, %v1644
        %v1775 = vmul.f32 %v1772, %v1646
        %v1776 = vadd.f32 %v1768, %v1773
        %v1777 = vadd.f32 %v1769, %v1774
        %v1778 = vadd.f32 %v1770, %v1775
        %s1779 = sld [smem:[#allocation2 + $0x8f]]
        %v1780 = vstv %s1779
        %v1781 = vmul.f32 %v1780, %v1651
        %v1782 = vmul.f32 %v1780, %v1653
        %v1783 = vmul.f32 %v1780, %v1655
        %v1784 = vadd.f32 %v1776, %v1781
        %v1785 = vadd.f32 %v1777, %v1782
        %v1786 = vadd.f32 %v1778, %v1783
        %v1787 = vmax.f32 %v1688, 0.0
        %v1788 = vmax.f32 %v1689, 0.0
        %v1789 = vmax.f32 %v1690, 0.0
        %v1790 = vmul.f32 %v1787, %v291
        %v1791 = vmul.f32 %v1788, %v292
        %v1792 = vmul.f32 %v1789, %v293
        %v1793 = vmax.f32 %v1720, 0.0
        %v1794 = vmax.f32 %v1721, 0.0
        %v1795 = vmax.f32 %v1722, 0.0
        %v1796 = vmul.f32 %v1793, %v291
        %v1797 = vmul.f32 %v1794, %v292
        %v1798 = vmul.f32 %v1795, %v293
        %v1799 = vmax.f32 %v1752, 0.0
        %v1800 = vmax.f32 %v1753, 0.0
        %v1801 = vmax.f32 %v1754, 0.0
        %v1802 = vmul.f32 %v1799, %v291
        %v1803 = vmul.f32 %v1800, %v292
        %v1804 = vmul.f32 %v1801, %v293
        %v1805 = vmax.f32 %v1784, 0.0
        %v1806 = vmax.f32 %v1785, 0.0
        %v1807 = vmax.f32 %v1786, 0.0
        %v1808 = vmul.f32 %v1805, %v291
        %v1809 = vmul.f32 %v1806, %v292
        %v1810 = vmul.f32 %v1807, %v293
        %s1811 = sld [smem:[#allocation8]]
        %v1812 = vstv %s1811
        %s1813 = sld [smem:[#allocation8 + $0x1]]
        %v1814 = vstv %s1813
        %s1815 = sld [smem:[#allocation8 + $0x2]]
        %v1816 = vstv %s1815
        %s1817 = sld [smem:[#allocation8 + $0x3]]
        %v1818 = vstv %s1817
        %v1820 = vrot.slane %v1792, 7
        %v1824 = vrot.slane %v1790, 7
        %v1825 = vrot.slane %v1791, 7
        %v1826 = vsel %vm322, %v1824, %v1825
        %v1829 = vsel %vm322, %v1820, %v1824
        %1831 = vrot.lane.b32.xlu0 %v1829, 1
        %v1832 = vpop.permute.xlu0 %1831
        %1833 = vrot.lane.b32.xlu0 %v1826, 1
        %v1834 = vpop.permute.xlu0 %1833
        %v1838 = vrot.slane %v1798, 7
        %v1842 = vrot.slane %v1796, 7
        %v1843 = vrot.slane %v1797, 7
        %v1844 = vsel %vm322, %v1842, %v1843
        %v1847 = vsel %vm322, %v1838, %v1842
        %1849 = vrot.lane.b32.xlu0 %v1847, 1
        %v1850 = vpop.permute.xlu0 %1849
        %1851 = vrot.lane.b32.xlu0 %v1844, 1
        %v1852 = vpop.permute.xlu0 %1851
        %v1856 = vrot.slane %v1804, 7
        %v1860 = vrot.slane %v1802, 7
        %v1861 = vrot.slane %v1803, 7
        %v1862 = vsel %vm322, %v1860, %v1861
        %v1865 = vsel %vm322, %v1856, %v1860
        %1867 = vrot.lane.b32.xlu0 %v1865, 1
        %v1868 = vpop.permute.xlu0 %1867
        %1869 = vrot.lane.b32.xlu0 %v1862, 1
        %v1870 = vpop.permute.xlu0 %1869
        %v1874 = vrot.slane %v1810, 7
        %v1878 = vrot.slane %v1808, 7
        %v1879 = vrot.slane %v1809, 7
        %v1880 = vsel %vm322, %v1878, %v1879
        %v1883 = vsel %vm322, %v1874, %v1878
        %1885 = vrot.lane.b32.xlu0 %v1883, 1
        %v1886 = vpop.permute.xlu0 %1885
        %1887 = vrot.lane.b32.xlu0 %v1880, 1
        %v1888 = vpop.permute.xlu0 %1887
        %s1891 = sld [smem:[#allocation7]]
        %v1892 = vstv %s1891
        %v1893 = vmul.f32 %v1892, %v1832
        %v1894 = vmul.f32 %v1892, %v1834
        %v1895 = vadd.f32 %v1812, %v1893
        %v1896 = vadd.f32 %v1812, %v1894
        %s1897 = sld [smem:[#allocation7 + $0x9]]
        %v1898 = vstv %s1897
        %v1899 = vmul.f32 %v1898, %v1850
        %v1900 = vmul.f32 %v1898, %v1852
        %v1901 = vadd.f32 %v1895, %v1899
        %v1902 = vadd.f32 %v1896, %v1900
        %s1903 = sld [smem:[#allocation7 + $0x12]]
        %v1904 = vstv %s1903
        %v1905 = vmul.f32 %v1904, %v1868
        %v1906 = vmul.f32 %v1904, %v1870
        %v1907 = vadd.f32 %v1901, %v1905
        %v1908 = vadd.f32 %v1902, %v1906
        %s1909 = sld [smem:[#allocation7 + $0x1b]]
        %v1910 = vstv %s1909
        %v1911 = vmul.f32 %v1910, %v1886
        %v1912 = vmul.f32 %v1910, %v1888
        %v1913 = vadd.f32 %v1907, %v1911
        %v1914 = vadd.f32 %v1908, %v1912
        %s1915 = sld [smem:[#allocation7 + $0x24]]
        %v1916 = vstv %s1915
        %v1917 = vmul.f32 %v1916, %v1832
        %v1918 = vmul.f32 %v1916, %v1834
        %v1919 = vadd.f32 %v1814, %v1917
        %v1920 = vadd.f32 %v1814, %v1918
        %s1921 = sld [smem:[#allocation7 + $0x2d]]
        %v1922 = vstv %s1921
        %v1923 = vmul.f32 %v1922, %v1850
        %v1924 = vmul.f32 %v1922, %v1852
        %v1925 = vadd.f32 %v1919, %v1923
        %v1926 = vadd.f32 %v1920, %v1924
        %s1927 = sld [smem:[#allocation7 + $0x36]]
        %v1928 = vstv %s1927
        %v1929 = vmul.f32 %v1928, %v1868
        %v1930 = vmul.f32 %v1928, %v1870
        %v1931 = vadd.f32 %v1925, %v1929
        %v1932 = vadd.f32 %v1926, %v1930
        %s1933 = sld [smem:[#allocation7 + $0x3f]]
        %v1934 = vstv %s1933
        %v1935 = vmul.f32 %v1934, %v1886
        %v1936 = vmul.f32 %v1934, %v1888
        %v1937 = vadd.f32 %v1931, %v1935
        %v1938 = vadd.f32 %v1932, %v1936
        %s1939 = sld [smem:[#allocation7 + $0x48]]
        %v1940 = vstv %s1939
        %v1941 = vmul.f32 %v1940, %v1832
        %v1942 = vmul.f32 %v1940, %v1834
        %v1943 = vadd.f32 %v1816, %v1941
        %v1944 = vadd.f32 %v1816, %v1942
        %s1945 = sld [smem:[#allocation7 + $0x51]]
        %v1946 = vstv %s1945
        %v1947 = vmul.f32 %v1946, %v1850
        %v1948 = vmul.f32 %v1946, %v1852
        %v1949 = vadd.f32 %v1943, %v1947
        %v1950 = vadd.f32 %v1944, %v1948
        %s1951 = sld [smem:[#allocation7 + $0x5a]]
        %v1952 = vstv %s1951
        %v1953 = vmul.f32 %v1952, %v1868
        %v1954 = vmul.f32 %v1952, %v1870
        %v1955 = vadd.f32 %v1949, %v1953
        %v1956 = vadd.f32 %v1950, %v1954
        %s1957 = sld [smem:[#allocation7 + $0x63]]
        %v1958 = vstv %s1957
        %v1959 = vmul.f32 %v1958, %v1886
        %v1960 = vmul.f32 %v1958, %v1888
        %v1961 = vadd.f32 %v1955, %v1959
        %v1962 = vadd.f32 %v1956, %v1960
        %s1963 = sld [smem:[#allocation7 + $0x6c]]
        %v1964 = vstv %s1963
        %v1965 = vmul.f32 %v1964, %v1832
        %v1966 = vmul.f32 %v1964, %v1834
        %v1967 = vadd.f32 %v1818, %v1965
        %v1968 = vadd.f32 %v1818, %v1966
        %s1969 = sld [smem:[#allocation7 + $0x75]]
        %v1970 = vstv %s1969
        %v1971 = vmul.f32 %v1970, %v1850
        %v1972 = vmul.f32 %v1970, %v1852
        %v1973 = vadd.f32 %v1967, %v1971
        %v1974 = vadd.f32 %v1968, %v1972
        %s1975 = sld [smem:[#allocation7 + $0x7e]]
        %v1976 = vstv %s1975
        %v1977 = vmul.f32 %v1976, %v1868
        %v1978 = vmul.f32 %v1976, %v1870
        %v1979 = vadd.f32 %v1973, %v1977
        %v1980 = vadd.f32 %v1974, %v1978
        %s1981 = sld [smem:[#allocation7 + $0x87]]
        %v1982 = vstv %s1981
        %v1983 = vmul.f32 %v1982, %v1886
        %v1984 = vmul.f32 %v1982, %v1888
        %v1985 = vadd.f32 %v1979, %v1983
        %v1986 = vadd.f32 %v1980, %v1984
        %s1987 = sld [smem:[#allocation7 + $0x1]]
        %v1988 = vstv %s1987
        %v1989 = vmul.f32 %v1988, %v1829
        %v1990 = vmul.f32 %v1988, %v1826
        %v1991 = vadd.f32 %v1913, %v1989
        %v1992 = vadd.f32 %v1914, %v1990
        %s1993 = sld [smem:[#allocation7 + $0xa]]
        %v1994 = vstv %s1993
        %v1995 = vmul.f32 %v1994, %v1847
        %v1996 = vmul.f32 %v1994, %v1844
        %v1997 = vadd.f32 %v1991, %v1995
        %v1998 = vadd.f32 %v1992, %v1996
        %s1999 = sld [smem:[#allocation7 + $0x13]]
        %v2000 = vstv %s1999
        %v2001 = vmul.f32 %v2000, %v1865
        %v2002 = vmul.f32 %v2000, %v1862
        %v2003 = vadd.f32 %v1997, %v2001
        %v2004 = vadd.f32 %v1998, %v2002
        %s2005 = sld [smem:[#allocation7 + $0x1c]]
        %v2006 = vstv %s2005
        %v2007 = vmul.f32 %v2006, %v1883
        %v2008 = vmul.f32 %v2006, %v1880
        %v2009 = vadd.f32 %v2003, %v2007
        %v2010 = vadd.f32 %v2004, %v2008
        %s2011 = sld [smem:[#allocation7 + $0x25]]
        %v2012 = vstv %s2011
        %v2013 = vmul.f32 %v2012, %v1829
        %v2014 = vmul.f32 %v2012, %v1826
        %v2015 = vadd.f32 %v1937, %v2013
        %v2016 = vadd.f32 %v1938, %v2014
        %s2017 = sld [smem:[#allocation7 + $0x2e]]
        %v2018 = vstv %s2017
        %v2019 = vmul.f32 %v2018, %v1847
        %v2020 = vmul.f32 %v2018, %v1844
        %v2021 = vadd.f32 %v2015, %v2019
        %v2022 = vadd.f32 %v2016, %v2020
        %s2023 = sld [smem:[#allocation7 + $0x37]]
        %v2024 = vstv %s2023
        %v2025 = vmul.f32 %v2024, %v1865
        %v2026 = vmul.f32 %v2024, %v1862
        %v2027 = vadd.f32 %v2021, %v2025
        %v2028 = vadd.f32 %v2022, %v2026
        %s2029 = sld [smem:[#allocation7 + $0x40]]
        %v2030 = vstv %s2029
        %v2031 = vmul.f32 %v2030, %v1883
        %v2032 = vmul.f32 %v2030, %v1880
        %v2033 = vadd.f32 %v2027, %v2031
        %v2034 = vadd.f32 %v2028, %v2032
        %s2035 = sld [smem:[#allocation7 + $0x49]]
        %v2036 = vstv %s2035
        %v2037 = vmul.f32 %v2036, %v1829
        %v2038 = vmul.f32 %v2036, %v1826
        %v2039 = vadd.f32 %v1961, %v2037
        %v2040 = vadd.f32 %v1962, %v2038
        %s2041 = sld [smem:[#allocation7 + $0x52]]
        %v2042 = vstv %s2041
        %v2043 = vmul.f32 %v2042, %v1847
        %v2044 = vmul.f32 %v2042, %v1844
        %v2045 = vadd.f32 %v2039, %v2043
        %v2046 = vadd.f32 %v2040, %v2044
        %s2047 = sld [smem:[#allocation7 + $0x5b]]
        %v2048 = vstv %s2047
        %v2049 = vmul.f32 %v2048, %v1865
        %v2050 = vmul.f32 %v2048, %v1862
        %v2051 = vadd.f32 %v2045, %v2049
        %v2052 = vadd.f32 %v2046, %v2050
        %s2053 = sld [smem:[#allocation7 + $0x64]]
        %v2054 = vstv %s2053
        %v2055 = vmul.f32 %v2054, %v1883
        %v2056 = vmul.f32 %v2054, %v1880
        %v2057 = vadd.f32 %v2051, %v2055
        %v2058 = vadd.f32 %v2052, %v2056
        %s2059 = sld [smem:[#allocation7 + $0x6d]]
        %v2060 = vstv %s2059
        %v2061 = vmul.f32 %v2060, %v1829
        %v2062 = vmul.f32 %v2060, %v1826
        %v2063 = vadd.f32 %v1985, %v2061
        %v2064 = vadd.f32 %v1986, %v2062
        %s2065 = sld [smem:[#allocation7 + $0x76]]
        %v2066 = vstv %s2065
        %v2067 = vmul.f32 %v2066, %v1847
        %v2068 = vmul.f32 %v2066, %v1844
        %v2069 = vadd.f32 %v2063, %v2067
        %v2070 = vadd.f32 %v2064, %v2068
        %s2071 = sld [smem:[#allocation7 + $0x7f]]
        %v2072 = vstv %s2071
        %v2073 = vmul.f32 %v2072, %v1865
        %v2074 = vmul.f32 %v2072, %v1862
        %v2075 = vadd.f32 %v2069, %v2073
        %v2076 = vadd.f32 %v2070, %v2074
        %s2077 = sld [smem:[#allocation7 + $0x88]]
        %v2078 = vstv %s2077
        %v2079 = vmul.f32 %v2078, %v1883
        %v2080 = vmul.f32 %v2078, %v1880
        %v2081 = vadd.f32 %v2075, %v2079
        %v2082 = vadd.f32 %v2076, %v2080
        %2083 = vrot.lane.b32.xlu0 %v1829, 127
        %v2084 = vpop.permute.xlu0 %2083
        %2085 = vrot.lane.b32.xlu0 %v1826, 127
        %v2086 = vpop.permute.xlu0 %2085
        %2089 = vrot.lane.b32.xlu0 %v1847, 127
        %v2090 = vpop.permute.xlu0 %2089
        %2091 = vrot.lane.b32.xlu0 %v1844, 127
        %v2092 = vpop.permute.xlu0 %2091
        %2095 = vrot.lane.b32.xlu0 %v1865, 127
        %v2096 = vpop.permute.xlu0 %2095
        %2097 = vrot.lane.b32.xlu0 %v1862, 127
        %v2098 = vpop.permute.xlu0 %2097
        %2101 = vrot.lane.b32.xlu0 %v1883, 127
        %v2102 = vpop.permute.xlu0 %2101
        %2103 = vrot.lane.b32.xlu0 %v1880, 127
        %v2104 = vpop.permute.xlu0 %2103
        %s2107 = sld [smem:[#allocation7 + $0x2]]
        %v2108 = vstv %s2107
        %v2109 = vmul.f32 %v2108, %v2084
        %v2110 = vmul.f32 %v2108, %v2086
        %v2111 = vadd.f32 %v2009, %v2109
        %v2112 = vadd.f32 %v2010, %v2110
        %s2113 = sld [smem:[#allocation7 + $0xb]]
        %v2114 = vstv %s2113
        %v2115 = vmul.f32 %v2114, %v2090
        %v2116 = vmul.f32 %v2114, %v2092
        %v2117 = vadd.f32 %v2111, %v2115
        %v2118 = vadd.f32 %v2112, %v2116
        %s2119 = sld [smem:[#allocation7 + $0x14]]
        %v2120 = vstv %s2119
        %v2121 = vmul.f32 %v2120, %v2096
        %v2122 = vmul.f32 %v2120, %v2098
        %v2123 = vadd.f32 %v2117, %v2121
        %v2124 = vadd.f32 %v2118, %v2122
        %s2125 = sld [smem:[#allocation7 + $0x1d]]
        %v2126 = vstv %s2125
        %v2127 = vmul.f32 %v2126, %v2102
        %v2128 = vmul.f32 %v2126, %v2104
        %v2129 = vadd.f32 %v2123, %v2127
        %v2130 = vadd.f32 %v2124, %v2128
        %s2131 = sld [smem:[#allocation7 + $0x26]]
        %v2132 = vstv %s2131
        %v2133 = vmul.f32 %v2132, %v2084
        %v2134 = vmul.f32 %v2132, %v2086
        %v2135 = vadd.f32 %v2033, %v2133
        %v2136 = vadd.f32 %v2034, %v2134
        %s2137 = sld [smem:[#allocation7 + $0x2f]]
        %v2138 = vstv %s2137
        %v2139 = vmul.f32 %v2138, %v2090
        %v2140 = vmul.f32 %v2138, %v2092
        %v2141 = vadd.f32 %v2135, %v2139
        %v2142 = vadd.f32 %v2136, %v2140
        %s2143 = sld [smem:[#allocation7 + $0x38]]
        %v2144 = vstv %s2143
        %v2145 = vmul.f32 %v2144, %v2096
        %v2146 = vmul.f32 %v2144, %v2098
        %v2147 = vadd.f32 %v2141, %v2145
        %v2148 = vadd.f32 %v2142, %v2146
        %s2149 = sld [smem:[#allocation7 + $0x41]]
        %v2150 = vstv %s2149
        %v2151 = vmul.f32 %v2150, %v2102
        %v2152 = vmul.f32 %v2150, %v2104
        %v2153 = vadd.f32 %v2147, %v2151
        %v2154 = vadd.f32 %v2148, %v2152
        %s2155 = sld [smem:[#allocation7 + $0x4a]]
        %v2156 = vstv %s2155
        %v2157 = vmul.f32 %v2156, %v2084
        %v2158 = vmul.f32 %v2156, %v2086
        %v2159 = vadd.f32 %v2057, %v2157
        %v2160 = vadd.f32 %v2058, %v2158
        %s2161 = sld [smem:[#allocation7 + $0x53]]
        %v2162 = vstv %s2161
        %v2163 = vmul.f32 %v2162, %v2090
        %v2164 = vmul.f32 %v2162, %v2092
        %v2165 = vadd.f32 %v2159, %v2163
        %v2166 = vadd.f32 %v2160, %v2164
        %s2167 = sld [smem:[#allocation7 + $0x5c]]
        %v2168 = vstv %s2167
        %v2169 = vmul.f32 %v2168, %v2096
        %v2170 = vmul.f32 %v2168, %v2098
        %v2171 = vadd.f32 %v2165, %v2169
        %v2172 = vadd.f32 %v2166, %v2170
        %s2173 = sld [smem:[#allocation7 + $0x65]]
        %v2174 = vstv %s2173
        %v2175 = vmul.f32 %v2174, %v2102
        %v2176 = vmul.f32 %v2174, %v2104
        %v2177 = vadd.f32 %v2171, %v2175
        %v2178 = vadd.f32 %v2172, %v2176
        %s2179 = sld [smem:[#allocation7 + $0x6e]]
        %v2180 = vstv %s2179
        %v2181 = vmul.f32 %v2180, %v2084
        %v2182 = vmul.f32 %v2180, %v2086
        %v2183 = vadd.f32 %v2081, %v2181
        %v2184 = vadd.f32 %v2082, %v2182
        %s2185 = sld [smem:[#allocation7 + $0x77]]
        %v2186 = vstv %s2185
        %v2187 = vmul.f32 %v2186, %v2090
        %v2188 = vmul.f32 %v2186, %v2092
        %v2189 = vadd.f32 %v2183, %v2187
        %v2190 = vadd.f32 %v2184, %v2188
        %s2191 = sld [smem:[#allocation7 + $0x80]]
        %v2192 = vstv %s2191
        %v2193 = vmul.f32 %v2192, %v2096
        %v2194 = vmul.f32 %v2192, %v2098
        %v2195 = vadd.f32 %v2189, %v2193
        %v2196 = vadd.f32 %v2190, %v2194
        %s2197 = sld [smem:[#allocation7 + $0x89]]
        %v2198 = vstv %s2197
        %v2199 = vmul.f32 %v2198, %v2102
        %v2200 = vmul.f32 %v2198, %v2104
        %v2201 = vadd.f32 %v2195, %v2199
        %v2202 = vadd.f32 %v2196, %v2200
        %2203 = vrot.lane.b32.xlu0 %v1790, 1
        %v2204 = vpop.permute.xlu0 %2203
        %2205 = vrot.lane.b32.xlu0 %v1791, 1
        %v2206 = vpop.permute.xlu0 %2205
        %2209 = vrot.lane.b32.xlu0 %v1796, 1
        %v2210 = vpop.permute.xlu0 %2209
        %2211 = vrot.lane.b32.xlu0 %v1797, 1
        %v2212 = vpop.permute.xlu0 %2211
        %2215 = vrot.lane.b32.xlu0 %v1802, 1
        %v2216 = vpop.permute.xlu0 %2215
        %2217 = vrot.lane.b32.xlu0 %v1803, 1
        %v2218 = vpop.permute.xlu0 %2217
        %2221 = vrot.lane.b32.xlu0 %v1808, 1
        %v2222 = vpop.permute.xlu0 %2221
        %2223 = vrot.lane.b32.xlu0 %v1809, 1
        %v2224 = vpop.permute.xlu0 %2223
        %s2227 = sld [smem:[#allocation7 + $0x3]]
        %v2228 = vstv %s2227
        %v2229 = vmul.f32 %v2228, %v2204
        %v2230 = vmul.f32 %v2228, %v2206
        %v2231 = vadd.f32 %v2129, %v2229
        %v2232 = vadd.f32 %v2130, %v2230
        %s2233 = sld [smem:[#allocation7 + $0xc]]
        %v2234 = vstv %s2233
        %v2235 = vmul.f32 %v2234, %v2210
        %v2236 = vmul.f32 %v2234, %v2212
        %v2237 = vadd.f32 %v2231, %v2235
        %v2238 = vadd.f32 %v2232, %v2236
        %s2239 = sld [smem:[#allocation7 + $0x15]]
        %v2240 = vstv %s2239
        %v2241 = vmul.f32 %v2240, %v2216
        %v2242 = vmul.f32 %v2240, %v2218
        %v2243 = vadd.f32 %v2237, %v2241
        %v2244 = vadd.f32 %v2238, %v2242
        %s2245 = sld [smem:[#allocation7 + $0x1e]]
        %v2246 = vstv %s2245
        %v2247 = vmul.f32 %v2246, %v2222
        %v2248 = vmul.f32 %v2246, %v2224
        %v2249 = vadd.f32 %v2243, %v2247
        %v2250 = vadd.f32 %v2244, %v2248
        %s2251 = sld [smem:[#allocation7 + $0x27]]
        %v2252 = vstv %s2251
        %v2253 = vmul.f32 %v2252, %v2204
        %v2254 = vmul.f32 %v2252, %v2206
        %v2255 = vadd.f32 %v2153, %v2253
        %v2256 = vadd.f32 %v2154, %v2254
        %s2257 = sld [smem:[#allocation7 + $0x30]]
        %v2258 = vstv %s2257
        %v2259 = vmul.f32 %v2258, %v2210
        %v2260 = vmul.f32 %v2258, %v2212
        %v2261 = vadd.f32 %v2255, %v2259
        %v2262 = vadd.f32 %v2256, %v2260
        %s2263 = sld [smem:[#allocation7 + $0x39]]
        %v2264 = vstv %s2263
        %v2265 = vmul.f32 %v2264, %v2216
        %v2266 = vmul.f32 %v2264, %v2218
        %v2267 = vadd.f32 %v2261, %v2265
        %v2268 = vadd.f32 %v2262, %v2266
        %s2269 = sld [smem:[#allocation7 + $0x42]]
        %v2270 = vstv %s2269
        %v2271 = vmul.f32 %v2270, %v2222
        %v2272 = vmul.f32 %v2270, %v2224
        %v2273 = vadd.f32 %v2267, %v2271
        %v2274 = vadd.f32 %v2268, %v2272
        %s2275 = sld [smem:[#allocation7 + $0x4b]]
        %v2276 = vstv %s2275
        %v2277 = vmul.f32 %v2276, %v2204
        %v2278 = vmul.f32 %v2276, %v2206
        %v2279 = vadd.f32 %v2177, %v2277
        %v2280 = vadd.f32 %v2178, %v2278
        %s2281 = sld [smem:[#allocation7 + $0x54]]
        %v2282 = vstv %s2281
        %v2283 = vmul.f32 %v2282, %v2210
        %v2284 = vmul.f32 %v2282, %v2212
        %v2285 = vadd.f32 %v2279, %v2283
        %v2286 = vadd.f32 %v2280, %v2284
        %s2287 = sld [smem:[#allocation7 + $0x5d]]
        %v2288 = vstv %s2287
        %v2289 = vmul.f32 %v2288, %v2216
        %v2290 = vmul.f32 %v2288, %v2218
        %v2291 = vadd.f32 %v2285, %v2289
        %v2292 = vadd.f32 %v2286, %v2290
        %s2293 = sld [smem:[#allocation7 + $0x66]]
        %v2294 = vstv %s2293
        %v2295 = vmul.f32 %v2294, %v2222
        %v2296 = vmul.f32 %v2294, %v2224
        %v2297 = vadd.f32 %v2291, %v2295
        %v2298 = vadd.f32 %v2292, %v2296
        %s2299 = sld [smem:[#allocation7 + $0x6f]]
        %v2300 = vstv %s2299
        %v2301 = vmul.f32 %v2300, %v2204
        %v2302 = vmul.f32 %v2300, %v2206
        %v2303 = vadd.f32 %v2201, %v2301
        %v2304 = vadd.f32 %v2202, %v2302
        %s2305 = sld [smem:[#allocation7 + $0x78]]
        %v2306 = vstv %s2305
        %v2307 = vmul.f32 %v2306, %v2210
        %v2308 = vmul.f32 %v2306, %v2212
        %v2309 = vadd.f32 %v2303, %v2307
        %v2310 = vadd.f32 %v2304, %v2308
        %s2311 = sld [smem:[#allocation7 + $0x81]]
        %v2312 = vstv %s2311
        %v2313 = vmul.f32 %v2312, %v2216
        %v2314 = vmul.f32 %v2312, %v2218
        %v2315 = vadd.f32 %v2309, %v2313
        %v2316 = vadd.f32 %v2310, %v2314
        %s2317 = sld [smem:[#allocation7 + $0x8a]]
        %v2318 = vstv %s2317
        %v2319 = vmul.f32 %v2318, %v2222
        %v2320 = vmul.f32 %v2318, %v2224
        %v2321 = vadd.f32 %v2315, %v2319
        %v2322 = vadd.f32 %v2316, %v2320
        %s2323 = sld [smem:[#allocation7 + $0x4]]
        %v2324 = vstv %s2323
        %v2325 = vmul.f32 %v2324, %v1790
        %v2326 = vmul.f32 %v2324, %v1791
        %v2327 = vadd.f32 %v2249, %v2325
        %v2328 = vadd.f32 %v2250, %v2326
        %s2329 = sld [smem:[#allocation7 + $0xd]]
        %v2330 = vstv %s2329
        %v2331 = vmul.f32 %v2330, %v1796
        %v2332 = vmul.f32 %v2330, %v1797
        %v2333 = vadd.f32 %v2327, %v2331
        %v2334 = vadd.f32 %v2328, %v2332
        %s2335 = sld [smem:[#allocation7 + $0x16]]
        %v2336 = vstv %s2335
        %v2337 = vmul.f32 %v2336, %v1802
        %v2338 = vmul.f32 %v2336, %v1803
        %v2339 = vadd.f32 %v2333, %v2337
        %v2340 = vadd.f32 %v2334, %v2338
        %s2341 = sld [smem:[#allocation7 + $0x1f]]
        %v2342 = vstv %s2341
        %v2343 = vmul.f32 %v2342, %v1808
        %v2344 = vmul.f32 %v2342, %v1809
        %v2345 = vadd.f32 %v2339, %v2343
        %v2346 = vadd.f32 %v2340, %v2344
        %s2347 = sld [smem:[#allocation7 + $0x28]]
        %v2348 = vstv %s2347
        %v2349 = vmul.f32 %v2348, %v1790
        %v2350 = vmul.f32 %v2348, %v1791
        %v2351 = vadd.f32 %v2273, %v2349
        %v2352 = vadd.f32 %v2274, %v2350
        %s2353 = sld [smem:[#allocation7 + $0x31]]
        %v2354 = vstv %s2353
        %v2355 = vmul.f32 %v2354, %v1796
        %v2356 = vmul.f32 %v2354, %v1797
        %v2357 = vadd.f32 %v2351, %v2355
        %v2358 = vadd.f32 %v2352, %v2356
        %s2359 = sld [smem:[#allocation7 + $0x3a]]
        %v2360 = vstv %s2359
        %v2361 = vmul.f32 %v2360, %v1802
        %v2362 = vmul.f32 %v2360, %v1803
        %v2363 = vadd.f32 %v2357, %v2361
        %v2364 = vadd.f32 %v2358, %v2362
        %s2365 = sld [smem:[#allocation7 + $0x43]]
        %v2366 = vstv %s2365
        %v2367 = vmul.f32 %v2366, %v1808
        %v2368 = vmul.f32 %v2366, %v1809
        %v2369 = vadd.f32 %v2363, %v2367
        %v2370 = vadd.f32 %v2364, %v2368
        %s2371 = sld [smem:[#allocation7 + $0x4c]]
        %v2372 = vstv %s2371
        %v2373 = vmul.f32 %v2372, %v1790
        %v2374 = vmul.f32 %v2372, %v1791
        %v2375 = vadd.f32 %v2297, %v2373
        %v2376 = vadd.f32 %v2298, %v2374
        %s2377 = sld [smem:[#allocation7 + $0x55]]
        %v2378 = vstv %s2377
        %v2379 = vmul.f32 %v2378, %v1796
        %v2380 = vmul.f32 %v2378, %v1797
        %v2381 = vadd.f32 %v2375, %v2379
        %v2382 = vadd.f32 %v2376, %v2380
        %s2383 = sld [smem:[#allocation7 + $0x5e]]
        %v2384 = vstv %s2383
        %v2385 = vmul.f32 %v2384, %v1802
        %v2386 = vmul.f32 %v2384, %v1803
        %v2387 = vadd.f32 %v2381, %v2385
        %v2388 = vadd.f32 %v2382, %v2386
        %s2389 = sld [smem:[#allocation7 + $0x67]]
        %v2390 = vstv %s2389
        %v2391 = vmul.f32 %v2390, %v1808
        %v2392 = vmul.f32 %v2390, %v1809
        %v2393 = vadd.f32 %v2387, %v2391
        %v2394 = vadd.f32 %v2388, %v2392
        %s2395 = sld [smem:[#allocation7 + $0x70]]
        %v2396 = vstv %s2395
        %v2397 = vmul.f32 %v2396, %v1790
        %v2398 = vmul.f32 %v2396, %v1791
        %v2399 = vadd.f32 %v2321, %v2397
        %v2400 = vadd.f32 %v2322, %v2398
        %s2401 = sld [smem:[#allocation7 + $0x79]]
        %v2402 = vstv %s2401
        %v2403 = vmul.f32 %v2402, %v1796
        %v2404 = vmul.f32 %v2402, %v1797
        %v2405 = vadd.f32 %v2399, %v2403
        %v2406 = vadd.f32 %v2400, %v2404
        %s2407 = sld [smem:[#allocation7 + $0x82]]
        %v2408 = vstv %s2407
        %v2409 = vmul.f32 %v2408, %v1802
        %v2410 = vmul.f32 %v2408, %v1803
        %v2411 = vadd.f32 %v2405, %v2409
        %v2412 = vadd.f32 %v2406, %v2410
        %s2413 = sld [smem:[#allocation7 + $0x8b]]
        %v2414 = vstv %s2413
        %v2415 = vmul.f32 %v2414, %v1808
        %v2416 = vmul.f32 %v2414, %v1809
        %v2417 = vadd.f32 %v2411, %v2415
        %v2418 = vadd.f32 %v2412, %v2416
        %2419 = vrot.lane.b32.xlu0 %v1790, 127
        %v2420 = vpop.permute.xlu0 %2419
        %2421 = vrot.lane.b32.xlu0 %v1791, 127
        %v2422 = vpop.permute.xlu0 %2421
        %2425 = vrot.lane.b32.xlu0 %v1796, 127
        %v2426 = vpop.permute.xlu0 %2425
        %2427 = vrot.lane.b32.xlu0 %v1797, 127
        %v2428 = vpop.permute.xlu0 %2427
        %2431 = vrot.lane.b32.xlu0 %v1802, 127
        %v2432 = vpop.permute.xlu0 %2431
        %2433 = vrot.lane.b32.xlu0 %v1803, 127
        %v2434 = vpop.permute.xlu0 %2433
        %2437 = vrot.lane.b32.xlu0 %v1808, 127
        %v2438 = vpop.permute.xlu0 %2437
        %2439 = vrot.lane.b32.xlu0 %v1809, 127
        %v2440 = vpop.permute.xlu0 %2439
        %s2443 = sld [smem:[#allocation7 + $0x5]]
        %v2444 = vstv %s2443
        %v2445 = vmul.f32 %v2444, %v2420
        %v2446 = vmul.f32 %v2444, %v2422
        %v2447 = vadd.f32 %v2345, %v2445
        %v2448 = vadd.f32 %v2346, %v2446
        %s2449 = sld [smem:[#allocation7 + $0xe]]
        %v2450 = vstv %s2449
        %v2451 = vmul.f32 %v2450, %v2426
        %v2452 = vmul.f32 %v2450, %v2428
        %v2453 = vadd.f32 %v2447, %v2451
        %v2454 = vadd.f32 %v2448, %v2452
        %s2455 = sld [smem:[#allocation7 + $0x17]]
        %v2456 = vstv %s2455
        %v2457 = vmul.f32 %v2456, %v2432
        %v2458 = vmul.f32 %v2456, %v2434
        %v2459 = vadd.f32 %v2453, %v2457
        %v2460 = vadd.f32 %v2454, %v2458
        %s2461 = sld [smem:[#allocation7 + $0x20]]
        %v2462 = vstv %s2461
        %v2463 = vmul.f32 %v2462, %v2438
        %v2464 = vmul.f32 %v2462, %v2440
        %v2465 = vadd.f32 %v2459, %v2463
        %v2466 = vadd.f32 %v2460, %v2464
        %s2467 = sld [smem:[#allocation7 + $0x29]]
        %v2468 = vstv %s2467
        %v2469 = vmul.f32 %v2468, %v2420
        %v2470 = vmul.f32 %v2468, %v2422
        %v2471 = vadd.f32 %v2369, %v2469
        %v2472 = vadd.f32 %v2370, %v2470
        %s2473 = sld [smem:[#allocation7 + $0x32]]
        %v2474 = vstv %s2473
        %v2475 = vmul.f32 %v2474, %v2426
        %v2476 = vmul.f32 %v2474, %v2428
        %v2477 = vadd.f32 %v2471, %v2475
        %v2478 = vadd.f32 %v2472, %v2476
        %s2479 = sld [smem:[#allocation7 + $0x3b]]
        %v2480 = vstv %s2479
        %v2481 = vmul.f32 %v2480, %v2432
        %v2482 = vmul.f32 %v2480, %v2434
        %v2483 = vadd.f32 %v2477, %v2481
        %v2484 = vadd.f32 %v2478, %v2482
        %s2485 = sld [smem:[#allocation7 + $0x44]]
        %v2486 = vstv %s2485
        %v2487 = vmul.f32 %v2486, %v2438
        %v2488 = vmul.f32 %v2486, %v2440
        %v2489 = vadd.f32 %v2483, %v2487
        %v2490 = vadd.f32 %v2484, %v2488
        %s2491 = sld [smem:[#allocation7 + $0x4d]]
        %v2492 = vstv %s2491
        %v2493 = vmul.f32 %v2492, %v2420
        %v2494 = vmul.f32 %v2492, %v2422
        %v2495 = vadd.f32 %v2393, %v2493
        %v2496 = vadd.f32 %v2394, %v2494
        %s2497 = sld [smem:[#allocation7 + $0x56]]
        %v2498 = vstv %s2497
        %v2499 = vmul.f32 %v2498, %v2426
        %v2500 = vmul.f32 %v2498, %v2428
        %v2501 = vadd.f32 %v2495, %v2499
        %v2502 = vadd.f32 %v2496, %v2500
        %s2503 = sld [smem:[#allocation7 + $0x5f]]
        %v2504 = vstv %s2503
        %v2505 = vmul.f32 %v2504, %v2432
        %v2506 = vmul.f32 %v2504, %v2434
        %v2507 = vadd.f32 %v2501, %v2505
        %v2508 = vadd.f32 %v2502, %v2506
        %s2509 = sld [smem:[#allocation7 + $0x68]]
        %v2510 = vstv %s2509
        %v2511 = vmul.f32 %v2510, %v2438
        %v2512 = vmul.f32 %v2510, %v2440
        %v2513 = vadd.f32 %v2507, %v2511
        %v2514 = vadd.f32 %v2508, %v2512
        %s2515 = sld [smem:[#allocation7 + $0x71]]
        %v2516 = vstv %s2515
        %v2517 = vmul.f32 %v2516, %v2420
        %v2518 = vmul.f32 %v2516, %v2422
        %v2519 = vadd.f32 %v2417, %v2517
        %v2520 = vadd.f32 %v2418, %v2518
        %s2521 = sld [smem:[#allocation7 + $0x7a]]
        %v2522 = vstv %s2521
        %v2523 = vmul.f32 %v2522, %v2426
        %v2524 = vmul.f32 %v2522, %v2428
        %v2525 = vadd.f32 %v2519, %v2523
        %v2526 = vadd.f32 %v2520, %v2524
        %s2527 = sld [smem:[#allocation7 + $0x83]]
        %v2528 = vstv %s2527
        %v2529 = vmul.f32 %v2528, %v2432
        %v2530 = vmul.f32 %v2528, %v2434
        %v2531 = vadd.f32 %v2525, %v2529
        %v2532 = vadd.f32 %v2526, %v2530
        %s2533 = sld [smem:[#allocation7 + $0x8c]]
        %v2534 = vstv %s2533
        %v2535 = vmul.f32 %v2534, %v2438
        %v2536 = vmul.f32 %v2534, %v2440
        %v2537 = vadd.f32 %v2531, %v2535
        %v2538 = vadd.f32 %v2532, %v2536
        %v2539 = vrot.slane %v1790, 1
        %v2540 = vrot.slane %v1791, 1
        %v2541 = vsel %vm1286, %v2539, %v2540
        %v2542 = vrot.slane %v1792, 1
        %v2543 = vsel %vm1286, %v2540, %v2542
        %2546 = vrot.lane.b32.xlu0 %v2541, 1
        %v2547 = vpop.permute.xlu0 %2546
        %2548 = vrot.lane.b32.xlu0 %v2543, 1
        %v2549 = vpop.permute.xlu0 %2548
        %v2552 = vrot.slane %v1796, 1
        %v2553 = vrot.slane %v1797, 1
        %v2554 = vsel %vm1286, %v2552, %v2553
        %v2555 = vrot.slane %v1798, 1
        %v2556 = vsel %vm1286, %v2553, %v2555
        %2559 = vrot.lane.b32.xlu0 %v2554, 1
        %v2560 = vpop.permute.xlu0 %2559
        %2561 = vrot.lane.b32.xlu0 %v2556, 1
        %v2562 = vpop.permute.xlu0 %2561
        %v2565 = vrot.slane %v1802, 1
        %v2566 = vrot.slane %v1803, 1
        %v2567 = vsel %vm1286, %v2565, %v2566
        %v2568 = vrot.slane %v1804, 1
        %v2569 = vsel %vm1286, %v2566, %v2568
        %2572 = vrot.lane.b32.xlu0 %v2567, 1
        %v2573 = vpop.permute.xlu0 %2572
        %2574 = vrot.lane.b32.xlu0 %v2569, 1
        %v2575 = vpop.permute.xlu0 %2574
        %v2578 = vrot.slane %v1808, 1
        %v2579 = vrot.slane %v1809, 1
        %v2580 = vsel %vm1286, %v2578, %v2579
        %v2581 = vrot.slane %v1810, 1
        %v2582 = vsel %vm1286, %v2579, %v2581
        %2585 = vrot.lane.b32.xlu0 %v2580, 1
        %v2586 = vpop.permute.xlu0 %2585
        %2587 = vrot.lane.b32.xlu0 %v2582, 1
        %v2588 = vpop.permute.xlu0 %2587
        %s2591 = sld [smem:[#allocation7 + $0x6]]
        %v2592 = vstv %s2591
        %v2593 = vmul.f32 %v2592, %v2547
        %v2594 = vmul.f32 %v2592, %v2549
        %v2595 = vadd.f32 %v2465, %v2593
        %v2596 = vadd.f32 %v2466, %v2594
        %s2597 = sld [smem:[#allocation7 + $0xf]]
        %v2598 = vstv %s2597
        %v2599 = vmul.f32 %v2598, %v2560
        %v2600 = vmul.f32 %v2598, %v2562
        %v2601 = vadd.f32 %v2595, %v2599
        %v2602 = vadd.f32 %v2596, %v2600
        %s2603 = sld [smem:[#allocation7 + $0x18]]
        %v2604 = vstv %s2603
        %v2605 = vmul.f32 %v2604, %v2573
        %v2606 = vmul.f32 %v2604, %v2575
        %v2607 = vadd.f32 %v2601, %v2605
        %v2608 = vadd.f32 %v2602, %v2606
        %s2609 = sld [smem:[#allocation7 + $0x21]]
        %v2610 = vstv %s2609
        %v2611 = vmul.f32 %v2610, %v2586
        %v2612 = vmul.f32 %v2610, %v2588
        %v2613 = vadd.f32 %v2607, %v2611
        %v2614 = vadd.f32 %v2608, %v2612
        %s2615 = sld [smem:[#allocation7 + $0x2a]]
        %v2616 = vstv %s2615
        %v2617 = vmul.f32 %v2616, %v2547
        %v2618 = vmul.f32 %v2616, %v2549
        %v2619 = vadd.f32 %v2489, %v2617
        %v2620 = vadd.f32 %v2490, %v2618
        %s2621 = sld [smem:[#allocation7 + $0x33]]
        %v2622 = vstv %s2621
        %v2623 = vmul.f32 %v2622, %v2560
        %v2624 = vmul.f32 %v2622, %v2562
        %v2625 = vadd.f32 %v2619, %v2623
        %v2626 = vadd.f32 %v2620, %v2624
        %s2627 = sld [smem:[#allocation7 + $0x3c]]
        %v2628 = vstv %s2627
        %v2629 = vmul.f32 %v2628, %v2573
        %v2630 = vmul.f32 %v2628, %v2575
        %v2631 = vadd.f32 %v2625, %v2629
        %v2632 = vadd.f32 %v2626, %v2630
        %s2633 = sld [smem:[#allocation7 + $0x45]]
        %v2634 = vstv %s2633
        %v2635 = vmul.f32 %v2634, %v2586
        %v2636 = vmul.f32 %v2634, %v2588
        %v2637 = vadd.f32 %v2631, %v2635
        %v2638 = vadd.f32 %v2632, %v2636
        %s2639 = sld [smem:[#allocation7 + $0x4e]]
        %v2640 = vstv %s2639
        %v2641 = vmul.f32 %v2640, %v2547
        %v2642 = vmul.f32 %v2640, %v2549
        %v2643 = vadd.f32 %v2513, %v2641
        %v2644 = vadd.f32 %v2514, %v2642
        %s2645 = sld [smem:[#allocation7 + $0x57]]
        %v2646 = vstv %s2645
        %v2647 = vmul.f32 %v2646, %v2560
        %v2648 = vmul.f32 %v2646, %v2562
        %v2649 = vadd.f32 %v2643, %v2647
        %v2650 = vadd.f32 %v2644, %v2648
        %s2651 = sld [smem:[#allocation7 + $0x60]]
        %v2652 = vstv %s2651
        %v2653 = vmul.f32 %v2652, %v2573
        %v2654 = vmul.f32 %v2652, %v2575
        %v2655 = vadd.f32 %v2649, %v2653
        %v2656 = vadd.f32 %v2650, %v2654
        %s2657 = sld [smem:[#allocation7 + $0x69]]
        %v2658 = vstv %s2657
        %v2659 = vmul.f32 %v2658, %v2586
        %v2660 = vmul.f32 %v2658, %v2588
        %v2661 = vadd.f32 %v2655, %v2659
        %v2662 = vadd.f32 %v2656, %v2660
        %s2663 = sld [smem:[#allocation7 + $0x72]]
        %v2664 = vstv %s2663
        %v2665 = vmul.f32 %v2664, %v2547
        %v2666 = vmul.f32 %v2664, %v2549
        %v2667 = vadd.f32 %v2537, %v2665
        %v2668 = vadd.f32 %v2538, %v2666
        %s2669 = sld [smem:[#allocation7 + $0x7b]]
        %v2670 = vstv %s2669
        %v2671 = vmul.f32 %v2670, %v2560
        %v2672 = vmul.f32 %v2670, %v2562
        %v2673 = vadd.f32 %v2667, %v2671
        %v2674 = vadd.f32 %v2668, %v2672
        %s2675 = sld [smem:[#allocation7 + $0x84]]
        %v2676 = vstv %s2675
        %v2677 = vmul.f32 %v2676, %v2573
        %v2678 = vmul.f32 %v2676, %v2575
        %v2679 = vadd.f32 %v2673, %v2677
        %v2680 = vadd.f32 %v2674, %v2678
        %s2681 = sld [smem:[#allocation7 + $0x8d]]
        %v2682 = vstv %s2681
        %v2683 = vmul.f32 %v2682, %v2586
        %v2684 = vmul.f32 %v2682, %v2588
        %v2685 = vadd.f32 %v2679, %v2683
        %v2686 = vadd.f32 %v2680, %v2684
        %s2687 = sld [smem:[#allocation7 + $0x7]]
        %v2688 = vstv %s2687
        %v2689 = vmul.f32 %v2688, %v2541
        %v2690 = vmul.f32 %v2688, %v2543
        %v2691 = vadd.f32 %v2613, %v2689
        %v2692 = vadd.f32 %v2614, %v2690
        %s2693 = sld [smem:[#allocation7 + $0x10]]
        %v2694 = vstv %s2693
        %v2695 = vmul.f32 %v2694, %v2554
        %v2696 = vmul.f32 %v2694, %v2556
        %v2697 = vadd.f32 %v2691, %v2695
        %v2698 = vadd.f32 %v2692, %v2696
        %s2699 = sld [smem:[#allocation7 + $0x19]]
        %v2700 = vstv %s2699
        %v2701 = vmul.f32 %v2700, %v2567
        %v2702 = vmul.f32 %v2700, %v2569
        %v2703 = vadd.f32 %v2697, %v2701
        %v2704 = vadd.f32 %v2698, %v2702
        %s2705 = sld [smem:[#allocation7 + $0x22]]
        %v2706 = vstv %s2705
        %v2707 = vmul.f32 %v2706, %v2580
        %v2708 = vmul.f32 %v2706, %v2582
        %v2709 = vadd.f32 %v2703, %v2707
        %v2710 = vadd.f32 %v2704, %v2708
        %s2711 = sld [smem:[#allocation7 + $0x2b]]
        %v2712 = vstv %s2711
        %v2713 = vmul.f32 %v2712, %v2541
        %v2714 = vmul.f32 %v2712, %v2543
        %v2715 = vadd.f32 %v2637, %v2713
        %v2716 = vadd.f32 %v2638, %v2714
        %s2717 = sld [smem:[#allocation7 + $0x34]]
        %v2718 = vstv %s2717
        %v2719 = vmul.f32 %v2718, %v2554
        %v2720 = vmul.f32 %v2718, %v2556
        %v2721 = vadd.f32 %v2715, %v2719
        %v2722 = vadd.f32 %v2716, %v2720
        %s2723 = sld [smem:[#allocation7 + $0x3d]]
        %v2724 = vstv %s2723
        %v2725 = vmul.f32 %v2724, %v2567
        %v2726 = vmul.f32 %v2724, %v2569
        %v2727 = vadd.f32 %v2721, %v2725
        %v2728 = vadd.f32 %v2722, %v2726
        %s2729 = sld [smem:[#allocation7 + $0x46]]
        %v2730 = vstv %s2729
        %v2731 = vmul.f32 %v2730, %v2580
        %v2732 = vmul.f32 %v2730, %v2582
        %v2733 = vadd.f32 %v2727, %v2731
        %v2734 = vadd.f32 %v2728, %v2732
        %s2735 = sld [smem:[#allocation7 + $0x4f]]
        %v2736 = vstv %s2735
        %v2737 = vmul.f32 %v2736, %v2541
        %v2738 = vmul.f32 %v2736, %v2543
        %v2739 = vadd.f32 %v2661, %v2737
        %v2740 = vadd.f32 %v2662, %v2738
        %s2741 = sld [smem:[#allocation7 + $0x58]]
        %v2742 = vstv %s2741
        %v2743 = vmul.f32 %v2742, %v2554
        %v2744 = vmul.f32 %v2742, %v2556
        %v2745 = vadd.f32 %v2739, %v2743
        %v2746 = vadd.f32 %v2740, %v2744
        %s2747 = sld [smem:[#allocation7 + $0x61]]
        %v2748 = vstv %s2747
        %v2749 = vmul.f32 %v2748, %v2567
        %v2750 = vmul.f32 %v2748, %v2569
        %v2751 = vadd.f32 %v2745, %v2749
        %v2752 = vadd.f32 %v2746, %v2750
        %s2753 = sld [smem:[#allocation7 + $0x6a]]
        %v2754 = vstv %s2753
        %v2755 = vmul.f32 %v2754, %v2580
        %v2756 = vmul.f32 %v2754, %v2582
        %v2757 = vadd.f32 %v2751, %v2755
        %v2758 = vadd.f32 %v2752, %v2756
        %s2759 = sld [smem:[#allocation7 + $0x73]]
        %v2760 = vstv %s2759
        %v2761 = vmul.f32 %v2760, %v2541
        %v2762 = vmul.f32 %v2760, %v2543
        %v2763 = vadd.f32 %v2685, %v2761
        %v2764 = vadd.f32 %v2686, %v2762
        %s2765 = sld [smem:[#allocation7 + $0x7c]]
        %v2766 = vstv %s2765
        %v2767 = vmul.f32 %v2766, %v2554
        %v2768 = vmul.f32 %v2766, %v2556
        %v2769 = vadd.f32 %v2763, %v2767
        %v2770 = vadd.f32 %v2764, %v2768
        %s2771 = sld [smem:[#allocation7 + $0x85]]
        %v2772 = vstv %s2771
        %v2773 = vmul.f32 %v2772, %v2567
        %v2774 = vmul.f32 %v2772, %v2569
        %v2775 = vadd.f32 %v2769, %v2773
        %v2776 = vadd.f32 %v2770, %v2774
        %s2777 = sld [smem:[#allocation7 + $0x8e]]
        %v2778 = vstv %s2777
        %v2779 = vmul.f32 %v2778, %v2580
        %v2780 = vmul.f32 %v2778, %v2582
        %v2781 = vadd.f32 %v2775, %v2779
        %v2782 = vadd.f32 %v2776, %v2780
        %2783 = vrot.lane.b32.xlu0 %v2541, 127
        %v2784 = vpop.permute.xlu0 %2783
        %2785 = vrot.lane.b32.xlu0 %v2543, 127
        %v2786 = vpop.permute.xlu0 %2785
        %2789 = vrot.lane.b32.xlu0 %v2554, 127
        %v2790 = vpop.permute.xlu0 %2789
        %2791 = vrot.lane.b32.xlu0 %v2556, 127
        %v2792 = vpop.permute.xlu0 %2791
        %2795 = vrot.lane.b32.xlu0 %v2567, 127
        %v2796 = vpop.permute.xlu0 %2795
        %2797 = vrot.lane.b32.xlu0 %v2569, 127
        %v2798 = vpop.permute.xlu0 %2797
        %2801 = vrot.lane.b32.xlu0 %v2580, 127
        %v2802 = vpop.permute.xlu0 %2801
        %2803 = vrot.lane.b32.xlu0 %v2582, 127
        %v2804 = vpop.permute.xlu0 %2803
        %s2807 = sld [smem:[#allocation7 + $0x8]]
        %v2808 = vstv %s2807
        %v2809 = vmul.f32 %v2808, %v2784
        %v2810 = vmul.f32 %v2808, %v2786
        %v2811 = vadd.f32 %v2709, %v2809
        %v2812 = vadd.f32 %v2710, %v2810
        %s2813 = sld [smem:[#allocation7 + $0x11]]
        %v2814 = vstv %s2813
        %v2815 = vmul.f32 %v2814, %v2790
        %v2816 = vmul.f32 %v2814, %v2792
        %v2817 = vadd.f32 %v2811, %v2815
        %v2818 = vadd.f32 %v2812, %v2816
        %s2819 = sld [smem:[#allocation7 + $0x1a]]
        %v2820 = vstv %s2819
        %v2821 = vmul.f32 %v2820, %v2796
        %v2822 = vmul.f32 %v2820, %v2798
        %v2823 = vadd.f32 %v2817, %v2821
        %v2824 = vadd.f32 %v2818, %v2822
        %s2825 = sld [smem:[#allocation7 + $0x23]]
        %v2826 = vstv %s2825
        %v2827 = vmul.f32 %v2826, %v2802
        %v2828 = vmul.f32 %v2826, %v2804
        %v2829 = vadd.f32 %v2823, %v2827
        %v2830 = vadd.f32 %v2824, %v2828
        %s2831 = sld [smem:[#allocation7 + $0x2c]]
        %v2832 = vstv %s2831
        %v2833 = vmul.f32 %v2832, %v2784
        %v2834 = vmul.f32 %v2832, %v2786
        %v2835 = vadd.f32 %v2733, %v2833
        %v2836 = vadd.f32 %v2734, %v2834
        %s2837 = sld [smem:[#allocation7 + $0x35]]
        %v2838 = vstv %s2837
        %v2839 = vmul.f32 %v2838, %v2790
        %v2840 = vmul.f32 %v2838, %v2792
        %v2841 = vadd.f32 %v2835, %v2839
        %v2842 = vadd.f32 %v2836, %v2840
        %s2843 = sld [smem:[#allocation7 + $0x3e]]
        %v2844 = vstv %s2843
        %v2845 = vmul.f32 %v2844, %v2796
        %v2846 = vmul.f32 %v2844, %v2798
        %v2847 = vadd.f32 %v2841, %v2845
        %v2848 = vadd.f32 %v2842, %v2846
        %s2849 = sld [smem:[#allocation7 + $0x47]]
        %v2850 = vstv %s2849
        %v2851 = vmul.f32 %v2850, %v2802
        %v2852 = vmul.f32 %v2850, %v2804
        %v2853 = vadd.f32 %v2847, %v2851
        %v2854 = vadd.f32 %v2848, %v2852
        %s2855 = sld [smem:[#allocation7 + $0x50]]
        %v2856 = vstv %s2855
        %v2857 = vmul.f32 %v2856, %v2784
        %v2858 = vmul.f32 %v2856, %v2786
        %v2859 = vadd.f32 %v2757, %v2857
        %v2860 = vadd.f32 %v2758, %v2858
        %s2861 = sld [smem:[#allocation7 + $0x59]]
        %v2862 = vstv %s2861
        %v2863 = vmul.f32 %v2862, %v2790
        %v2864 = vmul.f32 %v2862, %v2792
        %v2865 = vadd.f32 %v2859, %v2863
        %v2866 = vadd.f32 %v2860, %v2864
        %s2867 = sld [smem:[#allocation7 + $0x62]]
        %v2868 = vstv %s2867
        %v2869 = vmul.f32 %v2868, %v2796
        %v2870 = vmul.f32 %v2868, %v2798
        %v2871 = vadd.f32 %v2865, %v2869
        %v2872 = vadd.f32 %v2866, %v2870
        %s2873 = sld [smem:[#allocation7 + $0x6b]]
        %v2874 = vstv %s2873
        %v2875 = vmul.f32 %v2874, %v2802
        %v2876 = vmul.f32 %v2874, %v2804
        %v2877 = vadd.f32 %v2871, %v2875
        %v2878 = vadd.f32 %v2872, %v2876
        %s2879 = sld [smem:[#allocation7 + $0x74]]
        %v2880 = vstv %s2879
        %v2881 = vmul.f32 %v2880, %v2784
        %v2882 = vmul.f32 %v2880, %v2786
        %v2883 = vadd.f32 %v2781, %v2881
        %v2884 = vadd.f32 %v2782, %v2882
        %s2885 = sld [smem:[#allocation7 + $0x7d]]
        %v2886 = vstv %s2885
        %v2887 = vmul.f32 %v2886, %v2790
        %v2888 = vmul.f32 %v2886, %v2792
        %v2889 = vadd.f32 %v2883, %v2887
        %v2890 = vadd.f32 %v2884, %v2888
        %s2891 = sld [smem:[#allocation7 + $0x86]]
        %v2892 = vstv %s2891
        %v2893 = vmul.f32 %v2892, %v2796
        %v2894 = vmul.f32 %v2892, %v2798
        %v2895 = vadd.f32 %v2889, %v2893
        %v2896 = vadd.f32 %v2890, %v2894
        %s2897 = sld [smem:[#allocation7 + $0x8f]]
        %v2898 = vstv %s2897
        %v2899 = vmul.f32 %v2898, %v2802
        %v2900 = vmul.f32 %v2898, %v2804
        %v2901 = vadd.f32 %v2895, %v2899
        %v2902 = vadd.f32 %v2896, %v2900
        %v2903 = vld [vmem:[%s274] sm:$0xff]
        %v2904 = vld [vmem:[%s274 + $0x8] sm:$0xff]
        %v2905 = vadd.f32 %v2829, %v2903
        %v2906 = vadd.f32 %v2830, %v2904
        %2907 = vst [vmem:[%s269] sm:$0xff] %v2905
        %2908 = vst [vmem:[%s269 + $0x8] sm:$0xff] %v2906
        %v2909 = vld [vmem:[%s297] sm:$0xff]
        %v2910 = vld [vmem:[%s297 + $0x8] sm:$0xff]
        %v2911 = vadd.f32 %v2853, %v2909
        %v2912 = vadd.f32 %v2854, %v2910
        %s2913 = scalar_lea.vmem %s269, 16 [#allocation10]
        %2914 = vst [vmem:[%s2913] sm:$0xff] %v2911
        %2915 = vst [vmem:[%s2913 + $0x8] sm:$0xff] %v2912
        %v2916 = vld [vmem:[%s301] sm:$0xff]
        %v2917 = vld [vmem:[%s301 + $0x8] sm:$0xff]
        %v2918 = vadd.f32 %v2877, %v2916
        %v2919 = vadd.f32 %v2878, %v2917
        %s2920 = scalar_lea.vmem %s269, 32 [#allocation10]
        %2921 = vst [vmem:[%s2920] sm:$0xff] %v2918
        %2922 = vst [vmem:[%s2920 + $0x8] sm:$0xff] %v2919
        %v2923 = vld [vmem:[%s305] sm:$0xff]
        %v2924 = vld [vmem:[%s305 + $0x8] sm:$0xff]
        %v2925 = vadd.f32 %v2901, %v2923
        %v2926 = vadd.f32 %v2902, %v2924
        %s2927 = scalar_lea.vmem %s269, 48 [#allocation10]
        %2928 = vst [vmem:[%s2927] sm:$0xff] %v2925
        %2929 = vst [vmem:[%s2927 + $0x8] sm:$0xff] %v2926
        %s2930 = sand.u32 %s140, 1
        %s2931 = scalar_lea.sflag [#allocation3], %s2930
        %s2932 = sand.u32 %s140, 1
        %s2933 = smul.addr %s2932, 64
        %s2934 = scalar_lea.vmem [#allocation10], %s2933
        // Predicated region
        $region57: #{residual_forward.1} parent=39 // pred_check
          %p2935 = pneg %p150
        $region58: #{residual_forward.1} parent=39 // pred_check_branch
          %2937 = sbr.rel (%p2935) target = $region60
        $region59: #{residual_forward.1} parent=39 // pred_region
          %s2939 = ssub.s32 1024, 1024
          %2940 = vsyncadd %s2931, %s2939
          %s2941 = smul.addr %s22, 8
          %s2942 = smul.addr %s2941, 128
          %s2943 = scalar_lea.hbm %s5, %s2942
          %s2944 = sshll.u32 %s2934, 4
          %s2945 = int_to_ptr.vmem [resolvable:$true] %s2944
          %2950 = dma.vmem_to_hbm [thread:$0]  %s2945, 1024, %s2943, %s2931, 128, 128, 8
        $region60: #{residual_forward.1} parent=39 // pred_fallthru
          _
      $region40: #{residual_forward.1} parent=5 // pred_fallthru
        _
      %p2951 = scmp.le.s32.totalorder 2, %s17
      // Predicated region
      $region61: #{residual_forward.1} parent=5 // pred_check
        %p2952 = pneg %p2951
      $region62: #{residual_forward.1} parent=5 // pred_check_branch
        %2954 = sbr.rel (%p2952) target = $region64
      $region63: #{residual_forward.1} parent=5 // pred_region
        %s2955 = ssub.s32 %s17, 2
        // Predicated region
        $region65: #{residual_forward.1} parent=63 // pred_check
          %p2956 = pneg %p156
        $region66: #{residual_forward.1} parent=63 // pred_check_branch
          %2958 = sbr.rel (%p2956) target = $region68
        $region67: #{residual_forward.1} parent=63 // pred_region
          %s2959 = sand.u32 %s141, 1
          %s2960 = scalar_lea.sflag [#allocation3], %s2959
          %s2961 = sand.u32 %s141, 1
          %s2962 = smul.addr %s2961, 64
          %s2963 = scalar_lea.vmem [#allocation10], %s2962
          %2964 = dma.done %s2960, 1024
        $region68: #{residual_forward.1} parent=63 // pred_fallthru
          _
      $region64: #{residual_forward.1} parent=5 // pred_fallthru
        _
    $region6: #{residual_forward.1} parent=1 // loop_footer
      %s21 = sadd.s32 1, %s17
    $region7: #{residual_forward.1} parent=1 // loop_footer_branch
      %16 = sbr.rel target = $region3
    $region8: #{residual_forward.1} parent=1 // loop_exit
      _
    %2965 = vsyncpa [#allocation3], 1
    %s2966 = scalar_lea.sflag [#allocation3], 1
    %2967 = vsyncpa %s2966, 1
    %2968 = vsyncpa [#allocation4], 1
    %s2969 = scalar_lea.sflag [#allocation4], 1
    %2970 = vsyncpa %s2969, 1
    %2971 = vsyncpa [#allocation6], 1
    %2972 = vsyncpa [#allocation9], 1

</llo_original>
